<compile_context>
chip_gen: v6e
topology: v6e:2x2x1
jax: 0.10.0
libtpu: 0.0.40
codegen_flags: <defaults>
</compile_context>

<pallas_src>
import functools

import jax
import jax.numpy as jnp
from jax.experimental import pallas as pl
from jax.experimental.pallas import tpu as pltpu

LN_EPS = 1e-6                      # ViT-style LayerNorm eps
VMEM_BUDGET = 44 * 1024 * 1024     # per-call working-set target (fits v7x 64 MiB)
VMEM_LIMIT = 56 * 1024 * 1024      # explicit scoped-VMEM limit (v5e default is 16 MiB)


def _elem_bytes(dt):
    return jnp.dtype(dt).itemsize


def _row_tile_candidates(M):
    """Divisors of M that are multiples of 8 (or M itself), descending."""
    return sorted({t for t in range(1, M + 1)
                   if M % t == 0 and (t % 8 == 0 or t == M)}, reverse=True)


def _pick_tm(M, target, per_row_bytes, fixed_bytes, budget=VMEM_BUDGET):
    """Largest legal row tile <= target whose estimated VMEM use fits budget."""
    cands = _row_tile_candidates(M)
    for t in cands:
        if t <= target and fixed_bytes + t * per_row_bytes <= budget:
            return t
    return cands[-1]  # smallest legal tile (weight residency is fixed cost)


# ----------------------------- Pallas kernels ------------------------------

def _ln_linear_kernel(gelu, has_bias, *refs):
    """out = [GELU]( LayerNorm(x) @ W + b ) for one (tm, Nout) row block.

    The weight block covers the full (K, Nout) matrix (VMEM-resident across
    the grid); LayerNorm statistics are computed once per row block.
    """
    if has_bias:
        x_ref, lnw_ref, lnb_ref, w_ref, b_ref, o_ref = refs
    else:
        x_ref, lnw_ref, lnb_ref, w_ref, o_ref = refs
        b_ref = None
    x = x_ref[...].astype(jnp.float32)
    mu = jnp.mean(x, axis=-1, keepdims=True)
    var = jnp.mean(jnp.square(x - mu), axis=-1, keepdims=True)
    xn = (x - mu) * jax.lax.rsqrt(var + LN_EPS)
    xn = xn * lnw_ref[...].astype(jnp.float32) + lnb_ref[...].astype(jnp.float32)
    y = jnp.dot(xn.astype(w_ref.dtype), w_ref[...],
                preferred_element_type=jnp.float32)
    if b_ref is not None:
        y = y + b_ref[...].astype(jnp.float32)
    if gelu:
        # TODO(synk): i-BERT polynomial GELU unavailable; tanh-approx GELU used.
        y = jax.nn.gelu(y, approximate=True)
    o_ref[...] = y.astype(o_ref.dtype)


def _linear_residual_kernel(x_ref, w_ref, b_ref, res_ref, o_ref):
    """out = x @ W + b + residual for one (tm, Nout) row block (W resident)."""
    y = jnp.dot(x_ref[...], w_ref[...], preferred_element_type=jnp.float32)
    y = y + b_ref[...].astype(jnp.float32) + res_ref[...].astype(jnp.float32)
    o_ref[...] = y.astype(o_ref.dtype)


def _attention_kernel(scale, q_ref, k_ref, v_ref, o_ref):
    """softmax(q k^T * scale) v for one group of heads (batched over heads).

    q/k/v blocks are (G, N, hd): head_dim is the full last axis (lane-clean,
    no unaligned column slices), and heads are a leading batch dim of the
    dot_generals, so there is no per-head Python unrolling.
    TODO(synk): for very long sequences (N >= 512) a KV-tiled (flash-style)
    inner loop would avoid materializing the (G, N, N) fp32 score block.
    """
    q = q_ref[...]
    k = k_ref[...]
    v = v_ref[...]
    s = jnp.einsum('gqd,gkd->gqk', q, k,
                   preferred_element_type=jnp.float32) * scale
    s = s - jnp.max(s, axis=-1, keepdims=True)
    p = jnp.exp(s)
    inv = pl.reciprocal(jnp.sum(p, axis=-1, keepdims=True), approx=True)
    p = (p * inv).astype(v.dtype)
    o = jnp.einsum('gqk,gkd->gqd', p, v, preferred_element_type=jnp.float32)
    o_ref[...] = o.astype(o_ref.dtype)


# ------------------------------ wrappers -----------------------------------

def ln_linear(x2d, ln_w, ln_b, w, b=None, *, gelu=False,
              out_dtype=jnp.bfloat16, tm_target=512):
    """y = [GELU](LayerNorm(x2d) @ w + b); x2d: [M, K], w: [K, N], b: [N]|None."""
    M, K = x2d.shape
    Nout = w.shape[1]
    xb, wb, ob = _elem_bytes(x2d.dtype), _elem_bytes(w.dtype), _elem_bytes(out_dtype)
    per_row = 2 * K * xb + 2 * Nout * ob + 4 * K + 4 * Nout   # dbuf acts + fp32 temps
    fixed = 2 * K * Nout * wb + 8 * K + 8 * Nout              # resident weight + vecs
    tm = _pick_tm(M, tm_target, per_row, fixed)
    grid = (M // tm,)

    in_specs = [
        pl.BlockSpec((tm, K), lambda i: (i, 0)),
        pl.BlockSpec((1, K), lambda i: (0, 0)),
        pl.BlockSpec((1, K), lambda i: (0, 0)),
        pl.BlockSpec((K, Nout), lambda i: (0, 0)),   # full weight, VMEM-resident
    ]
    args = [x2d, ln_w.reshape(1, K), ln_b.reshape(1, K), w]
    if b is not None:
        in_specs.append(pl.BlockSpec((1, Nout), lambda i: (0, 0)))
        args.append(b.reshape(1, Nout))

    return pl.pallas_call(
        functools.partial(_ln_linear_kernel, gelu, b is not None),
        grid=grid,
        in_specs=in_specs,
        out_specs=pl.BlockSpec((tm, Nout), lambda i: (i, 0)),
        out_shape=jax.ShapeDtypeStruct((M, Nout), out_dtype),
        compiler_params=pltpu.CompilerParams(
            dimension_semantics=("parallel",),
            vmem_limit_bytes=VMEM_LIMIT),
    )(*args)


def linear_residual(x2d, w, b, res2d, *, out_dtype=jnp.bfloat16, tm_target=512):
    """y = x2d @ w + b + res2d; x2d: [M, K], w: [K, N], res2d: [M, N]."""
    M, K = x2d.shape
    Nout = w.shape[1]
    xb, wb = _elem_bytes(x2d.dtype), _elem_bytes(w.dtype)
    ob, rb = _elem_bytes(out_dtype), _elem_bytes(res2d.dtype)
    per_row = 2 * K * xb + 2 * Nout * (ob + rb) + 4 * Nout
    fixed = 2 * K * Nout * wb + 8 * Nout
    tm = _pick_tm(M, tm_target, per_row, fixed)
    grid = (M // tm,)

    return pl.pallas_call(
        _linear_residual_kernel,
        grid=grid,
        in_specs=[
            pl.BlockSpec((tm, K), lambda i: (i, 0)),
            pl.BlockSpec((K, Nout), lambda i: (0, 0)),   # full weight, resident
            pl.BlockSpec((1, Nout), lambda i: (0, 0)),
            pl.BlockSpec((tm, Nout), lambda i: (i, 0)),
        ],
        out_specs=pl.BlockSpec((tm, Nout), lambda i: (i, 0)),
        out_shape=jax.ShapeDtypeStruct((M, Nout), out_dtype),
        compiler_params=pltpu.CompilerParams(
            dimension_semantics=("parallel",),
            vmem_limit_bytes=VMEM_LIMIT),
    )(x2d, w, b.reshape(1, Nout), res2d)


def _pick_head_group(BH):
    """Heads per grid block: keep per-block VMEM modest and >= 2 grid blocks
    (megacore on v7x)."""
    for g in (8, 4, 2, 1):
        if BH % g == 0 and BH // g >= 2:
            return g
    return 1


def attention(qkv3d, num_heads, *, out_dtype=jnp.bfloat16):
    """qkv3d: [B, N, 3*D] -> attention output [B, N, D]."""
    B, N, threeD = qkv3d.shape
    D = threeD // 3
    hd = D // num_heads
    scale = hd ** -0.5
    BH = B * num_heads
    G = _pick_head_group(BH)

    # Same layout transform as the PyTorch reference (reshape + permute):
    # [B, N, 3, H, hd] -> [3, B*H, N, hd].  Lane-clean: hd is the full last
    # axis of every kernel block, so no unaligned head-column slicing.
    qkvf = (qkv3d.reshape(B, N, 3, num_heads, hd)
            .transpose(2, 0, 3, 1, 4)
            .reshape(3, BH, N, hd))

    out = pl.pallas_call(
        functools.partial(_attention_kernel, scale),
        grid=(BH // G,),
        in_specs=[
            pl.BlockSpec((None, G, N, hd), lambda g: (0, g, 0, 0)),  # q
            pl.BlockSpec((None, G, N, hd), lambda g: (1, g, 0, 0)),  # k
            pl.BlockSpec((None, G, N, hd), lambda g: (2, g, 0, 0)),  # v
        ],
        out_specs=pl.BlockSpec((G, N, hd), lambda g: (g, 0, 0)),
        out_shape=jax.ShapeDtypeStruct((BH, N, hd), out_dtype),
        compiler_params=pltpu.CompilerParams(
            dimension_semantics=("parallel",),
            vmem_limit_bytes=VMEM_LIMIT),
    )(qkvf, qkvf, qkvf)

    # x.transpose(1, 2).reshape(B, N, C) in the reference.
    return (out.reshape(B, num_heads, N, hd)
            .transpose(0, 2, 1, 3)
            .reshape(B, N, D))


# ------------------------------ parameters ---------------------------------

def init_params(key, *, dim, mlp_ratio=4.0):
    hidden = int(dim * mlp_ratio)
    k = jax.random.split(key, 4)

    def tn(kk, shape, std=0.02):
        # weights kept in bf16 for MXU throughput / HBM traffic
        return (std * jax.random.truncated_normal(kk, -2.0, 2.0, shape)
                ).astype(jnp.bfloat16)

    return {
        "ln1_w": jnp.ones((dim,), jnp.float32),
        "ln1_b": jnp.zeros((dim,), jnp.float32),
        "qkv_w": tn(k[0], (dim, 3 * dim)),
        "qkv_b": None,                          # qkv_bias=False (module default)
        "proj_w": tn(k[1], (dim, dim)),
        "proj_b": jnp.zeros((dim,), jnp.float32),
        "ln2_w": jnp.ones((dim,), jnp.float32),
        "ln2_b": jnp.zeros((dim,), jnp.float32),
        "fc1_w": tn(k[2], (dim, hidden)),
        "fc1_b": jnp.zeros((hidden,), jnp.float32),
        "fc2_w": tn(k[3], (hidden, dim)),
        "fc2_b": jnp.zeros((dim,), jnp.float32),
    }


# ------------------------------ forward pass --------------------------------

def block_forward(params, x, act_scaling_factor, *, num_heads):
    """Block.forward: x [B, N, D] -> (x_out [B, N, D], act_scaling_factor)."""
    B, N, D = x.shape
    M = B * N
    x2d = x.reshape(M, D)
    # bf16 copy of the residual stream (halves residual-read HBM traffic).
    # Note: residual held in bf16 trades ~1e-3 relative rounding for bandwidth.
    x2d_res = x2d.astype(jnp.bfloat16)

    # norm1 -> qact1 -> attn.qkv   (LN fused into the qkv matmul; bias skipped)
    qkv = ln_linear(x2d, params["ln1_w"], params["ln1_b"],
                    params["qkv_w"], params["qkv_b"])           # [M, 3D] bf16

    # attention (softmax(qk^T*scale) v), batched over head groups
    attn = attention(qkv.reshape(B, N, 3 * D), num_heads)       # [B, N, D] bf16

    # attn.proj + qact3 + drop_path(Identity) + qact2 residual add (x_1)
    x2 = linear_residual(attn.reshape(M, D), params["proj_w"], params["proj_b"],
                         x2d_res, out_dtype=jnp.bfloat16)        # [M, D] bf16

    # norm2 -> qact3 -> mlp.fc1 + GELU   (LN fused into the fc1 matmul)
    h = ln_linear(x2, params["ln2_w"], params["ln2_b"],
                  params["fc1_w"], params["fc1_b"], gelu=True)   # [M, hidden]

    # mlp.fc2 + drop_path(Identity) + qact4 residual add (x_2)
    out = linear_residual(h, params["fc2_w"], params["fc2_b"], x2,
                          out_dtype=jnp.float32)                 # [M, D] fp32

    # TODO(synk): act_scaling_factor propagation (QuantAct) treated as identity.
    return out.reshape(B, N, D), act_scaling_factor


if __name__ == "__main__":
    key = jax.random.PRNGKey(0)
    pkey, xkey = jax.random.split(key)

    # small config consistent with the module: dim=128, 4 heads (head_dim=32),
    # mlp_ratio=4 (hidden=512), batch=2, tokens=64 — all sublane/lane friendly.
    B, N, D, heads = 2, 64, 128, 4

    params = init_params(pkey, dim=D, mlp_ratio=4.0)
    x = jax.random.normal(xkey, (B, N, D), dtype=jnp.float32)
    act_sf = jnp.float32(1.0)

    fwd = jax.jit(functools.partial(block_forward, num_heads=heads))
    out, out_sf = fwd(params, x, act_sf)
    jax.block_until_ready(out)
    assert out.shape == (B, N, D)
    assert bool(jnp.all(jnp.isfinite(out)))
    print("KERNEL_OK")
</pallas_src>

<mosaic_0001>
module attributes {stable_mosaic.version = 11 : i64} {
  func.func @_ln_linear_kernel(%arg0: i32, %arg1: memref<128x128xf32, #tpu.memory_space<vmem>>, %arg2: memref<1x128xf32, #tpu.memory_space<vmem>>, %arg3: memref<1x128xf32, #tpu.memory_space<vmem>>, %arg4: memref<128x384xbf16, #tpu.memory_space<vmem>>, %arg5: memref<128x384xbf16, #tpu.memory_space<vmem>>) attributes {dimension_semantics = [#tpu.dimension_semantics<parallel>], iteration_bounds = array<i64: 1>, scalar_prefetch = 0 : i64, scratch_operands = 0 : i64, tpu.core_type = #tpu.core_type<tc>, window_params = [{transform_indices = @transform_0, window_bounds = array<i64: 128, 128>}, {pipeline_mode = #tpu.pipeline_mode<synchronous>, transform_indices = @transform_1, window_bounds = array<i64: 1, 128>}, {pipeline_mode = #tpu.pipeline_mode<synchronous>, transform_indices = @transform_2, window_bounds = array<i64: 1, 128>}, {pipeline_mode = #tpu.pipeline_mode<synchronous>, transform_indices = @transform_3, window_bounds = array<i64: 128, 384>}, {transform_indices = @transform_4, window_bounds = array<i64: 128, 384>}]} {
    %c0 = arith.constant 0 : index
    %c0_0 = arith.constant 0 : index
    %0 = vector.load %arg1[%c0, %c0_0] : memref<128x128xf32, #tpu.memory_space<vmem>>, vector<128x128xf32>
    %cst = arith.constant dense<0.000000e+00> : vector<128xf32>
    %1 = vector.multi_reduction <add>, %0, %cst [1] : vector<128x128xf32> to vector<128xf32>
    %2 = vector.shape_cast %1 : vector<128xf32> to vector<128x1xf32>
    %cst_1 = arith.constant 1.280000e+02 : f32
    %3 = vector.broadcast %cst_1 : f32 to vector<128x1xf32>
    %4 = arith.divf %2, %3 : vector<128x1xf32>
    %5 = vector.broadcast %4 : vector<128x1xf32> to vector<128x128xf32>
    %6 = arith.subf %0, %5 : vector<128x128xf32>
    %7 = arith.mulf %6, %6 : vector<128x128xf32>
    %cst_2 = arith.constant dense<0.000000e+00> : vector<128xf32>
    %8 = vector.multi_reduction <add>, %7, %cst_2 [1] : vector<128x128xf32> to vector<128xf32>
    %9 = vector.shape_cast %8 : vector<128xf32> to vector<128x1xf32>
    %cst_3 = arith.constant 1.280000e+02 : f32
    %10 = vector.broadcast %cst_3 : f32 to vector<128x1xf32>
    %11 = arith.divf %9, %10 : vector<128x1xf32>
    %12 = vector.broadcast %4 : vector<128x1xf32> to vector<128x128xf32>
    %13 = arith.subf %0, %12 : vector<128x128xf32>
    %cst_4 = arith.constant 9.99999997E-7 : f32
    %14 = vector.broadcast %cst_4 : f32 to vector<128x1xf32>
    %15 = arith.addf %11, %14 : vector<128x1xf32>
    %16 = math.rsqrt %15 : vector<128x1xf32>
    %17 = vector.broadcast %16 : vector<128x1xf32> to vector<128x128xf32>
    %18 = arith.mulf %13, %17 : vector<128x128xf32>
    %c0_5 = arith.constant 0 : index
    %c0_6 = arith.constant 0 : index
    %19 = vector.load %arg2[%c0_5, %c0_6] : memref<1x128xf32, #tpu.memory_space<vmem>>, vector<1x128xf32>
    %20 = vector.broadcast %19 : vector<1x128xf32> to vector<128x128xf32>
    %21 = arith.mulf %18, %20 : vector<128x128xf32>
    %c0_7 = arith.constant 0 : index
    %c0_8 = arith.constant 0 : index
    %22 = vector.load %arg3[%c0_7, %c0_8] : memref<1x128xf32, #tpu.memory_space<vmem>>, vector<1x128xf32>
    %23 = vector.broadcast %22 : vector<1x128xf32> to vector<128x128xf32>
    %24 = arith.addf %21, %23 : vector<128x128xf32>
    %25 = arith.truncf %24 : vector<128x128xf32> to vector<128x128xbf16>
    %c0_9 = arith.constant 0 : index
    %c0_10 = arith.constant 0 : index
    %26 = vector.load %arg4[%c0_9, %c0_10] : memref<128x384xbf16, #tpu.memory_space<vmem>>, vector<128x384xbf16>
    %cst_11 = arith.constant dense<0.000000e+00> : vector<128x384xf32>
    %27 = tpu.matmul %25, %26, %cst_11 {dimension_numbers = #tpu.dot_dimension_numbers<[1], [0], [0], [1], [0, 0, 1, 1], [], []>} : vector<128x128xbf16>, vector<128x384xbf16>, vector<128x384xf32> -> vector<128x384xf32>
    %28 = arith.truncf %27 : vector<128x384xf32> to vector<128x384xbf16>
    %c0_12 = arith.constant 0 : index
    %c0_13 = arith.constant 0 : index
    %29 = vector.load %arg5[%c0_12, %c0_13] : memref<128x384xbf16, #tpu.memory_space<vmem>>, vector<128x384xbf16>
    tpu.vector_store %arg5[%c0_12, %c0_13], %28 {strides = array<i32>} : memref<128x384xbf16, #tpu.memory_space<vmem>>, vector<128x384xbf16>,
    return
  }
  func.func @transform_0(%arg0: i32) -> (i32, i32) {
    %c0_i32 = arith.constant 0 : i32
    %c0_i32_0 = arith.constant 0 : i32
    return %arg0, %c0_i32 : i32, i32
  }
  func.func @transform_1(%arg0: i32) -> (i32, i32) {
    %c0_i32 = arith.constant 0 : i32
    %c0_i32_0 = arith.constant 0 : i32
    %c0_i32_1 = arith.constant 0 : i32
    return %c0_i32, %c0_i32_0 : i32, i32
  }
  func.func @transform_2(%arg0: i32) -> (i32, i32) {
    %c0_i32 = arith.constant 0 : i32
    %c0_i32_0 = arith.constant 0 : i32
    %c0_i32_1 = arith.constant 0 : i32
    return %c0_i32, %c0_i32_0 : i32, i32
  }
  func.func @transform_3(%arg0: i32) -> (i32, i32) {
    %c0_i32 = arith.constant 0 : i32
    %c0_i32_0 = arith.constant 0 : i32
    %c0_i32_1 = arith.constant 0 : i32
    return %c0_i32, %c0_i32_0 : i32, i32
  }
  func.func @transform_4(%arg0: i32) -> (i32, i32) {
    %c0_i32 = arith.constant 0 : i32
    %c0_i32_0 = arith.constant 0 : i32
    return %arg0, %c0_i32 : i32, i32
  }
}

module attributes {stable_mosaic.version = 11 : i64} {
  func.func @_attention_kernel(%arg0: i32, %arg1: memref<1x4x64x32xbf16, #tpu.memory_space<vmem>>, %arg2: memref<1x4x64x32xbf16, #tpu.memory_space<vmem>>, %arg3: memref<1x4x64x32xbf16, #tpu.memory_space<vmem>>, %arg4: memref<4x64x32xbf16, #tpu.memory_space<vmem>>) attributes {dimension_semantics = [#tpu.dimension_semantics<parallel>], iteration_bounds = array<i64: 2>, scalar_prefetch = 0 : i64, scratch_operands = 0 : i64, tpu.core_type = #tpu.core_type<tc>, window_params = [{transform_indices = @transform_0, window_bounds = array<i64: 1, 4, 64, 32>}, {transform_indices = @transform_1, window_bounds = array<i64: 1, 4, 64, 32>}, {transform_indices = @transform_2, window_bounds = array<i64: 1, 4, 64, 32>}, {transform_indices = @transform_3, window_bounds = array<i64: 4, 64, 32>}]} {
    %c0 = arith.constant 0 : index
    %c0_0 = arith.constant 0 : index
    %c0_1 = arith.constant 0 : index
    %c0_2 = arith.constant 0 : index
    %0 = vector.load %arg1[%c0, %c0_0, %c0_1, %c0_2] : memref<1x4x64x32xbf16, #tpu.memory_space<vmem>>, vector<1x4x64x32xbf16>
    %1 = vector.shape_cast %0 : vector<1x4x64x32xbf16> to vector<4x64x32xbf16>
    %c0_3 = arith.constant 0 : index
    %c0_4 = arith.constant 0 : index
    %c0_5 = arith.constant 0 : index
    %c0_6 = arith.constant 0 : index
    %2 = vector.load %arg2[%c0_3, %c0_4, %c0_5, %c0_6] : memref<1x4x64x32xbf16, #tpu.memory_space<vmem>>, vector<1x4x64x32xbf16>
    %3 = vector.shape_cast %2 : vector<1x4x64x32xbf16> to vector<4x64x32xbf16>
    %c0_7 = arith.constant 0 : index
    %c0_8 = arith.constant 0 : index
    %c0_9 = arith.constant 0 : index
    %c0_10 = arith.constant 0 : index
    %4 = vector.load %arg3[%c0_7, %c0_8, %c0_9, %c0_10] : memref<1x4x64x32xbf16, #tpu.memory_space<vmem>>, vector<1x4x64x32xbf16>
    %5 = vector.shape_cast %4 : vector<1x4x64x32xbf16> to vector<4x64x32xbf16>
    "tpu.trace_start"() <{level = 10 : i32, message = "gqd,gkd->gqk"}> : () -> ()
    %cst = arith.constant dense<0.000000e+00> : vector<4x64x64xf32>
    %6 = tpu.matmul %1, %3, %cst {dimension_numbers = #tpu.dot_dimension_numbers<[2], [2], [1], [1], [0, 0, 0, 1, 1, 1], [0], [0]>} : vector<4x64x32xbf16>, vector<4x64x32xbf16>, vector<4x64x64xf32> -> vector<4x64x64xf32>
    "tpu.trace_stop"() : () -> ()
    %cst_11 = arith.constant 0.176776692 : f32
    %7 = vector.broadcast %cst_11 : f32 to vector<4x64x64xf32>
    %8 = arith.mulf %6, %7 : vector<4x64x64xf32>
    %cst_12 = arith.constant dense<0xFF800000> : vector<4x64xf32>
    %9 = vector.multi_reduction <maximumf>, %8, %cst_12 [2] : vector<4x64x64xf32> to vector<4x64xf32>
    %10 = vector.shape_cast %9 : vector<4x64xf32> to vector<4x64x1xf32>
    %11 = vector.broadcast %10 : vector<4x64x1xf32> to vector<4x64x64xf32>
    %12 = arith.subf %8, %11 : vector<4x64x64xf32>
    %13 = math.exp %12 : vector<4x64x64xf32>
    %cst_13 = arith.constant dense<0.000000e+00> : vector<4x64xf32>
    %14 = vector.multi_reduction <add>, %13, %cst_13 [2] : vector<4x64x64xf32> to vector<4x64xf32>
    %15 = vector.shape_cast %14 : vector<4x64xf32> to vector<4x64x1xf32>
    %16 = tpu.reciprocal %15 {approx = true} : vector<4x64x1xf32> -> vector<4x64x1xf32>
    %17 = vector.broadcast %16 : vector<4x64x1xf32> to vector<4x64x64xf32>
    %18 = arith.mulf %13, %17 : vector<4x64x64xf32>
    %19 = arith.truncf %18 : vector<4x64x64xf32> to vector<4x64x64xbf16>
    "tpu.trace_start"() <{level = 10 : i32, message = "gqk,gkd->gqd"}> : () -> ()
    %cst_14 = arith.constant dense<0.000000e+00> : vector<4x64x32xf32>
    %20 = tpu.matmul %19, %5, %cst_14 {dimension_numbers = #tpu.dot_dimension_numbers<[2], [1], [1], [2], [0, 0, 0, 1, 1, 2], [0], [0]>} : vector<4x64x64xbf16>, vector<4x64x32xbf16>, vector<4x64x32xf32> -> vector<4x64x32xf32>
    "tpu.trace_stop"() : () -> ()
    %21 = arith.truncf %20 : vector<4x64x32xf32> to vector<4x64x32xbf16>
    %c0_15 = arith.constant 0 : index
    %c0_16 = arith.constant 0 : index
    %c0_17 = arith.constant 0 : index
    %22 = vector.load %arg4[%c0_15, %c0_16, %c0_17] : memref<4x64x32xbf16, #tpu.memory_space<vmem>>, vector<4x64x32xbf16>
    tpu.vector_store %arg4[%c0_15, %c0_16, %c0_17], %21 {strides = array<i32>} : memref<4x64x32xbf16, #tpu.memory_space<vmem>>, vector<4x64x32xbf16>,
    return
  }
  func.func @transform_0(%arg0: i32) -> (i32, i32, i32, i32) {
    %c0_i32 = arith.constant 0 : i32
    %c0_i32_0 = arith.constant 0 : i32
    %c0_i32_1 = arith.constant 0 : i32
    %c0_i32_2 = arith.constant 0 : i32
    return %c0_i32, %arg0, %c0_i32_0, %c0_i32_1 : i32, i32, i32, i32
  }
  func.func @transform_1(%arg0: i32) -> (i32, i32, i32, i32) {
    %c1_i32 = arith.constant 1 : i32
    %c0_i32 = arith.constant 0 : i32
    %c0_i32_0 = arith.constant 0 : i32
    %c0_i32_1 = arith.constant 0 : i32
    return %c1_i32, %arg0, %c0_i32, %c0_i32_0 : i32, i32, i32, i32
  }
  func.func @transform_2(%arg0: i32) -> (i32, i32, i32, i32) {
    %c2_i32 = arith.constant 2 : i32
    %c0_i32 = arith.constant 0 : i32
    %c0_i32_0 = arith.constant 0 : i32
    %c0_i32_1 = arith.constant 0 : i32
    return %c2_i32, %arg0, %c0_i32, %c0_i32_0 : i32, i32, i32, i32
  }
  func.func @transform_3(%arg0: i32) -> (i32, i32, i32) {
    %c0_i32 = arith.constant 0 : i32
    %c0_i32_0 = arith.constant 0 : i32
    %c0_i32_1 = arith.constant 0 : i32
    return %arg0, %c0_i32, %c0_i32_0 : i32, i32, i32
  }
}

module attributes {stable_mosaic.version = 11 : i64} {
  func.func @_linear_residual_kernel(%arg0: i32, %arg1: memref<128x128xbf16, #tpu.memory_space<vmem>>, %arg2: memref<128x128xbf16, #tpu.memory_space<vmem>>, %arg3: memref<1x128xf32, #tpu.memory_space<vmem>>, %arg4: memref<128x128xbf16, #tpu.memory_space<vmem>>, %arg5: memref<128x128xbf16, #tpu.memory_space<vmem>>) attributes {dimension_semantics = [#tpu.dimension_semantics<parallel>], iteration_bounds = array<i64: 1>, scalar_prefetch = 0 : i64, scratch_operands = 0 : i64, tpu.core_type = #tpu.core_type<tc>, window_params = [{transform_indices = @transform_0, window_bounds = array<i64: 128, 128>}, {pipeline_mode = #tpu.pipeline_mode<synchronous>, transform_indices = @transform_1, window_bounds = array<i64: 128, 128>}, {pipeline_mode = #tpu.pipeline_mode<synchronous>, transform_indices = @transform_2, window_bounds = array<i64: 1, 128>}, {transform_indices = @transform_3, window_bounds = array<i64: 128, 128>}, {transform_indices = @transform_4, window_bounds = array<i64: 128, 128>}]} {
    %c0 = arith.constant 0 : index
    %c0_0 = arith.constant 0 : index
    %0 = vector.load %arg1[%c0, %c0_0] : memref<128x128xbf16, #tpu.memory_space<vmem>>, vector<128x128xbf16>
    %c0_1 = arith.constant 0 : index
    %c0_2 = arith.constant 0 : index
    %1 = vector.load %arg2[%c0_1, %c0_2] : memref<128x128xbf16, #tpu.memory_space<vmem>>, vector<128x128xbf16>
    %cst = arith.constant dense<0.000000e+00> : vector<128x128xf32>
    %2 = tpu.matmul %0, %1, %cst {dimension_numbers = #tpu.dot_dimension_numbers<[1], [0], [0], [1], [0, 0, 1, 1], [], []>} : vector<128x128xbf16>, vector<128x128xbf16>, vector<128x128xf32> -> vector<128x128xf32>
    %c0_3 = arith.constant 0 : index
    %c0_4 = arith.constant 0 : index
    %3 = vector.load %arg3[%c0_3, %c0_4] : memref<1x128xf32, #tpu.memory_space<vmem>>, vector<1x128xf32>
    %4 = vector.broadcast %3 : vector<1x128xf32> to vector<128x128xf32>
    %5 = arith.addf %2, %4 : vector<128x128xf32>
    %c0_5 = arith.constant 0 : index
    %c0_6 = arith.constant 0 : index
    %6 = vector.load %arg4[%c0_5, %c0_6] : memref<128x128xbf16, #tpu.memory_space<vmem>>, vector<128x128xbf16>
    %7 = arith.extf %6 : vector<128x128xbf16> to vector<128x128xf32>
    %8 = arith.addf %5, %7 : vector<128x128xf32>
    %9 = arith.truncf %8 : vector<128x128xf32> to vector<128x128xbf16>
    %c0_7 = arith.constant 0 : index
    %c0_8 = arith.constant 0 : index
    %10 = vector.load %arg5[%c0_7, %c0_8] : memref<128x128xbf16, #tpu.memory_space<vmem>>, vector<128x128xbf16>
    tpu.vector_store %arg5[%c0_7, %c0_8], %9 {strides = array<i32>} : memref<128x128xbf16, #tpu.memory_space<vmem>>, vector<128x128xbf16>,
    return
  }
  func.func @transform_0(%arg0: i32) -> (i32, i32) {
    %c0_i32 = arith.constant 0 : i32
    %c0_i32_0 = arith.constant 0 : i32
    return %arg0, %c0_i32 : i32, i32
  }
  func.func @transform_1(%arg0: i32) -> (i32, i32) {
    %c0_i32 = arith.constant 0 : i32
    %c0_i32_0 = arith.constant 0 : i32
    %c0_i32_1 = arith.constant 0 : i32
    return %c0_i32, %c0_i32_0 : i32, i32
  }
  func.func @transform_2(%arg0: i32) -> (i32, i32) {
    %c0_i32 = arith.constant 0 : i32
    %c0_i32_0 = arith.constant 0 : i32
    %c0_i32_1 = arith.constant 0 : i32
    return %c0_i32, %c0_i32_0 : i32, i32
  }
  func.func @transform_3(%arg0: i32) -> (i32, i32) {
    %c0_i32 = arith.constant 0 : i32
    %c0_i32_0 = arith.constant 0 : i32
    return %arg0, %c0_i32 : i32, i32
  }
  func.func @transform_4(%arg0: i32) -> (i32, i32) {
    %c0_i32 = arith.constant 0 : i32
    %c0_i32_0 = arith.constant 0 : i32
    return %arg0, %c0_i32 : i32, i32
  }
}

module attributes {stable_mosaic.version = 11 : i64} {
  func.func @_ln_linear_kernel(%arg0: i32, %arg1: memref<128x128xbf16, #tpu.memory_space<vmem>>, %arg2: memref<1x128xf32, #tpu.memory_space<vmem>>, %arg3: memref<1x128xf32, #tpu.memory_space<vmem>>, %arg4: memref<128x512xbf16, #tpu.memory_space<vmem>>, %arg5: memref<1x512xf32, #tpu.memory_space<vmem>>, %arg6: memref<128x512xbf16, #tpu.memory_space<vmem>>) attributes {dimension_semantics = [#tpu.dimension_semantics<parallel>], iteration_bounds = array<i64: 1>, scalar_prefetch = 0 : i64, scratch_operands = 0 : i64, tpu.core_type = #tpu.core_type<tc>, window_params = [{transform_indices = @transform_0, window_bounds = array<i64: 128, 128>}, {pipeline_mode = #tpu.pipeline_mode<synchronous>, transform_indices = @transform_1, window_bounds = array<i64: 1, 128>}, {pipeline_mode = #tpu.pipeline_mode<synchronous>, transform_indices = @transform_2, window_bounds = array<i64: 1, 128>}, {pipeline_mode = #tpu.pipeline_mode<synchronous>, transform_indices = @transform_3, window_bounds = array<i64: 128, 512>}, {pipeline_mode = #tpu.pipeline_mode<synchronous>, transform_indices = @transform_4, window_bounds = array<i64: 1, 512>}, {transform_indices = @transform_5, window_bounds = array<i64: 128, 512>}]} {
    %c0 = arith.constant 0 : index
    %c0_0 = arith.constant 0 : index
    %0 = vector.load %arg1[%c0, %c0_0] : memref<128x128xbf16, #tpu.memory_space<vmem>>, vector<128x128xbf16>
    %1 = arith.extf %0 : vector<128x128xbf16> to vector<128x128xf32>
    %cst = arith.constant dense<0.000000e+00> : vector<128xf32>
    %2 = vector.multi_reduction <add>, %1, %cst [1] : vector<128x128xf32> to vector<128xf32>
    %3 = vector.shape_cast %2 : vector<128xf32> to vector<128x1xf32>
    %cst_1 = arith.constant 1.280000e+02 : f32
    %4 = vector.broadcast %cst_1 : f32 to vector<128x1xf32>
    %5 = arith.divf %3, %4 : vector<128x1xf32>
    %6 = vector.broadcast %5 : vector<128x1xf32> to vector<128x128xf32>
    %7 = arith.subf %1, %6 : vector<128x128xf32>
    %8 = arith.mulf %7, %7 : vector<128x128xf32>
    %cst_2 = arith.constant dense<0.000000e+00> : vector<128xf32>
    %9 = vector.multi_reduction <add>, %8, %cst_2 [1] : vector<128x128xf32> to vector<128xf32>
    %10 = vector.shape_cast %9 : vector<128xf32> to vector<128x1xf32>
    %cst_3 = arith.constant 1.280000e+02 : f32
    %11 = vector.broadcast %cst_3 : f32 to vector<128x1xf32>
    %12 = arith.divf %10, %11 : vector<128x1xf32>
    %13 = vector.broadcast %5 : vector<128x1xf32> to vector<128x128xf32>
    %14 = arith.subf %1, %13 : vector<128x128xf32>
    %cst_4 = arith.constant 9.99999997E-7 : f32
    %15 = vector.broadcast %cst_4 : f32 to vector<128x1xf32>
    %16 = arith.addf %12, %15 : vector<128x1xf32>
    %17 = math.rsqrt %16 : vector<128x1xf32>
    %18 = vector.broadcast %17 : vector<128x1xf32> to vector<128x128xf32>
    %19 = arith.mulf %14, %18 : vector<128x128xf32>
    %c0_5 = arith.constant 0 : index
    %c0_6 = arith.constant 0 : index
    %20 = vector.load %arg2[%c0_5, %c0_6] : memref<1x128xf32, #tpu.memory_space<vmem>>, vector<1x128xf32>
    %21 = vector.broadcast %20 : vector<1x128xf32> to vector<128x128xf32>
    %22 = arith.mulf %19, %21 : vector<128x128xf32>
    %c0_7 = arith.constant 0 : index
    %c0_8 = arith.constant 0 : index
    %23 = vector.load %arg3[%c0_7, %c0_8] : memref<1x128xf32, #tpu.memory_space<vmem>>, vector<1x128xf32>
    %24 = vector.broadcast %23 : vector<1x128xf32> to vector<128x128xf32>
    %25 = arith.addf %22, %24 : vector<128x128xf32>
    %26 = arith.truncf %25 : vector<128x128xf32> to vector<128x128xbf16>
    %c0_9 = arith.constant 0 : index
    %c0_10 = arith.constant 0 : index
    %27 = vector.load %arg4[%c0_9, %c0_10] : memref<128x512xbf16, #tpu.memory_space<vmem>>, vector<128x512xbf16>
    %cst_11 = arith.constant dense<0.000000e+00> : vector<128x512xf32>
    %28 = tpu.matmul %26, %27, %cst_11 {dimension_numbers = #tpu.dot_dimension_numbers<[1], [0], [0], [1], [0, 0, 1, 1], [], []>} : vector<128x128xbf16>, vector<128x512xbf16>, vector<128x512xf32> -> vector<128x512xf32>
    %c0_12 = arith.constant 0 : index
    %c0_13 = arith.constant 0 : index
    %29 = vector.load %arg5[%c0_12, %c0_13] : memref<1x512xf32, #tpu.memory_space<vmem>>, vector<1x512xf32>
    %30 = vector.broadcast %29 : vector<1x512xf32> to vector<128x512xf32>
    %31 = arith.addf %28, %30 : vector<128x512xf32>
    %32 = arith.mulf %31, %31 : vector<128x512xf32>
    %33 = arith.mulf %31, %32 : vector<128x512xf32>
    %cst_14 = arith.constant 4.471500e-02 : f32
    %34 = vector.broadcast %cst_14 : f32 to vector<128x512xf32>
    %35 = arith.mulf %34, %33 : vector<128x512xf32>
    %36 = arith.addf %31, %35 : vector<128x512xf32>
    %cst_15 = arith.constant 0.797884583 : f32
    %37 = vector.broadcast %cst_15 : f32 to vector<128x512xf32>
    %38 = arith.mulf %37, %36 : vector<128x512xf32>
    %39 = math.tanh %38 : vector<128x512xf32>
    %cst_16 = arith.constant 1.000000e+00 : f32
    %40 = vector.broadcast %cst_16 : f32 to vector<128x512xf32>
    %41 = arith.addf %40, %39 : vector<128x512xf32>
    %cst_17 = arith.constant 5.000000e-01 : f32
    %42 = vector.broadcast %cst_17 : f32 to vector<128x512xf32>
    %43 = arith.mulf %42, %41 : vector<128x512xf32>
    %44 = arith.mulf %31, %43 : vector<128x512xf32>
    %45 = arith.truncf %44 : vector<128x512xf32> to vector<128x512xbf16>
    %c0_18 = arith.constant 0 : index
    %c0_19 = arith.constant 0 : index
    %46 = vector.load %arg6[%c0_18, %c0_19] : memref<128x512xbf16, #tpu.memory_space<vmem>>, vector<128x512xbf16>
    tpu.vector_store %arg6[%c0_18, %c0_19], %45 {strides = array<i32>} : memref<128x512xbf16, #tpu.memory_space<vmem>>, vector<128x512xbf16>,
    return
  }
  func.func @transform_0(%arg0: i32) -> (i32, i32) {
    %c0_i32 = arith.constant 0 : i32
    %c0_i32_0 = arith.constant 0 : i32
    return %arg0, %c0_i32 : i32, i32
  }
  func.func @transform_1(%arg0: i32) -> (i32, i32) {
    %c0_i32 = arith.constant 0 : i32
    %c0_i32_0 = arith.constant 0 : i32
    %c0_i32_1 = arith.constant 0 : i32
    return %c0_i32, %c0_i32_0 : i32, i32
  }
  func.func @transform_2(%arg0: i32) -> (i32, i32) {
    %c0_i32 = arith.constant 0 : i32
    %c0_i32_0 = arith.constant 0 : i32
    %c0_i32_1 = arith.constant 0 : i32
    return %c0_i32, %c0_i32_0 : i32, i32
  }
  func.func @transform_3(%arg0: i32) -> (i32, i32) {
    %c0_i32 = arith.constant 0 : i32
    %c0_i32_0 = arith.constant 0 : i32
    %c0_i32_1 = arith.constant 0 : i32
    return %c0_i32, %c0_i32_0 : i32, i32
  }
  func.func @transform_4(%arg0: i32) -> (i32, i32) {
    %c0_i32 = arith.constant 0 : i32
    %c0_i32_0 = arith.constant 0 : i32
    %c0_i32_1 = arith.constant 0 : i32
    return %c0_i32, %c0_i32_0 : i32, i32
  }
  func.func @transform_5(%arg0: i32) -> (i32, i32) {
    %c0_i32 = arith.constant 0 : i32
    %c0_i32_0 = arith.constant 0 : i32
    return %arg0, %c0_i32 : i32, i32
  }
}

module attributes {stable_mosaic.version = 11 : i64} {
  func.func @_linear_residual_kernel(%arg0: i32, %arg1: memref<128x512xbf16, #tpu.memory_space<vmem>>, %arg2: memref<512x128xbf16, #tpu.memory_space<vmem>>, %arg3: memref<1x128xf32, #tpu.memory_space<vmem>>, %arg4: memref<128x128xbf16, #tpu.memory_space<vmem>>, %arg5: memref<128x128xf32, #tpu.memory_space<vmem>>) attributes {dimension_semantics = [#tpu.dimension_semantics<parallel>], iteration_bounds = array<i64: 1>, scalar_prefetch = 0 : i64, scratch_operands = 0 : i64, tpu.core_type = #tpu.core_type<tc>, window_params = [{transform_indices = @transform_0, window_bounds = array<i64: 128, 512>}, {pipeline_mode = #tpu.pipeline_mode<synchronous>, transform_indices = @transform_1, window_bounds = array<i64: 512, 128>}, {pipeline_mode = #tpu.pipeline_mode<synchronous>, transform_indices = @transform_2, window_bounds = array<i64: 1, 128>}, {transform_indices = @transform_3, window_bounds = array<i64: 128, 128>}, {transform_indices = @transform_4, window_bounds = array<i64: 128, 128>}]} {
    %c0 = arith.constant 0 : index
    %c0_0 = arith.constant 0 : index
    %0 = vector.load %arg1[%c0, %c0_0] : memref<128x512xbf16, #tpu.memory_space<vmem>>, vector<128x512xbf16>
    %c0_1 = arith.constant 0 : index
    %c0_2 = arith.constant 0 : index
    %1 = vector.load %arg2[%c0_1, %c0_2] : memref<512x128xbf16, #tpu.memory_space<vmem>>, vector<512x128xbf16>
    %cst = arith.constant dense<0.000000e+00> : vector<128x128xf32>
    %2 = tpu.matmul %0, %1, %cst {dimension_numbers = #tpu.dot_dimension_numbers<[1], [0], [0], [1], [0, 0, 1, 1], [], []>} : vector<128x512xbf16>, vector<512x128xbf16>, vector<128x128xf32> -> vector<128x128xf32>
    %c0_3 = arith.constant 0 : index
    %c0_4 = arith.constant 0 : index
    %3 = vector.load %arg3[%c0_3, %c0_4] : memref<1x128xf32, #tpu.memory_space<vmem>>, vector<1x128xf32>
    %4 = vector.broadcast %3 : vector<1x128xf32> to vector<128x128xf32>
    %5 = arith.addf %2, %4 : vector<128x128xf32>
    %c0_5 = arith.constant 0 : index
    %c0_6 = arith.constant 0 : index
    %6 = vector.load %arg4[%c0_5, %c0_6] : memref<128x128xbf16, #tpu.memory_space<vmem>>, vector<128x128xbf16>
    %7 = arith.extf %6 : vector<128x128xbf16> to vector<128x128xf32>
    %8 = arith.addf %5, %7 : vector<128x128xf32>
    %c0_7 = arith.constant 0 : index
    %c0_8 = arith.constant 0 : index
    %9 = vector.load %arg5[%c0_7, %c0_8] : memref<128x128xf32, #tpu.memory_space<vmem>>, vector<128x128xf32>
    tpu.vector_store %arg5[%c0_7, %c0_8], %8 {strides = array<i32>} : memref<128x128xf32, #tpu.memory_space<vmem>>, vector<128x128xf32>,
    return
  }
  func.func @transform_0(%arg0: i32) -> (i32, i32) {
    %c0_i32 = arith.constant 0 : i32
    %c0_i32_0 = arith.constant 0 : i32
    return %arg0, %c0_i32 : i32, i32
  }
  func.func @transform_1(%arg0: i32) -> (i32, i32) {
    %c0_i32 = arith.constant 0 : i32
    %c0_i32_0 = arith.constant 0 : i32
    %c0_i32_1 = arith.constant 0 : i32
    return %c0_i32, %c0_i32_0 : i32, i32
  }
  func.func @transform_2(%arg0: i32) -> (i32, i32) {
    %c0_i32 = arith.constant 0 : i32
    %c0_i32_0 = arith.constant 0 : i32
    %c0_i32_1 = arith.constant 0 : i32
    return %c0_i32, %c0_i32_0 : i32, i32
  }
  func.func @transform_3(%arg0: i32) -> (i32, i32) {
    %c0_i32 = arith.constant 0 : i32
    %c0_i32_0 = arith.constant 0 : i32
    return %arg0, %c0_i32 : i32, i32
  }
  func.func @transform_4(%arg0: i32) -> (i32, i32) {
    %c0_i32 = arith.constant 0 : i32
    %c0_i32_0 = arith.constant 0 : i32
    return %arg0, %c0_i32 : i32, i32
  }
}

</mosaic_0001>

<llo_original>
// kernel: block_forward.5
$region0: #{block_forward.5}
  #allocation0 [shape = 'u32[]', space=smem, size = 0x4, offset = 0x4, fixed_abs, tag = 'smem constant byte address 0x4 - core index']
  #allocation1 [shape = 'u32[144,128]{1,0:T(1,128)}', space=vmem, size = 0x12000, scoped, tag = 'internal scratch']
  %s0 = inlined_call_operand.hbm [shape: f32[128,128], index: 0, kind: input, shape index: {}]
  %s1 = inlined_call_operand.vmem [shape: f32[1,128], index: 1, kind: input, shape index: {}]
  %s2 = inlined_call_operand.vmem [shape: f32[1,128], index: 2, kind: input, shape index: {}]
  %s3 = inlined_call_operand.hbm [shape: bf16[128,384], index: 3, kind: input, shape index: {}]
  %s4 = inlined_call_operand.vmem [shape: bf16[128,384], index: 4, kind: output, shape index: {}]
  %s5 = sld [smem:[#allocation0]]
  $region34: #{block_forward.5} parent=0
    _
  %s7 = ssub.s32 1, %s5
  %s8 = scalar_select 0, %s7, %s5
  $region1: #{block_forward.5} parent=0
    #allocation2 [shape = 'u8[65536]{0}', space=vmem, size = 0x10000, scoped, tag = 'input window, operand 0, single buffered']
    #allocation3 [shape = 's32[1]{0}', space=sflag, size = 0x4, scoped, tag = 'scoped memory for block_forward.5']
    #allocation4 [shape = 'u8[98304]{0}', space=vmem, size = 0x18000, scoped, tag = 'input window, operand 3, single buffered']
    #allocation5 [shape = 's32[1]{0}', space=sflag, size = 0x4, scoped, tag = 'scoped memory for block_forward.5']
    %9 = vsyncpa [#allocation3], 0
    %10 = vsyncpa [#allocation5], 0
    // Predicated region
    $region2: #{block_forward.5} parent=1 // pred_check
      _
    $region3: #{block_forward.5} parent=1 // pred_check_branch
      %12 = sbr.rel (0) target = $region5
    $region4: #{block_forward.5} parent=1 // pred_region
      %s14 = ssub.s32 2048, 2048
      %15 = vsyncadd [#allocation3], %s14
      %s16 = sshll.u32 [#allocation2], 4
      %s17 = int_to_ptr.vmem [resolvable:$true] %s16
      %22 = dma.hbm_to_vmem [thread:$0]  %s0, 2048, %s17, [#allocation3], 128, 128, 8
    $region5: #{block_forward.5} parent=1 // pred_fallthru
      _
    // Predicated region
    $region6: #{block_forward.5} parent=1 // pred_check
      _
    $region7: #{block_forward.5} parent=1 // pred_check_branch
      %24 = sbr.rel (0) target = $region9
    $region8: #{block_forward.5} parent=1 // pred_region
      _
    $region9: #{block_forward.5} parent=1 // pred_fallthru
      _
    // Predicated region
    $region10: #{block_forward.5} parent=1 // pred_check
      _
    $region11: #{block_forward.5} parent=1 // pred_check_branch
      %26 = sbr.rel (0) target = $region13
    $region12: #{block_forward.5} parent=1 // pred_region
      _
    $region13: #{block_forward.5} parent=1 // pred_fallthru
      _
    // Predicated region
    $region14: #{block_forward.5} parent=1 // pred_check
      _
    $region15: #{block_forward.5} parent=1 // pred_check_branch
      %28 = sbr.rel (0) target = $region17
    $region16: #{block_forward.5} parent=1 // pred_region
      %s30 = ssub.s32 3072, 3072
      %31 = vsyncadd [#allocation5], %s30
      %s32 = sshll.u32 [#allocation4], 4
      %s33 = int_to_ptr.vmem [resolvable:$true] %s32
      %38 = dma.hbm_to_vmem [thread:$0]  %s3, 3072, %s33, [#allocation5], 192, 192, 12
    $region17: #{block_forward.5} parent=1 // pred_fallthru
      _
    // Predicated region
    $region18: #{block_forward.5} parent=1 // pred_check
      _
    $region19: #{block_forward.5} parent=1 // pred_check_branch
      %40 = sbr.rel (0) target = $region21
    $region20: #{block_forward.5} parent=1 // pred_region
      %41 = dma.done [#allocation3], 2048
    $region21: #{block_forward.5} parent=1 // pred_fallthru
      _
    // Predicated region
    $region22: #{block_forward.5} parent=1 // pred_check
      _
    $region23: #{block_forward.5} parent=1 // pred_check_branch
      %43 = sbr.rel (0) target = $region25
    $region24: #{block_forward.5} parent=1 // pred_region
      %44 = dma.done [#allocation5], 3072
    $region25: #{block_forward.5} parent=1 // pred_fallthru
      _
    %v46 = vld [vmem:[#allocation2] sm:$0xff]
    %v47 = vld [vmem:[#allocation2 + $0x8] sm:$0xff]
    %v48 = vld [vmem:[#allocation2 + $0x10] sm:$0xff]
    %v49 = vld [vmem:[#allocation2 + $0x18] sm:$0xff]
    %v50 = vld [vmem:[#allocation2 + $0x20] sm:$0xff]
    %v51 = vld [vmem:[#allocation2 + $0x28] sm:$0xff]
    %v52 = vld [vmem:[#allocation2 + $0x30] sm:$0xff]
    %v53 = vld [vmem:[#allocation2 + $0x38] sm:$0xff]
    %v54 = vld [vmem:[#allocation2 + $0x40] sm:$0xff]
    %v55 = vld [vmem:[#allocation2 + $0x48] sm:$0xff]
    %v56 = vld [vmem:[#allocation2 + $0x50] sm:$0xff]
    %v57 = vld [vmem:[#allocation2 + $0x58] sm:$0xff]
    %v58 = vld [vmem:[#allocation2 + $0x60] sm:$0xff]
    %v59 = vld [vmem:[#allocation2 + $0x68] sm:$0xff]
    %v60 = vld [vmem:[#allocation2 + $0x70] sm:$0xff]
    %v61 = vld [vmem:[#allocation2 + $0x78] sm:$0xff]
    %62 = vadd.xlane.f32.xlu0 %v46
    %v63 = vpop.xlane.xlu0 %62
    %64 = vadd.xlane.f32.xlu0 %v47
    %v65 = vpop.xlane.xlu0 %64
    %66 = vadd.xlane.f32.xlu0 %v48
    %v67 = vpop.xlane.xlu0 %66
    %68 = vadd.xlane.f32.xlu0 %v49
    %v69 = vpop.xlane.xlu0 %68
    %70 = vadd.xlane.f32.xlu0 %v50
    %v71 = vpop.xlane.xlu0 %70
    %72 = vadd.xlane.f32.xlu0 %v51
    %v73 = vpop.xlane.xlu0 %72
    %74 = vadd.xlane.f32.xlu0 %v52
    %v75 = vpop.xlane.xlu0 %74
    %76 = vadd.xlane.f32.xlu0 %v53
    %v77 = vpop.xlane.xlu0 %76
    %78 = vadd.xlane.f32.xlu0 %v54
    %v79 = vpop.xlane.xlu0 %78
    %80 = vadd.xlane.f32.xlu0 %v55
    %v81 = vpop.xlane.xlu0 %80
    %82 = vadd.xlane.f32.xlu0 %v56
    %v83 = vpop.xlane.xlu0 %82
    %84 = vadd.xlane.f32.xlu0 %v57
    %v85 = vpop.xlane.xlu0 %84
    %86 = vadd.xlane.f32.xlu0 %v58
    %v87 = vpop.xlane.xlu0 %86
    %88 = vadd.xlane.f32.xlu0 %v59
    %v89 = vpop.xlane.xlu0 %88
    %90 = vadd.xlane.f32.xlu0 %v60
    %v91 = vpop.xlane.xlu0 %90
    %92 = vadd.xlane.f32.xlu0 %v61
    %v93 = vpop.xlane.xlu0 %92
    %v94 = vrcp.pop 128.0
    %v95 = vmul.f32 %v63, %v94
    %v96 = vmul.f32 %v65, %v94
    %v97 = vmul.f32 %v67, %v94
    %v98 = vmul.f32 %v69, %v94
    %v99 = vmul.f32 %v71, %v94
    %v100 = vmul.f32 %v73, %v94
    %v101 = vmul.f32 %v75, %v94
    %v102 = vmul.f32 %v77, %v94
    %v103 = vmul.f32 %v79, %v94
    %v104 = vmul.f32 %v81, %v94
    %v105 = vmul.f32 %v83, %v94
    %v106 = vmul.f32 %v85, %v94
    %v107 = vmul.f32 %v87, %v94
    %v108 = vmul.f32 %v89, %v94
    %v109 = vmul.f32 %v91, %v94
    %v110 = vmul.f32 %v93, %v94
    %v111 = vsub.f32 %v46, %v95
    %v112 = vsub.f32 %v47, %v96
    %v113 = vsub.f32 %v48, %v97
    %v114 = vsub.f32 %v49, %v98
    %v115 = vsub.f32 %v50, %v99
    %v116 = vsub.f32 %v51, %v100
    %v117 = vsub.f32 %v52, %v101
    %v118 = vsub.f32 %v53, %v102
    %v119 = vsub.f32 %v54, %v103
    %v120 = vsub.f32 %v55, %v104
    %v121 = vsub.f32 %v56, %v105
    %v122 = vsub.f32 %v57, %v106
    %v123 = vsub.f32 %v58, %v107
    %v124 = vsub.f32 %v59, %v108
    %v125 = vsub.f32 %v60, %v109
    %v126 = vsub.f32 %v61, %v110
    %v127 = vmul.f32 %v111, %v111
    %v128 = vmul.f32 %v112, %v112
    %v129 = vmul.f32 %v113, %v113
    %v130 = vmul.f32 %v114, %v114
    %v131 = vmul.f32 %v115, %v115
    %v132 = vmul.f32 %v116, %v116
    %v133 = vmul.f32 %v117, %v117
    %v134 = vmul.f32 %v118, %v118
    %v135 = vmul.f32 %v119, %v119
    %v136 = vmul.f32 %v120, %v120
    %v137 = vmul.f32 %v121, %v121
    %v138 = vmul.f32 %v122, %v122
    %v139 = vmul.f32 %v123, %v123
    %v140 = vmul.f32 %v124, %v124
    %v141 = vmul.f32 %v125, %v125
    %v142 = vmul.f32 %v126, %v126
    %143 = vadd.xlane.f32.xlu0 %v127
    %v144 = vpop.xlane.xlu0 %143
    %145 = vadd.xlane.f32.xlu0 %v128
    %v146 = vpop.xlane.xlu0 %145
    %147 = vadd.xlane.f32.xlu0 %v129
    %v148 = vpop.xlane.xlu0 %147
    %149 = vadd.xlane.f32.xlu0 %v130
    %v150 = vpop.xlane.xlu0 %149
    %151 = vadd.xlane.f32.xlu0 %v131
    %v152 = vpop.xlane.xlu0 %151
    %153 = vadd.xlane.f32.xlu0 %v132
    %v154 = vpop.xlane.xlu0 %153
    %155 = vadd.xlane.f32.xlu0 %v133
    %v156 = vpop.xlane.xlu0 %155
    %157 = vadd.xlane.f32.xlu0 %v134
    %v158 = vpop.xlane.xlu0 %157
    %159 = vadd.xlane.f32.xlu0 %v135
    %v160 = vpop.xlane.xlu0 %159
    %161 = vadd.xlane.f32.xlu0 %v136
    %v162 = vpop.xlane.xlu0 %161
    %163 = vadd.xlane.f32.xlu0 %v137
    %v164 = vpop.xlane.xlu0 %163
    %165 = vadd.xlane.f32.xlu0 %v138
    %v166 = vpop.xlane.xlu0 %165
    %167 = vadd.xlane.f32.xlu0 %v139
    %v168 = vpop.xlane.xlu0 %167
    %169 = vadd.xlane.f32.xlu0 %v140
    %v170 = vpop.xlane.xlu0 %169
    %171 = vadd.xlane.f32.xlu0 %v141
    %v172 = vpop.xlane.xlu0 %171
    %173 = vadd.xlane.f32.xlu0 %v142
    %v174 = vpop.xlane.xlu0 %173
    %v175 = vmul.f32 %v144, %v94
    %v176 = vmul.f32 %v146, %v94
    %v177 = vmul.f32 %v148, %v94
    %v178 = vmul.f32 %v150, %v94
    %v179 = vmul.f32 %v152, %v94
    %v180 = vmul.f32 %v154, %v94
    %v181 = vmul.f32 %v156, %v94
    %v182 = vmul.f32 %v158, %v94
    %v183 = vmul.f32 %v160, %v94
    %v184 = vmul.f32 %v162, %v94
    %v185 = vmul.f32 %v164, %v94
    %v186 = vmul.f32 %v166, %v94
    %v187 = vmul.f32 %v168, %v94
    %v188 = vmul.f32 %v170, %v94
    %v189 = vmul.f32 %v172, %v94
    %v190 = vmul.f32 %v174, %v94
    %v191 = vadd.f32 %v175, 1e-06
    %v192 = vadd.f32 %v176, 1e-06
    %v193 = vadd.f32 %v177, 1e-06
    %v194 = vadd.f32 %v178, 1e-06
    %v195 = vadd.f32 %v179, 1e-06
    %v196 = vadd.f32 %v180, 1e-06
    %v197 = vadd.f32 %v181, 1e-06
    %v198 = vadd.f32 %v182, 1e-06
    %v199 = vadd.f32 %v183, 1e-06
    %v200 = vadd.f32 %v184, 1e-06
    %v201 = vadd.f32 %v185, 1e-06
    %v202 = vadd.f32 %v186, 1e-06
    %v203 = vadd.f32 %v187, 1e-06
    %v204 = vadd.f32 %v188, 1e-06
    %v205 = vadd.f32 %v189, 1e-06
    %v206 = vadd.f32 %v190, 1e-06
    %v207 = vrsqrt.pop %v191
    %v208 = vrsqrt.pop %v192
    %v209 = vrsqrt.pop %v193
    %v210 = vrsqrt.pop %v194
    %v211 = vrsqrt.pop %v195
    %v212 = vrsqrt.pop %v196
    %v213 = vrsqrt.pop %v197
    %v214 = vrsqrt.pop %v198
    %v215 = vrsqrt.pop %v199
    %v216 = vrsqrt.pop %v200
    %v217 = vrsqrt.pop %v201
    %v218 = vrsqrt.pop %v202
    %v219 = vrsqrt.pop %v203
    %v220 = vrsqrt.pop %v204
    %v221 = vrsqrt.pop %v205
    %v222 = vrsqrt.pop %v206
    %v223 = vmul.f32 %v111, %v207
    %v224 = vmul.f32 %v112, %v208
    %v225 = vmul.f32 %v113, %v209
    %v226 = vmul.f32 %v114, %v210
    %v227 = vmul.f32 %v115, %v211
    %v228 = vmul.f32 %v116, %v212
    %v229 = vmul.f32 %v117, %v213
    %v230 = vmul.f32 %v118, %v214
    %v231 = vmul.f32 %v119, %v215
    %v232 = vmul.f32 %v120, %v216
    %v233 = vmul.f32 %v121, %v217
    %v234 = vmul.f32 %v122, %v218
    %v235 = vmul.f32 %v123, %v219
    %v236 = vmul.f32 %v124, %v220
    %v237 = vmul.f32 %v125, %v221
    %v238 = vmul.f32 %v126, %v222
    %v239 = vld [vmem:[%s1] sm:$0x1]
    %v241 = vlaneseq
    %v242 = vshrl.u32 %v241, 7
    %v243 = vsub.s32 0, %v242
    %v244 = vrot.slane %v239, %v243
    %v246 = vmul.f32 %v223, %v244
    %v247 = vmul.f32 %v224, %v244
    %v248 = vmul.f32 %v225, %v244
    %v249 = vmul.f32 %v226, %v244
    %v250 = vmul.f32 %v227, %v244
    %v251 = vmul.f32 %v228, %v244
    %v252 = vmul.f32 %v229, %v244
    %v253 = vmul.f32 %v230, %v244
    %v254 = vmul.f32 %v231, %v244
    %v255 = vmul.f32 %v232, %v244
    %v256 = vmul.f32 %v233, %v244
    %v257 = vmul.f32 %v234, %v244
    %v258 = vmul.f32 %v235, %v244
    %v259 = vmul.f32 %v236, %v244
    %v260 = vmul.f32 %v237, %v244
    %v261 = vmul.f32 %v238, %v244
    %v262 = vld [vmem:[%s2] sm:$0x1]
    %v264 = vlaneseq
    %v265 = vshrl.u32 %v264, 7
    %v266 = vsub.s32 0, %v265
    %v267 = vrot.slane %v262, %v266
    %v269 = vadd.f32 %v246, %v267
    %v270 = vadd.f32 %v247, %v267
    %v271 = vadd.f32 %v248, %v267
    %v272 = vadd.f32 %v249, %v267
    %v273 = vadd.f32 %v250, %v267
    %v274 = vadd.f32 %v251, %v267
    %v275 = vadd.f32 %v252, %v267
    %v276 = vadd.f32 %v253, %v267
    %v277 = vadd.f32 %v254, %v267
    %v278 = vadd.f32 %v255, %v267
    %v279 = vadd.f32 %v256, %v267
    %v280 = vadd.f32 %v257, %v267
    %v281 = vadd.f32 %v258, %v267
    %v282 = vadd.f32 %v259, %v267
    %v283 = vadd.f32 %v260, %v267
    %v284 = vadd.f32 %v261, %v267
    %v285 = vpack.c.bf16 %v270, %v269
    %v286 = vpack.c.bf16 %v272, %v271
    %v287 = vpack.c.bf16 %v274, %v273
    %v288 = vpack.c.bf16 %v276, %v275
    %v289 = vpack.c.bf16 %v278, %v277
    %v290 = vpack.c.bf16 %v280, %v279
    %v291 = vpack.c.bf16 %v282, %v281
    %v292 = vpack.c.bf16 %v284, %v283
    %v293 = vld [vmem:[#allocation4] sm:$0xff]
    %v294 = vld [vmem:[#allocation4 + $0x8] sm:$0xf]
    %v295 = vld [vmem:[#allocation4 + $0xc] sm:$0xff]
    %v296 = vld [vmem:[#allocation4 + $0x14] sm:$0xf]
    %v297 = vld [vmem:[#allocation4 + $0x18] sm:$0xff]
    %v298 = vld [vmem:[#allocation4 + $0x20] sm:$0xf]
    %v299 = vld [vmem:[#allocation4 + $0x24] sm:$0xff]
    %v300 = vld [vmem:[#allocation4 + $0x2c] sm:$0xf]
    %v301 = vld [vmem:[#allocation4 + $0x30] sm:$0xff]
    %v302 = vld [vmem:[#allocation4 + $0x38] sm:$0xf]
    %v303 = vld [vmem:[#allocation4 + $0x3c] sm:$0xff]
    %v304 = vld [vmem:[#allocation4 + $0x44] sm:$0xf]
    %v305 = vld [vmem:[#allocation4 + $0x48] sm:$0xff]
    %v306 = vld [vmem:[#allocation4 + $0x50] sm:$0xf]
    %v307 = vld [vmem:[#allocation4 + $0x54] sm:$0xff]
    %v308 = vld [vmem:[#allocation4 + $0x5c] sm:$0xf]
    %v309 = vld [vmem:[#allocation4 + $0x60] sm:$0xff]
    %v310 = vld [vmem:[#allocation4 + $0x68] sm:$0xf]
    %v311 = vld [vmem:[#allocation4 + $0x6c] sm:$0xff]
    %v312 = vld [vmem:[#allocation4 + $0x74] sm:$0xf]
    %v313 = vld [vmem:[#allocation4 + $0x78] sm:$0xff]
    %v314 = vld [vmem:[#allocation4 + $0x80] sm:$0xf]
    %v315 = vld [vmem:[#allocation4 + $0x84] sm:$0xff]
    %v316 = vld [vmem:[#allocation4 + $0x8c] sm:$0xf]
    %v317 = vld [vmem:[#allocation4 + $0x90] sm:$0xff]
    %v318 = vld [vmem:[#allocation4 + $0x98] sm:$0xf]
    %v319 = vld [vmem:[#allocation4 + $0x9c] sm:$0xff]
    %v320 = vld [vmem:[#allocation4 + $0xa4] sm:$0xf]
    %v321 = vld [vmem:[#allocation4 + $0xa8] sm:$0xff]
    %v322 = vld [vmem:[#allocation4 + $0xb0] sm:$0xf]
    %v323 = vld [vmem:[#allocation4 + $0xb4] sm:$0xff]
    %v324 = vld [vmem:[#allocation4 + $0xbc] sm:$0xf]
    %v357 = vunpack.c.l.b16 %v293
    %v358 = vunpack.c.h.b16 %v293
    %v359 = vunpack.c.l.b16 %v294
    %v360 = vunpack.c.l.b16 %v295
    %v361 = vunpack.c.h.b16 %v295
    %v362 = vunpack.c.l.b16 %v296
    %v363 = vunpack.c.l.b16 %v297
    %v364 = vunpack.c.h.b16 %v297
    %v365 = vunpack.c.l.b16 %v298
    %v366 = vunpack.c.l.b16 %v299
    %v367 = vunpack.c.h.b16 %v299
    %v368 = vunpack.c.l.b16 %v300
    %v369 = vunpack.c.l.b16 %v301
    %v370 = vunpack.c.h.b16 %v301
    %v371 = vunpack.c.l.b16 %v302
    %v372 = vunpack.c.l.b16 %v303
    %v373 = vunpack.c.h.b16 %v303
    %v374 = vunpack.c.l.b16 %v304
    %v375 = vunpack.c.l.b16 %v305
    %v376 = vunpack.c.h.b16 %v305
    %v377 = vunpack.c.l.b16 %v306
    %v378 = vunpack.c.l.b16 %v307
    %v379 = vunpack.c.h.b16 %v307
    %v380 = vunpack.c.l.b16 %v308
    %v381 = vunpack.c.l.b16 %v309
    %v382 = vunpack.c.h.b16 %v309
    %v383 = vunpack.c.l.b16 %v310
    %v384 = vunpack.c.l.b16 %v311
    %v385 = vunpack.c.h.b16 %v311
    %v386 = vunpack.c.l.b16 %v312
    %v387 = vunpack.c.l.b16 %v313
    %v388 = vunpack.c.h.b16 %v313
    %v389 = vunpack.c.l.b16 %v314
    %v390 = vunpack.c.l.b16 %v315
    %v391 = vunpack.c.h.b16 %v315
    %v392 = vunpack.c.l.b16 %v316
    %v393 = vunpack.c.l.b16 %v317
    %v394 = vunpack.c.h.b16 %v317
    %v395 = vunpack.c.l.b16 %v318
    %v396 = vunpack.c.l.b16 %v319
    %v397 = vunpack.c.h.b16 %v319
    %v398 = vunpack.c.l.b16 %v320
    %v399 = vunpack.c.l.b16 %v321
    %v400 = vunpack.c.h.b16 %v321
    %v401 = vunpack.c.l.b16 %v322
    %v402 = vunpack.c.l.b16 %v323
    %v403 = vunpack.c.h.b16 %v323
    %v404 = vunpack.c.l.b16 %v324
    %v405 = vpack.c.b16 %v360, %v357
    %v406 = vpack.c.b16 %v361, %v358
    %v407 = vpack.c.b16 %v362, %v359
    %v408 = vpack.c.b16 %v366, %v363
    %v409 = vpack.c.b16 %v367, %v364
    %v410 = vpack.c.b16 %v368, %v365
    %v411 = vpack.c.b16 %v372, %v369
    %v412 = vpack.c.b16 %v373, %v370
    %v413 = vpack.c.b16 %v374, %v371
    %v414 = vpack.c.b16 %v378, %v375
    %v415 = vpack.c.b16 %v379, %v376
    %v416 = vpack.c.b16 %v380, %v377
    %v417 = vpack.c.b16 %v384, %v381
    %v418 = vpack.c.b16 %v385, %v382
    %v419 = vpack.c.b16 %v386, %v383
    %v420 = vpack.c.b16 %v390, %v387
    %v421 = vpack.c.b16 %v391, %v388
    %v422 = vpack.c.b16 %v392, %v389
    %v423 = vpack.c.b16 %v396, %v393
    %v424 = vpack.c.b16 %v397, %v394
    %v425 = vpack.c.b16 %v398, %v395
    %v426 = vpack.c.b16 %v402, %v399
    %v427 = vpack.c.b16 %v403, %v400
    %v428 = vpack.c.b16 %v404, %v401
    %453 = vmatprep.subr.bf16.mxu0 %v427
    %454 = vmatpush1.bf16.msra.mxu0 %v426
    %455 = vmatprep.subr.bf16.mxu0 %v424
    %456 = vmatpush1.bf16.msra.mxu0 %v423
    %457 = vmatprep.subr.bf16.mxu0 %v421
    %458 = vmatpush1.bf16.msra.mxu0 %v420
    %459 = vmatprep.subr.bf16.mxu0 %v418
    %460 = vmatpush1.bf16.msra.mxu0 %v417
    %461 = vmatprep.subr.bf16.mxu0 %v415
    %462 = vmatpush1.bf16.msra.mxu0 %v414
    %463 = vmatprep.subr.bf16.mxu0 %v412
    %464 = vmatpush1.bf16.msra.mxu0 %v411
    %465 = vmatprep.subr.bf16.mxu0 %v409
    %466 = vmatpush1.bf16.msra.mxu0 %v408
    %467 = vmatprep.subr.bf16.mxu0 %v406
    %468 = vmatpush1.bf16.msra.mxu0 %v405
    %469 = vmatprep.subr.bf16.mxu0 0
    %470 = vmatpush2.bf16.msra.mxu0 0
    %471 = vmatprep.subr.bf16.mxu0 0
    %472 = vmatpush2.bf16.msra.mxu0 0
    %473 = vmatprep.subr.bf16.mxu0 0
    %474 = vmatpush2.bf16.msra.mxu0 0
    %475 = vmatprep.subr.bf16.mxu0 0
    %476 = vmatpush2.bf16.msra.mxu0 0
    %477 = vmatprep.subr.bf16.mxu0 0
    %478 = vmatpush2.bf16.msra.mxu0 0
    %479 = vmatprep.subr.bf16.mxu0 0
    %480 = vmatpush2.bf16.msra.mxu0 0
    %481 = vmatprep.subr.bf16.mxu0 0
    %482 = vmatpush2.bf16.msra.mxu0 0
    %483 = vmatprep.subr.bf16.mxu0 0
    %484 = vmatpush2.bf16.msra.mxu0 0
    %485 = vmatprep.mubr.bf16.mxu0 0
    %486 = vmatmul.mubr.bf16.gmra.mxu0 %v285
    %v487 = vpop.f32.mrf.mxu0
    %v488 = vadd.f32 0.0, %v487
    %v489 = vpop.f32.mrf.mxu0
    %v490 = vadd.f32 0.0, %v489
    %v491 = vpop.f32.mrf.mxu0
    %v492 = vadd.f32 0.0, %v491
    %v493 = vpop.f32.mrf.mxu0
    %v494 = vadd.f32 0.0, %v493
    %495 = vmatprep.mubr.bf16.mxu0 0
    %496 = vmatmul.mubr.bf16.gmra.mxu0 %v286
    %v497 = vpop.f32.mrf.mxu0
    %v498 = vadd.f32 0.0, %v497
    %v499 = vpop.f32.mrf.mxu0
    %v500 = vadd.f32 0.0, %v499
    %v501 = vpop.f32.mrf.mxu0
    %v502 = vadd.f32 0.0, %v501
    %v503 = vpop.f32.mrf.mxu0
    %v504 = vadd.f32 0.0, %v503
    %505 = vmatprep.mubr.bf16.mxu0 0
    %506 = vmatmul.mubr.bf16.gmra.mxu0 %v287
    %v507 = vpop.f32.mrf.mxu0
    %v508 = vadd.f32 0.0, %v507
    %v509 = vpop.f32.mrf.mxu0
    %v510 = vadd.f32 0.0, %v509
    %v511 = vpop.f32.mrf.mxu0
    %v512 = vadd.f32 0.0, %v511
    %v513 = vpop.f32.mrf.mxu0
    %v514 = vadd.f32 0.0, %v513
    %515 = vmatprep.mubr.bf16.mxu0 0
    %516 = vmatmul.mubr.bf16.gmra.mxu0 %v288
    %v517 = vpop.f32.mrf.mxu0
    %v518 = vadd.f32 0.0, %v517
    %v519 = vpop.f32.mrf.mxu0
    %v520 = vadd.f32 0.0, %v519
    %v521 = vpop.f32.mrf.mxu0
    %v522 = vadd.f32 0.0, %v521
    %v523 = vpop.f32.mrf.mxu0
    %v524 = vadd.f32 0.0, %v523
    %525 = vmatprep.mubr.bf16.mxu0 0
    %526 = vmatmul.mubr.bf16.gmra.mxu0 %v289
    %v527 = vpop.f32.mrf.mxu0
    %v528 = vadd.f32 0.0, %v527
    %v529 = vpop.f32.mrf.mxu0
    %v530 = vadd.f32 0.0, %v529
    %v531 = vpop.f32.mrf.mxu0
    %v532 = vadd.f32 0.0, %v531
    %v533 = vpop.f32.mrf.mxu0
    %v534 = vadd.f32 0.0, %v533
    %535 = vmatprep.mubr.bf16.mxu0 0
    %536 = vmatmul.mubr.bf16.gmra.mxu0 %v290
    %v537 = vpop.f32.mrf.mxu0
    %v538 = vadd.f32 0.0, %v537
    %v539 = vpop.f32.mrf.mxu0
    %v540 = vadd.f32 0.0, %v539
    %v541 = vpop.f32.mrf.mxu0
    %v542 = vadd.f32 0.0, %v541
    %v543 = vpop.f32.mrf.mxu0
    %v544 = vadd.f32 0.0, %v543
    %545 = vmatprep.mubr.bf16.mxu0 0
    %546 = vmatmul.mubr.bf16.gmra.mxu0 %v291
    %v547 = vpop.f32.mrf.mxu0
    %v548 = vadd.f32 0.0, %v547
    %v549 = vpop.f32.mrf.mxu0
    %v550 = vadd.f32 0.0, %v549
    %v551 = vpop.f32.mrf.mxu0
    %v552 = vadd.f32 0.0, %v551
    %v553 = vpop.f32.mrf.mxu0
    %v554 = vadd.f32 0.0, %v553
    %555 = vmatprep.mubr.bf16.mxu0 0
    %556 = vmatmul.mubr.bf16.gmra.mxu0 %v292
    %v557 = vpop.f32.mrf.mxu0
    %v558 = vadd.f32 0.0, %v557
    %v559 = vpop.f32.mrf.mxu0
    %v560 = vadd.f32 0.0, %v559
    %v561 = vpop.f32.mrf.mxu0
    %v562 = vadd.f32 0.0, %v561
    %v563 = vpop.f32.mrf.mxu0
    %v564 = vadd.f32 0.0, %v563
    %565 = vdwg.mxu0
    %566 = vmatprep.subr.bf16.mxu0 0
    %567 = vmatpush1.bf16.msra.mxu0 %v428
    %568 = vmatprep.subr.bf16.mxu0 0
    %569 = vmatpush1.bf16.msra.mxu0 %v425
    %570 = vmatprep.subr.bf16.mxu0 0
    %571 = vmatpush1.bf16.msra.mxu0 %v422
    %572 = vmatprep.subr.bf16.mxu0 0
    %573 = vmatpush1.bf16.msra.mxu0 %v419
    %574 = vmatprep.subr.bf16.mxu0 0
    %575 = vmatpush1.bf16.msra.mxu0 %v416
    %576 = vmatprep.subr.bf16.mxu0 0
    %577 = vmatpush1.bf16.msra.mxu0 %v413
    %578 = vmatprep.subr.bf16.mxu0 0
    %579 = vmatpush1.bf16.msra.mxu0 %v410
    %580 = vmatprep.subr.bf16.mxu0 0
    %581 = vmatpush1.bf16.msra.mxu0 %v407
    %582 = vmatprep.subr.bf16.mxu0 0
    %583 = vmatpush2.bf16.msra.mxu0 0
    %584 = vmatprep.subr.bf16.mxu0 0
    %585 = vmatpush2.bf16.msra.mxu0 0
    %586 = vmatprep.subr.bf16.mxu0 0
    %587 = vmatpush2.bf16.msra.mxu0 0
    %588 = vmatprep.subr.bf16.mxu0 0
    %589 = vmatpush2.bf16.msra.mxu0 0
    %590 = vmatprep.subr.bf16.mxu0 0
    %591 = vmatpush2.bf16.msra.mxu0 0
    %592 = vmatprep.subr.bf16.mxu0 0
    %593 = vmatpush2.bf16.msra.mxu0 0
    %594 = vmatprep.subr.bf16.mxu0 0
    %595 = vmatpush2.bf16.msra.mxu0 0
    %596 = vmatprep.subr.bf16.mxu0 0
    %597 = vmatpush2.bf16.msra.mxu0 0
    %598 = vmatprep.mubr.bf16.mxu0 0
    %599 = vmatmul.mubr.bf16.gmra.mxu0 %v285
    %v600 = vpop.f32.mrf.mxu0
    %v601 = vadd.f32 0.0, %v600
    %v602 = vpop.f32.mrf.mxu0
    %v603 = vpop.f32.mrf.mxu0
    %v604 = vadd.f32 0.0, %v603
    %v605 = vpop.f32.mrf.mxu0
    %606 = vmatprep.mubr.bf16.mxu0 0
    %607 = vmatmul.mubr.bf16.gmra.mxu0 %v286
    %v608 = vpop.f32.mrf.mxu0
    %v609 = vadd.f32 0.0, %v608
    %v610 = vpop.f32.mrf.mxu0
    %v611 = vpop.f32.mrf.mxu0
    %v612 = vadd.f32 0.0, %v611
    %v613 = vpop.f32.mrf.mxu0
    %614 = vmatprep.mubr.bf16.mxu0 0
    %615 = vmatmul.mubr.bf16.gmra.mxu0 %v287
    %v616 = vpop.f32.mrf.mxu0
    %v617 = vadd.f32 0.0, %v616
    %v618 = vpop.f32.mrf.mxu0
    %v619 = vpop.f32.mrf.mxu0
    %v620 = vadd.f32 0.0, %v619
    %v621 = vpop.f32.mrf.mxu0
    %622 = vmatprep.mubr.bf16.mxu0 0
    %623 = vmatmul.mubr.bf16.gmra.mxu0 %v288
    %v624 = vpop.f32.mrf.mxu0
    %v625 = vadd.f32 0.0, %v624
    %v626 = vpop.f32.mrf.mxu0
    %v627 = vpop.f32.mrf.mxu0
    %v628 = vadd.f32 0.0, %v627
    %v629 = vpop.f32.mrf.mxu0
    %630 = vmatprep.mubr.bf16.mxu0 0
    %631 = vmatmul.mubr.bf16.gmra.mxu0 %v289
    %v632 = vpop.f32.mrf.mxu0
    %v633 = vadd.f32 0.0, %v632
    %v634 = vpop.f32.mrf.mxu0
    %v635 = vpop.f32.mrf.mxu0
    %v636 = vadd.f32 0.0, %v635
    %v637 = vpop.f32.mrf.mxu0
    %638 = vmatprep.mubr.bf16.mxu0 0
    %639 = vmatmul.mubr.bf16.gmra.mxu0 %v290
    %v640 = vpop.f32.mrf.mxu0
    %v641 = vadd.f32 0.0, %v640
    %v642 = vpop.f32.mrf.mxu0
    %v643 = vpop.f32.mrf.mxu0
    %v644 = vadd.f32 0.0, %v643
    %v645 = vpop.f32.mrf.mxu0
    %646 = vmatprep.mubr.bf16.mxu0 0
    %647 = vmatmul.mubr.bf16.gmra.mxu0 %v291
    %v648 = vpop.f32.mrf.mxu0
    %v649 = vadd.f32 0.0, %v648
    %v650 = vpop.f32.mrf.mxu0
    %v651 = vpop.f32.mrf.mxu0
    %v652 = vadd.f32 0.0, %v651
    %v653 = vpop.f32.mrf.mxu0
    %654 = vmatprep.mubr.bf16.mxu0 0
    %655 = vmatmul.mubr.bf16.gmra.mxu0 %v292
    %v656 = vpop.f32.mrf.mxu0
    %v657 = vadd.f32 0.0, %v656
    %v658 = vpop.f32.mrf.mxu0
    %v659 = vpop.f32.mrf.mxu0
    %v660 = vadd.f32 0.0, %v659
    %v661 = vpop.f32.mrf.mxu0
    %662 = vdwg.mxu0
    %v663 = vpack.c.bf16 %v492, %v488
    %v664 = vpack.c.bf16 %v494, %v490
    %v665 = vpack.c.bf16 %v604, %v601
    %v666 = vpack.c.bf16 %v502, %v498
    %v667 = vpack.c.bf16 %v504, %v500
    %v668 = vpack.c.bf16 %v612, %v609
    %v669 = vpack.c.bf16 %v512, %v508
    %v670 = vpack.c.bf16 %v514, %v510
    %v671 = vpack.c.bf16 %v620, %v617
    %v672 = vpack.c.bf16 %v522, %v518
    %v673 = vpack.c.bf16 %v524, %v520
    %v674 = vpack.c.bf16 %v628, %v625
    %v675 = vpack.c.bf16 %v532, %v528
    %v676 = vpack.c.bf16 %v534, %v530
    %v677 = vpack.c.bf16 %v636, %v633
    %v678 = vpack.c.bf16 %v542, %v538
    %v679 = vpack.c.bf16 %v544, %v540
    %v680 = vpack.c.bf16 %v644, %v641
    %v681 = vpack.c.bf16 %v552, %v548
    %v682 = vpack.c.bf16 %v554, %v550
    %v683 = vpack.c.bf16 %v652, %v649
    %v684 = vpack.c.bf16 %v562, %v558
    %v685 = vpack.c.bf16 %v564, %v560
    %v686 = vpack.c.bf16 %v660, %v657
    %v711 = vunpack.c.l.b16 %v663
    %v712 = vunpack.c.l.b16 %v664
    %v713 = vunpack.c.l.b16 %v665
    %v714 = vunpack.c.h.b16 %v663
    %v715 = vunpack.c.h.b16 %v664
    %v716 = vunpack.c.h.b16 %v665
    %v717 = vunpack.c.l.b16 %v666
    %v718 = vunpack.c.l.b16 %v667
    %v719 = vunpack.c.l.b16 %v668
    %v720 = vunpack.c.h.b16 %v666
    %v721 = vunpack.c.h.b16 %v667
    %v722 = vunpack.c.h.b16 %v668
    %v723 = vunpack.c.l.b16 %v669
    %v724 = vunpack.c.l.b16 %v670
    %v725 = vunpack.c.l.b16 %v671
    %v726 = vunpack.c.h.b16 %v669
    %v727 = vunpack.c.h.b16 %v670
    %v728 = vunpack.c.h.b16 %v671
    %v729 = vunpack.c.l.b16 %v672
    %v730 = vunpack.c.l.b16 %v673
    %v731 = vunpack.c.l.b16 %v674
    %v732 = vunpack.c.h.b16 %v672
    %v733 = vunpack.c.h.b16 %v673
    %v734 = vunpack.c.h.b16 %v674
    %v735 = vunpack.c.l.b16 %v675
    %v736 = vunpack.c.l.b16 %v676
    %v737 = vunpack.c.l.b16 %v677
    %v738 = vunpack.c.h.b16 %v675
    %v739 = vunpack.c.h.b16 %v676
    %v740 = vunpack.c.h.b16 %v677
    %v741 = vunpack.c.l.b16 %v678
    %v742 = vunpack.c.l.b16 %v679
    %v743 = vunpack.c.l.b16 %v680
    %v744 = vunpack.c.h.b16 %v678
    %v745 = vunpack.c.h.b16 %v679
    %v746 = vunpack.c.h.b16 %v680
    %v747 = vunpack.c.l.b16 %v681
    %v748 = vunpack.c.l.b16 %v682
    %v749 = vunpack.c.l.b16 %v683
    %v750 = vunpack.c.h.b16 %v681
    %v751 = vunpack.c.h.b16 %v682
    %v752 = vunpack.c.h.b16 %v683
    %v753 = vunpack.c.l.b16 %v684
    %v754 = vunpack.c.l.b16 %v685
    %v755 = vunpack.c.l.b16 %v686
    %v756 = vunpack.c.h.b16 %v684
    %v757 = vunpack.c.h.b16 %v685
    %v758 = vunpack.c.h.b16 %v686
    %v759 = vpack.c.b16 %v712, %v711
    %v760 = vpack.c.b16 %v713, %v713
    %v761 = vpack.c.b16 %v715, %v714
    %v762 = vpack.c.b16 %v716, %v716
    %v763 = vpack.c.b16 %v718, %v717
    %v764 = vpack.c.b16 %v719, %v719
    %v765 = vpack.c.b16 %v721, %v720
    %v766 = vpack.c.b16 %v722, %v722
    %v767 = vpack.c.b16 %v724, %v723
    %v768 = vpack.c.b16 %v725, %v725
    %v769 = vpack.c.b16 %v727, %v726
    %v770 = vpack.c.b16 %v728, %v728
    %v771 = vpack.c.b16 %v730, %v729
    %v772 = vpack.c.b16 %v731, %v731
    %v773 = vpack.c.b16 %v733, %v732
    %v774 = vpack.c.b16 %v734, %v734
    %v775 = vpack.c.b16 %v736, %v735
    %v776 = vpack.c.b16 %v737, %v737
    %v777 = vpack.c.b16 %v739, %v738
    %v778 = vpack.c.b16 %v740, %v740
    %v779 = vpack.c.b16 %v742, %v741
    %v780 = vpack.c.b16 %v743, %v743
    %v781 = vpack.c.b16 %v745, %v744
    %v782 = vpack.c.b16 %v746, %v746
    %v783 = vpack.c.b16 %v748, %v747
    %v784 = vpack.c.b16 %v749, %v749
    %v785 = vpack.c.b16 %v751, %v750
    %v786 = vpack.c.b16 %v752, %v752
    %v787 = vpack.c.b16 %v754, %v753
    %v788 = vpack.c.b16 %v755, %v755
    %v789 = vpack.c.b16 %v757, %v756
    %v790 = vpack.c.b16 %v758, %v758
    %823 = vst [vmem:[%s4] sm:$0xff] %v759
    %824 = vst [vmem:[%s4 + $0x8] sm:$0xf] %v760
    %825 = vst [vmem:[%s4 + $0xc] sm:$0xff] %v761
    %826 = vst [vmem:[%s4 + $0x14] sm:$0xf] %v762
    %827 = vst [vmem:[%s4 + $0x18] sm:$0xff] %v763
    %828 = vst [vmem:[%s4 + $0x20] sm:$0xf] %v764
    %829 = vst [vmem:[%s4 + $0x24] sm:$0xff] %v765
    %830 = vst [vmem:[%s4 + $0x2c] sm:$0xf] %v766
    %831 = vst [vmem:[%s4 + $0x30] sm:$0xff] %v767
    %832 = vst [vmem:[%s4 + $0x38] sm:$0xf] %v768
    %833 = vst [vmem:[%s4 + $0x3c] sm:$0xff] %v769
    %834 = vst [vmem:[%s4 + $0x44] sm:$0xf] %v770
    %835 = vst [vmem:[%s4 + $0x48] sm:$0xff] %v771
    %836 = vst [vmem:[%s4 + $0x50] sm:$0xf] %v772
    %837 = vst [vmem:[%s4 + $0x54] sm:$0xff] %v773
    %838 = vst [vmem:[%s4 + $0x5c] sm:$0xf] %v774
    %839 = vst [vmem:[%s4 + $0x60] sm:$0xff] %v775
    %840 = vst [vmem:[%s4 + $0x68] sm:$0xf] %v776
    %841 = vst [vmem:[%s4 + $0x6c] sm:$0xff] %v777
    %842 = vst [vmem:[%s4 + $0x74] sm:$0xf] %v778
    %843 = vst [vmem:[%s4 + $0x78] sm:$0xff] %v779
    %844 = vst [vmem:[%s4 + $0x80] sm:$0xf] %v780
    %845 = vst [vmem:[%s4 + $0x84] sm:$0xff] %v781
    %846 = vst [vmem:[%s4 + $0x8c] sm:$0xf] %v782
    %847 = vst [vmem:[%s4 + $0x90] sm:$0xff] %v783
    %848 = vst [vmem:[%s4 + $0x98] sm:$0xf] %v784
    %849 = vst [vmem:[%s4 + $0x9c] sm:$0xff] %v785
    %850 = vst [vmem:[%s4 + $0xa4] sm:$0xf] %v786
    %851 = vst [vmem:[%s4 + $0xa8] sm:$0xff] %v787
    %852 = vst [vmem:[%s4 + $0xb0] sm:$0xf] %v788
    %853 = vst [vmem:[%s4 + $0xb4] sm:$0xff] %v789
    %854 = vst [vmem:[%s4 + $0xbc] sm:$0xf] %v790
    // Predicated region
    $region26: #{block_forward.5} parent=1 // pred_check
      _
    $region27: #{block_forward.5} parent=1 // pred_check_branch
      %856 = sbr.rel (0) target = $region29
    $region28: #{block_forward.5} parent=1 // pred_region
      _
    $region29: #{block_forward.5} parent=1 // pred_fallthru
      _
    // Predicated region
    $region30: #{block_forward.5} parent=1 // pred_check
      _
    $region31: #{block_forward.5} parent=1 // pred_check_branch
      %858 = sbr.rel (0) target = $region33
    $region32: #{block_forward.5} parent=1 // pred_region
      _
    $region33: #{block_forward.5} parent=1 // pred_fallthru
      _
    %859 = vsyncpa [#allocation3], 1
    %860 = vsyncpa [#allocation5], 1

// kernel: block_forward.6
$region0: #{block_forward.6}
  #allocation0 [shape = 'u32[]', space=smem, size = 0x4, offset = 0x4, fixed_abs, tag = 'smem constant byte address 0x4 - core index']
  #allocation1 [shape = 'u32[144,128]{1,0:T(1,128)}', space=vmem, size = 0x12000, scoped, tag = 'internal scratch']
  %s0 = inlined_call_operand.vmem [shape: bf16[3,8,64,32], index: 0, kind: input, shape index: {}, may-alias: {0,1,2}]
  %s1 = inlined_call_operand.vmem [shape: bf16[3,8,64,32], index: 1, kind: input, shape index: {}, may-alias: {0,1,2}]
  %s2 = inlined_call_operand.vmem [shape: bf16[3,8,64,32], index: 2, kind: input, shape index: {}, may-alias: {0,1,2}]
  %s3 = inlined_call_operand.vmem [shape: bf16[8,64,32], index: 3, kind: output, shape index: {}]
  %s4 = sld [smem:[#allocation0]]
  $region45: #{block_forward.6} parent=0
    _
  %s6 = ssub.s32 1, %s4
  %s7 = scalar_select 0, %s6, %s4
  loop: start=0, step=1, limit=4
  $region2: #{block_forward.6} parent=0 // loop_pre_header
    _
  $region3: #{block_forward.6} parent=0 // loop_header
    %s9 = sphi 0, %s13
    %p10 = scmp.ge.s32.totalorder %s9, 4
    %s19 = sphi 0, %s21
    %s22 = sphi 0, %s19
    %s23 = sphi 0, %s22
    %s39 = sphi 0, %s23
    %s45 = sphi 0, %s47
    %s48 = sphi 0, %s45
    %s49 = sphi 0, %s48
    %s65 = sphi 0, %s49
    %s71 = sphi 0, %s73
    %s74 = sphi 0, %s71
    %s75 = sphi 0, %s74
    %s91 = sphi 0, %s75
    %s97 = sphi 0, %s99
    %s100 = sphi 0, %s97
    %s101 = sphi 0, %s100
    %s117 = sphi 0, %s101
  $region4: #{block_forward.6} parent=0 // loop_header_branch
    %12 = sbr.rel (%p10) target = $region8
  $region5: #{block_forward.6} parent=0 // loop_body
    %s14 = ssub.s32 %s9, 1
    %s15 = ssub.s32 %s9, 2
    %s16 = sadd.s32 %s9, 1
    %s17 = ssub.s32 %s9, %s16
    %p18 = scmp.eq.s32.totalorder %s17, 0
    %s20 = sadd.s32 %s19, 1
    %s21 = scalar_select %p18, %s19, %s20
    %p24 = pneg %p18
    %p25 = scmp.eq.s32.totalorder %s9, 1
    %p26 = por %p24, %p25
    %p27 = scmp.ne.s32.totalorder %s19, %s22
    %p28 = scmp.eq.s32.totalorder %s9, 0
    %p29 = por %p27, %p28
    %p30 = scmp.ne.s32.totalorder %s19, %s22
    %p31 = scmp.eq.s32.totalorder %s14, 1
    %p32 = por %p30, %p31
    %p33 = scmp.ne.s32.totalorder %s22, %s23
    %p34 = scmp.eq.s32.totalorder %s14, 0
    %p35 = por %p33, %p34
    %p36 = scmp.ne.s32.totalorder %s22, %s23
    %p37 = scmp.eq.s32.totalorder %s15, 1
    %p38 = por %p36, %p37
    %p40 = scmp.ne.s32.totalorder %s23, %s39
    %p41 = scmp.eq.s32.totalorder %s15, 0
    %p42 = por %p40, %p41
    %s43 = ssub.s32 %s9, %s16
    %p44 = scmp.eq.s32.totalorder %s43, 0
    %s46 = sadd.s32 %s45, 1
    %s47 = scalar_select %p44, %s45, %s46
    %p50 = pneg %p44
    %p51 = scmp.eq.s32.totalorder %s9, 1
    %p52 = por %p50, %p51
    %p53 = scmp.ne.s32.totalorder %s45, %s48
    %p54 = scmp.eq.s32.totalorder %s9, 0
    %p55 = por %p53, %p54
    %p56 = scmp.ne.s32.totalorder %s45, %s48
    %p57 = scmp.eq.s32.totalorder %s14, 1
    %p58 = por %p56, %p57
    %p59 = scmp.ne.s32.totalorder %s48, %s49
    %p60 = scmp.eq.s32.totalorder %s14, 0
    %p61 = por %p59, %p60
    %p62 = scmp.ne.s32.totalorder %s48, %s49
    %p63 = scmp.eq.s32.totalorder %s15, 1
    %p64 = por %p62, %p63
    %p66 = scmp.ne.s32.totalorder %s49, %s65
    %p67 = scmp.eq.s32.totalorder %s15, 0
    %p68 = por %p66, %p67
    %s69 = ssub.s32 %s9, %s16
    %p70 = scmp.eq.s32.totalorder %s69, 0
    %s72 = sadd.s32 %s71, 1
    %s73 = scalar_select %p70, %s71, %s72
    %p76 = pneg %p70
    %p77 = scmp.eq.s32.totalorder %s9, 1
    %p78 = por %p76, %p77
    %p79 = scmp.ne.s32.totalorder %s71, %s74
    %p80 = scmp.eq.s32.totalorder %s9, 0
    %p81 = por %p79, %p80
    %p82 = scmp.ne.s32.totalorder %s71, %s74
    %p83 = scmp.eq.s32.totalorder %s14, 1
    %p84 = por %p82, %p83
    %p85 = scmp.ne.s32.totalorder %s74, %s75
    %p86 = scmp.eq.s32.totalorder %s14, 0
    %p87 = por %p85, %p86
    %p88 = scmp.ne.s32.totalorder %s74, %s75
    %p89 = scmp.eq.s32.totalorder %s15, 1
    %p90 = por %p88, %p89
    %p92 = scmp.ne.s32.totalorder %s75, %s91
    %p93 = scmp.eq.s32.totalorder %s15, 0
    %p94 = por %p92, %p93
    %s95 = ssub.s32 %s9, %s16
    %p96 = scmp.eq.s32.totalorder %s95, 0
    %s98 = sadd.s32 %s97, 1
    %s99 = scalar_select %p96, %s97, %s98
    %p102 = pneg %p96
    %p103 = scmp.eq.s32.totalorder %s9, 1
    %p104 = por %p102, %p103
    %p105 = scmp.ne.s32.totalorder %s97, %s100
    %p106 = scmp.eq.s32.totalorder %s9, 0
    %p107 = por %p105, %p106
    %p108 = scmp.ne.s32.totalorder %s97, %s100
    %p109 = scmp.eq.s32.totalorder %s14, 1
    %p110 = por %p108, %p109
    %p111 = scmp.ne.s32.totalorder %s100, %s101
    %p112 = scmp.eq.s32.totalorder %s14, 0
    %p113 = por %p111, %p112
    %p114 = scmp.ne.s32.totalorder %s100, %s101
    %p115 = scmp.eq.s32.totalorder %s15, 1
    %p116 = por %p114, %p115
    %p118 = scmp.ne.s32.totalorder %s101, %s117
    %p119 = scmp.eq.s32.totalorder %s15, 0
    %p120 = por %p118, %p119
    %p121 = scmp.le.s32.totalorder 1, %s9
    %p122 = scmp.lt.s32.totalorder %s9, 3
    %p123 = pnand %p121, %p122
    %p124 = pneg %p123
    // Predicated region
    $region9: #{block_forward.6} parent=5 // pred_check
      _
    $region10: #{block_forward.6} parent=5 // pred_check_branch
      %126 = sbr.rel (%p123) target = $region12
    $region11: #{block_forward.6} parent=5 // pred_region
      %s127 = ssub.s32 %s9, 1
    $region12: #{block_forward.6} parent=5 // pred_fallthru
      _
    %p128 = scmp.lt.s32.totalorder %s9, 2
    // Predicated region
    $region13: #{block_forward.6} parent=5 // pred_check
      %p129 = pneg %p128
    $region14: #{block_forward.6} parent=5 // pred_check_branch
      %131 = sbr.rel (%p129) target = $region16
    $region15: #{block_forward.6} parent=5 // pred_region
      // Predicated region
      $region17: #{block_forward.6} parent=15 // pred_check
        %p132 = pneg %p29
      $region18: #{block_forward.6} parent=15 // pred_check_branch
        %134 = sbr.rel (%p132) target = $region20
      $region19: #{block_forward.6} parent=15 // pred_region
        %s135 = smul.u32 4, %s9
        %p136 = scmp.lt.s32.totalorder %s135, 7
        %s137 = scalar_select %p136, %s135, 7
        %s138 = smul.addr %s137, 8
        %s139 = smul.addr %s138, 4
        %s140 = scalar_lea.vmem %s0, %s139
        %s141 = smul.u32 4, %s9
      $region20: #{block_forward.6} parent=15 // pred_fallthru
        _
      // Predicated region
      $region21: #{block_forward.6} parent=15 // pred_check
        %p142 = pneg %p55
      $region22: #{block_forward.6} parent=15 // pred_check_branch
        %144 = sbr.rel (%p142) target = $region24
      $region23: #{block_forward.6} parent=15 // pred_region
        %s145 = smul.u32 4, %s9
        %p146 = scmp.lt.s32.totalorder %s145, 7
        %s147 = scalar_select %p146, %s145, 7
        %s148 = smul.addr %s147, 8
        %s149 = sadd.s32 %s148, 64
        %s150 = smul.addr %s149, 4
        %s151 = scalar_lea.vmem %s1, %s150
        %s152 = smul.u32 4, %s9
      $region24: #{block_forward.6} parent=15 // pred_fallthru
        _
      // Predicated region
      $region25: #{block_forward.6} parent=15 // pred_check
        %p153 = pneg %p81
      $region26: #{block_forward.6} parent=15 // pred_check_branch
        %155 = sbr.rel (%p153) target = $region28
      $region27: #{block_forward.6} parent=15 // pred_region
        %s156 = smul.u32 4, %s9
        %p157 = scmp.lt.s32.totalorder %s156, 7
        %s158 = scalar_select %p157, %s156, 7
        %s159 = smul.addr %s158, 8
        %s160 = sadd.s32 %s159, 128
        %s161 = smul.addr %s160, 4
        %s162 = scalar_lea.vmem %s2, %s161
        %s163 = smul.u32 4, %s9
      $region28: #{block_forward.6} parent=15 // pred_fallthru
        _
    $region16: #{block_forward.6} parent=5 // pred_fallthru
      _
    %p164 = scmp.le.s32.totalorder 1, %s9
    %p165 = scmp.lt.s32.totalorder %s9, 3
    %p166 = pnand %p164, %p165
    %p167 = pneg %p166
    // Predicated region
    $region29: #{block_forward.6} parent=5 // pred_check
      _
    $region30: #{block_forward.6} parent=5 // pred_check_branch
      %169 = sbr.rel (%p166) target = $region32
    $region31: #{block_forward.6} parent=5 // pred_region
      %s170 = ssub.s32 %s9, 1
      %s171 = smul.u32 4, %s14
      %p172 = scmp.lt.s32.totalorder %s171, 7
      %s173 = scalar_select %p172, %s171, 7
      %s174 = smul.addr %s173, 8
      %s175 = smul.addr %s174, 4
      %s176 = scalar_lea.vmem %s0, %s175
      %p177 = pneg %p35
      %p178 = pneg %p32
      %s179 = smul.u32 4, %s14
      %p180 = scmp.lt.s32.totalorder %s179, 7
      %s181 = scalar_select %p180, %s179, 7
      %s182 = smul.addr %s181, 8
      %s183 = sadd.s32 %s182, 64
      %s184 = smul.addr %s183, 4
      %s185 = scalar_lea.vmem %s1, %s184
      %p186 = pneg %p61
      %p187 = pneg %p58
      %s188 = smul.u32 4, %s14
      %p189 = scmp.lt.s32.totalorder %s188, 7
      %s190 = scalar_select %p189, %s188, 7
      %s191 = smul.addr %s190, 8
      %s192 = sadd.s32 %s191, 128
      %s193 = smul.addr %s192, 4
      %s194 = scalar_lea.vmem %s2, %s193
      %p195 = pneg %p87
      %p196 = pneg %p84
      %p197 = pneg %p113
      %p198 = pneg %p110
      %s199 = smul.u32 4, %s14
      %p200 = scmp.lt.s32.totalorder %s199, 7
      %s201 = scalar_select %p200, %s199, 7
      %s202 = smul.addr %s201, 8
      %s203 = smul.addr %s202, 4
      %s204 = scalar_lea.vmem %s3, %s203
      %s205 = smul.u32 4, %s14
      %p206 = scmp.lt.s32.totalorder %s205, 7
      %s207 = scalar_select %p206, %s205, 7
      %s208 = smul.addr %s207, 8
      %s209 = smul.addr %s208, 4
      %s210 = scalar_lea.vmem %s0, %s209
      %s211 = smul.u32 4, %s14
      %s212 = smul.u32 4, %s14
      %p213 = scmp.lt.s32.totalorder %s212, 7
      %s214 = scalar_select %p213, %s212, 7
      %s215 = smul.addr %s214, 8
      %s216 = sadd.s32 %s215, 64
      %s217 = smul.addr %s216, 4
      %s218 = scalar_lea.vmem %s1, %s217
      %s219 = smul.u32 4, %s14
      %s220 = smul.u32 4, %s14
      %p221 = scmp.lt.s32.totalorder %s220, 7
      %s222 = scalar_select %p221, %s220, 7
      %s223 = smul.addr %s222, 8
      %s224 = sadd.s32 %s223, 128
      %s225 = smul.addr %s224, 4
      %s226 = scalar_lea.vmem %s2, %s225
      %s227 = smul.u32 4, %s14
      %s228 = smul.u32 4, %s14
      %p229 = scmp.lt.s32.totalorder %s228, 7
      %s230 = scalar_select %p229, %s228, 7
      %s231 = smul.addr %s230, 8
      %s232 = smul.addr %s231, 4
      %s233 = scalar_lea.vmem %s3, %s232
      %s234 = smul.u32 4, %s14
      %v236 = vld [vmem:[%s210] sm:$0xf]
      %v237 = vld [vmem:[%s210 + $0x4] sm:$0xf]
      %v238 = vld [vmem:[%s210 + $0x8] sm:$0xf]
      %v239 = vld [vmem:[%s210 + $0xc] sm:$0xf]
      %v240 = vld [vmem:[%s210 + $0x10] sm:$0xf]
      %v241 = vld [vmem:[%s210 + $0x14] sm:$0xf]
      %v242 = vld [vmem:[%s210 + $0x18] sm:$0xf]
      %v243 = vld [vmem:[%s210 + $0x1c] sm:$0xf]
      %v244 = vld [vmem:[%s210 + $0x20] sm:$0xf]
      %v245 = vld [vmem:[%s210 + $0x24] sm:$0xf]
      %v246 = vld [vmem:[%s210 + $0x28] sm:$0xf]
      %v247 = vld [vmem:[%s210 + $0x2c] sm:$0xf]
      %v248 = vld [vmem:[%s210 + $0x30] sm:$0xf]
      %v249 = vld [vmem:[%s210 + $0x34] sm:$0xf]
      %v250 = vld [vmem:[%s210 + $0x38] sm:$0xf]
      %v251 = vld [vmem:[%s210 + $0x3c] sm:$0xf]
      %v252 = vld [vmem:[%s210 + $0x40] sm:$0xf]
      %v253 = vld [vmem:[%s210 + $0x44] sm:$0xf]
      %v254 = vld [vmem:[%s210 + $0x48] sm:$0xf]
      %v255 = vld [vmem:[%s210 + $0x4c] sm:$0xf]
      %v256 = vld [vmem:[%s210 + $0x50] sm:$0xf]
      %v257 = vld [vmem:[%s210 + $0x54] sm:$0xf]
      %v258 = vld [vmem:[%s210 + $0x58] sm:$0xf]
      %v259 = vld [vmem:[%s210 + $0x5c] sm:$0xf]
      %v260 = vld [vmem:[%s210 + $0x60] sm:$0xf]
      %v261 = vld [vmem:[%s210 + $0x64] sm:$0xf]
      %v262 = vld [vmem:[%s210 + $0x68] sm:$0xf]
      %v263 = vld [vmem:[%s210 + $0x6c] sm:$0xf]
      %v264 = vld [vmem:[%s210 + $0x70] sm:$0xf]
      %v265 = vld [vmem:[%s210 + $0x74] sm:$0xf]
      %v266 = vld [vmem:[%s210 + $0x78] sm:$0xf]
      %v267 = vld [vmem:[%s210 + $0x7c] sm:$0xf]
      %v268 = vld [vmem:[%s218] sm:$0xf]
      %v269 = vld [vmem:[%s218 + $0x4] sm:$0xf]
      %v270 = vld [vmem:[%s218 + $0x8] sm:$0xf]
      %v271 = vld [vmem:[%s218 + $0xc] sm:$0xf]
      %v272 = vld [vmem:[%s218 + $0x10] sm:$0xf]
      %v273 = vld [vmem:[%s218 + $0x14] sm:$0xf]
      %v274 = vld [vmem:[%s218 + $0x18] sm:$0xf]
      %v275 = vld [vmem:[%s218 + $0x1c] sm:$0xf]
      %v276 = vld [vmem:[%s218 + $0x20] sm:$0xf]
      %v277 = vld [vmem:[%s218 + $0x24] sm:$0xf]
      %v278 = vld [vmem:[%s218 + $0x28] sm:$0xf]
      %v279 = vld [vmem:[%s218 + $0x2c] sm:$0xf]
      %v280 = vld [vmem:[%s218 + $0x30] sm:$0xf]
      %v281 = vld [vmem:[%s218 + $0x34] sm:$0xf]
      %v282 = vld [vmem:[%s218 + $0x38] sm:$0xf]
      %v283 = vld [vmem:[%s218 + $0x3c] sm:$0xf]
      %v284 = vld [vmem:[%s218 + $0x40] sm:$0xf]
      %v285 = vld [vmem:[%s218 + $0x44] sm:$0xf]
      %v286 = vld [vmem:[%s218 + $0x48] sm:$0xf]
      %v287 = vld [vmem:[%s218 + $0x4c] sm:$0xf]
      %v288 = vld [vmem:[%s218 + $0x50] sm:$0xf]
      %v289 = vld [vmem:[%s218 + $0x54] sm:$0xf]
      %v290 = vld [vmem:[%s218 + $0x58] sm:$0xf]
      %v291 = vld [vmem:[%s218 + $0x5c] sm:$0xf]
      %v292 = vld [vmem:[%s218 + $0x60] sm:$0xf]
      %v293 = vld [vmem:[%s218 + $0x64] sm:$0xf]
      %v294 = vld [vmem:[%s218 + $0x68] sm:$0xf]
      %v295 = vld [vmem:[%s218 + $0x6c] sm:$0xf]
      %v296 = vld [vmem:[%s218 + $0x70] sm:$0xf]
      %v297 = vld [vmem:[%s218 + $0x74] sm:$0xf]
      %v298 = vld [vmem:[%s218 + $0x78] sm:$0xf]
      %v299 = vld [vmem:[%s218 + $0x7c] sm:$0xf]
      %v300 = vld [vmem:[%s226] sm:$0xf]
      %v301 = vld [vmem:[%s226 + $0x4] sm:$0xf]
      %v302 = vld [vmem:[%s226 + $0x8] sm:$0xf]
      %v303 = vld [vmem:[%s226 + $0xc] sm:$0xf]
      %v304 = vld [vmem:[%s226 + $0x10] sm:$0xf]
      %v305 = vld [vmem:[%s226 + $0x14] sm:$0xf]
      %v306 = vld [vmem:[%s226 + $0x18] sm:$0xf]
      %v307 = vld [vmem:[%s226 + $0x1c] sm:$0xf]
      %v308 = vld [vmem:[%s226 + $0x20] sm:$0xf]
      %v309 = vld [vmem:[%s226 + $0x24] sm:$0xf]
      %v310 = vld [vmem:[%s226 + $0x28] sm:$0xf]
      %v311 = vld [vmem:[%s226 + $0x2c] sm:$0xf]
      %v312 = vld [vmem:[%s226 + $0x30] sm:$0xf]
      %v313 = vld [vmem:[%s226 + $0x34] sm:$0xf]
      %v314 = vld [vmem:[%s226 + $0x38] sm:$0xf]
      %v315 = vld [vmem:[%s226 + $0x3c] sm:$0xf]
      %v316 = vld [vmem:[%s226 + $0x40] sm:$0xf]
      %v317 = vld [vmem:[%s226 + $0x44] sm:$0xf]
      %v318 = vld [vmem:[%s226 + $0x48] sm:$0xf]
      %v319 = vld [vmem:[%s226 + $0x4c] sm:$0xf]
      %v320 = vld [vmem:[%s226 + $0x50] sm:$0xf]
      %v321 = vld [vmem:[%s226 + $0x54] sm:$0xf]
      %v322 = vld [vmem:[%s226 + $0x58] sm:$0xf]
      %v323 = vld [vmem:[%s226 + $0x5c] sm:$0xf]
      %v324 = vld [vmem:[%s226 + $0x60] sm:$0xf]
      %v325 = vld [vmem:[%s226 + $0x64] sm:$0xf]
      %v326 = vld [vmem:[%s226 + $0x68] sm:$0xf]
      %v327 = vld [vmem:[%s226 + $0x6c] sm:$0xf]
      %v328 = vld [vmem:[%s226 + $0x70] sm:$0xf]
      %v329 = vld [vmem:[%s226 + $0x74] sm:$0xf]
      %v330 = vld [vmem:[%s226 + $0x78] sm:$0xf]
      %v331 = vld [vmem:[%s226 + $0x7c] sm:$0xf]
      %v340 = vunpack.c.l.b16 %v236
      %v341 = vunpack.c.l.b16 %v237
      %v342 = vunpack.c.l.b16 %v238
      %v343 = vunpack.c.l.b16 %v239
      %v344 = vunpack.c.l.b16 %v240
      %v345 = vunpack.c.l.b16 %v241
      %v346 = vunpack.c.l.b16 %v242
      %v347 = vunpack.c.l.b16 %v243
      %v348 = vpack.c.b16 %v341, %v340
      %v349 = vpack.c.b16 %v343, %v342
      %v350 = vpack.c.b16 %v345, %v344
      %v351 = vpack.c.b16 %v347, %v346
      %v360 = vunpack.c.l.b16 %v268
      %v361 = vunpack.c.l.b16 %v269
      %v362 = vunpack.c.l.b16 %v270
      %v363 = vunpack.c.l.b16 %v271
      %v364 = vunpack.c.l.b16 %v272
      %v365 = vunpack.c.l.b16 %v273
      %v366 = vunpack.c.l.b16 %v274
      %v367 = vunpack.c.l.b16 %v275
      %v368 = vpack.c.b16 %v361, %v360
      %v369 = vpack.c.b16 %v363, %v362
      %v370 = vpack.c.b16 %v365, %v364
      %v371 = vpack.c.b16 %v367, %v366
      %vm372 = vcmask 261120
      %v374 = vsel %vm372, %v348, 0
      %v377 = vsel %vm372, %v349, 0
      %v380 = vsel %vm372, %v350, 0
      %v383 = vsel %vm372, %v351, 0
      %v386 = vsel %vm372, %v368, 0
      %v389 = vsel %vm372, %v369, 0
      %v392 = vsel %vm372, %v370, 0
      %v395 = vsel %vm372, %v371, 0
      %397 = vmatprep.subr.bf16.mxu0 0
      %398 = vmatpush1.bf16.xpose.msra.mxu0 0
      %399 = vmatprep.subr.bf16.mxu0 0
      %400 = vmatpush1.bf16.xpose.msra.mxu0 0
      %401 = vmatprep.subr.bf16.mxu0 0
      %402 = vmatpush1.bf16.xpose.msra.mxu0 0
      %403 = vmatprep.subr.bf16.mxu0 0
      %404 = vmatpush1.bf16.xpose.msra.mxu0 0
      %405 = vmatprep.subr.bf16.mxu0 0
      %406 = vmatpush1.bf16.xpose.msra.mxu0 %v395
      %407 = vmatprep.subr.bf16.mxu0 0
      %408 = vmatpush1.bf16.xpose.msra.mxu0 %v392
      %409 = vmatprep.subr.bf16.mxu0 0
      %410 = vmatpush1.bf16.xpose.msra.mxu0 %v389
      %411 = vmatprep.subr.bf16.mxu0 0
      %412 = vmatpush1.bf16.xpose.msra.mxu0 %v386
      %413 = vmatprep.subr.bf16.mxu0 0
      %414 = vmatpush2.bf16.xpose.msra.mxu0 0
      %415 = vmatprep.subr.bf16.mxu0 0
      %416 = vmatpush2.bf16.xpose.msra.mxu0 0
      %417 = vmatprep.subr.bf16.mxu0 0
      %418 = vmatpush2.bf16.xpose.msra.mxu0 0
      %419 = vmatprep.subr.bf16.mxu0 0
      %420 = vmatpush2.bf16.xpose.msra.mxu0 0
      %421 = vmatprep.subr.bf16.mxu0 0
      %422 = vmatpush2.bf16.xpose.msra.mxu0 0
      %423 = vmatprep.subr.bf16.mxu0 0
      %424 = vmatpush2.bf16.xpose.msra.mxu0 0
      %425 = vmatprep.subr.bf16.mxu0 0
      %426 = vmatpush2.bf16.xpose.msra.mxu0 0
      %427 = vmatprep.subr.bf16.mxu0 0
      %428 = vmatpush2.bf16.xpose.msra.mxu0 0
      %429 = vmatprep.mubr.bf16.mxu0 0
      %430 = vmatmul.mubr.bf16.gmra.mxu0 %v374
      %v431 = vpop.f32.mrf.mxu0
      %v432 = vadd.f32 0.0, %v431
      %v433 = vpop.f32.mrf.mxu0
      %v434 = vpop.f32.mrf.mxu0
      %v435 = vadd.f32 0.0, %v434
      %v436 = vpop.f32.mrf.mxu0
      %437 = vmatprep.mubr.bf16.mxu0 0
      %438 = vmatmul.mubr.bf16.gmra.mxu0 %v377
      %v439 = vpop.f32.mrf.mxu0
      %v440 = vadd.f32 0.0, %v439
      %v441 = vpop.f32.mrf.mxu0
      %v442 = vpop.f32.mrf.mxu0
      %v443 = vadd.f32 0.0, %v442
      %v444 = vpop.f32.mrf.mxu0
      %445 = vmatprep.mubr.bf16.mxu0 0
      %446 = vmatmul.mubr.bf16.gmra.mxu0 %v380
      %v447 = vpop.f32.mrf.mxu0
      %v448 = vadd.f32 0.0, %v447
      %v449 = vpop.f32.mrf.mxu0
      %v450 = vpop.f32.mrf.mxu0
      %v451 = vadd.f32 0.0, %v450
      %v452 = vpop.f32.mrf.mxu0
      %453 = vmatprep.mubr.bf16.mxu0 0
      %454 = vmatmul.mubr.bf16.gmra.mxu0 %v383
      %v455 = vpop.f32.mrf.mxu0
      %v456 = vadd.f32 0.0, %v455
      %v457 = vpop.f32.mrf.mxu0
      %v458 = vpop.f32.mrf.mxu0
      %v459 = vadd.f32 0.0, %v458
      %v460 = vpop.f32.mrf.mxu0
      %461 = vdwg.mxu0
      %v470 = vunpack.c.l.b16 %v244
      %v471 = vunpack.c.l.b16 %v245
      %v472 = vunpack.c.l.b16 %v246
      %v473 = vunpack.c.l.b16 %v247
      %v474 = vunpack.c.l.b16 %v248
      %v475 = vunpack.c.l.b16 %v249
      %v476 = vunpack.c.l.b16 %v250
      %v477 = vunpack.c.l.b16 %v251
      %v478 = vpack.c.b16 %v471, %v470
      %v479 = vpack.c.b16 %v473, %v472
      %v480 = vpack.c.b16 %v475, %v474
      %v481 = vpack.c.b16 %v477, %v476
      %v490 = vunpack.c.l.b16 %v276
      %v491 = vunpack.c.l.b16 %v277
      %v492 = vunpack.c.l.b16 %v278
      %v493 = vunpack.c.l.b16 %v279
      %v494 = vunpack.c.l.b16 %v280
      %v495 = vunpack.c.l.b16 %v281
      %v496 = vunpack.c.l.b16 %v282
      %v497 = vunpack.c.l.b16 %v283
      %v498 = vpack.c.b16 %v491, %v490
      %v499 = vpack.c.b16 %v493, %v492
      %v500 = vpack.c.b16 %v495, %v494
      %v501 = vpack.c.b16 %v497, %v496
      %v503 = vsel %vm372, %v478, 0
      %v506 = vsel %vm372, %v479, 0
      %v509 = vsel %vm372, %v480, 0
      %v512 = vsel %vm372, %v481, 0
      %v515 = vsel %vm372, %v498, 0
      %v518 = vsel %vm372, %v499, 0
      %v521 = vsel %vm372, %v500, 0
      %v524 = vsel %vm372, %v501, 0
      %526 = vmatprep.subr.bf16.mxu0 0
      %527 = vmatpush1.bf16.xpose.msra.mxu0 0
      %528 = vmatprep.subr.bf16.mxu0 0
      %529 = vmatpush1.bf16.xpose.msra.mxu0 0
      %530 = vmatprep.subr.bf16.mxu0 0
      %531 = vmatpush1.bf16.xpose.msra.mxu0 0
      %532 = vmatprep.subr.bf16.mxu0 0
      %533 = vmatpush1.bf16.xpose.msra.mxu0 0
      %534 = vmatprep.subr.bf16.mxu0 0
      %535 = vmatpush1.bf16.xpose.msra.mxu0 %v524
      %536 = vmatprep.subr.bf16.mxu0 0
      %537 = vmatpush1.bf16.xpose.msra.mxu0 %v521
      %538 = vmatprep.subr.bf16.mxu0 0
      %539 = vmatpush1.bf16.xpose.msra.mxu0 %v518
      %540 = vmatprep.subr.bf16.mxu0 0
      %541 = vmatpush1.bf16.xpose.msra.mxu0 %v515
      %542 = vmatprep.subr.bf16.mxu0 0
      %543 = vmatpush2.bf16.xpose.msra.mxu0 0
      %544 = vmatprep.subr.bf16.mxu0 0
      %545 = vmatpush2.bf16.xpose.msra.mxu0 0
      %546 = vmatprep.subr.bf16.mxu0 0
      %547 = vmatpush2.bf16.xpose.msra.mxu0 0
      %548 = vmatprep.subr.bf16.mxu0 0
      %549 = vmatpush2.bf16.xpose.msra.mxu0 0
      %550 = vmatprep.subr.bf16.mxu0 0
      %551 = vmatpush2.bf16.xpose.msra.mxu0 0
      %552 = vmatprep.subr.bf16.mxu0 0
      %553 = vmatpush2.bf16.xpose.msra.mxu0 0
      %554 = vmatprep.subr.bf16.mxu0 0
      %555 = vmatpush2.bf16.xpose.msra.mxu0 0
      %556 = vmatprep.subr.bf16.mxu0 0
      %557 = vmatpush2.bf16.xpose.msra.mxu0 0
      %558 = vmatprep.mubr.bf16.mxu0 0
      %559 = vmatmul.mubr.bf16.gmra.mxu0 %v503
      %v560 = vpop.f32.mrf.mxu0
      %v561 = vadd.f32 0.0, %v560
      %v562 = vpop.f32.mrf.mxu0
      %v563 = vpop.f32.mrf.mxu0
      %v564 = vadd.f32 0.0, %v563
      %v565 = vpop.f32.mrf.mxu0
      %566 = vmatprep.mubr.bf16.mxu0 0
      %567 = vmatmul.mubr.bf16.gmra.mxu0 %v506
      %v568 = vpop.f32.mrf.mxu0
      %v569 = vadd.f32 0.0, %v568
      %v570 = vpop.f32.mrf.mxu0
      %v571 = vpop.f32.mrf.mxu0
      %v572 = vadd.f32 0.0, %v571
      %v573 = vpop.f32.mrf.mxu0
      %574 = vmatprep.mubr.bf16.mxu0 0
      %575 = vmatmul.mubr.bf16.gmra.mxu0 %v509
      %v576 = vpop.f32.mrf.mxu0
      %v577 = vadd.f32 0.0, %v576
      %v578 = vpop.f32.mrf.mxu0
      %v579 = vpop.f32.mrf.mxu0
      %v580 = vadd.f32 0.0, %v579
      %v581 = vpop.f32.mrf.mxu0
      %582 = vmatprep.mubr.bf16.mxu0 0
      %583 = vmatmul.mubr.bf16.gmra.mxu0 %v512
      %v584 = vpop.f32.mrf.mxu0
      %v585 = vadd.f32 0.0, %v584
      %v586 = vpop.f32.mrf.mxu0
      %v587 = vpop.f32.mrf.mxu0
      %v588 = vadd.f32 0.0, %v587
      %v589 = vpop.f32.mrf.mxu0
      %590 = vdwg.mxu0
      %v599 = vunpack.c.l.b16 %v252
      %v600 = vunpack.c.l.b16 %v253
      %v601 = vunpack.c.l.b16 %v254
      %v602 = vunpack.c.l.b16 %v255
      %v603 = vunpack.c.l.b16 %v256
      %v604 = vunpack.c.l.b16 %v257
      %v605 = vunpack.c.l.b16 %v258
      %v606 = vunpack.c.l.b16 %v259
      %v607 = vpack.c.b16 %v600, %v599
      %v608 = vpack.c.b16 %v602, %v601
      %v609 = vpack.c.b16 %v604, %v603
      %v610 = vpack.c.b16 %v606, %v605
      %v619 = vunpack.c.l.b16 %v284
      %v620 = vunpack.c.l.b16 %v285
      %v621 = vunpack.c.l.b16 %v286
      %v622 = vunpack.c.l.b16 %v287
      %v623 = vunpack.c.l.b16 %v288
      %v624 = vunpack.c.l.b16 %v289
      %v625 = vunpack.c.l.b16 %v290
      %v626 = vunpack.c.l.b16 %v291
      %v627 = vpack.c.b16 %v620, %v619
      %v628 = vpack.c.b16 %v622, %v621
      %v629 = vpack.c.b16 %v624, %v623
      %v630 = vpack.c.b16 %v626, %v625
      %v632 = vsel %vm372, %v607, 0
      %v635 = vsel %vm372, %v608, 0
      %v638 = vsel %vm372, %v609, 0
      %v641 = vsel %vm372, %v610, 0
      %v644 = vsel %vm372, %v627, 0
      %v647 = vsel %vm372, %v628, 0
      %v650 = vsel %vm372, %v629, 0
      %v653 = vsel %vm372, %v630, 0
      %655 = vmatprep.subr.bf16.mxu0 0
      %656 = vmatpush1.bf16.xpose.msra.mxu0 0
      %657 = vmatprep.subr.bf16.mxu0 0
      %658 = vmatpush1.bf16.xpose.msra.mxu0 0
      %659 = vmatprep.subr.bf16.mxu0 0
      %660 = vmatpush1.bf16.xpose.msra.mxu0 0
      %661 = vmatprep.subr.bf16.mxu0 0
      %662 = vmatpush1.bf16.xpose.msra.mxu0 0
      %663 = vmatprep.subr.bf16.mxu0 0
      %664 = vmatpush1.bf16.xpose.msra.mxu0 %v653
      %665 = vmatprep.subr.bf16.mxu0 0
      %666 = vmatpush1.bf16.xpose.msra.mxu0 %v650
      %667 = vmatprep.subr.bf16.mxu0 0
      %668 = vmatpush1.bf16.xpose.msra.mxu0 %v647
      %669 = vmatprep.subr.bf16.mxu0 0
      %670 = vmatpush1.bf16.xpose.msra.mxu0 %v644
      %671 = vmatprep.subr.bf16.mxu0 0
      %672 = vmatpush2.bf16.xpose.msra.mxu0 0
      %673 = vmatprep.subr.bf16.mxu0 0
      %674 = vmatpush2.bf16.xpose.msra.mxu0 0
      %675 = vmatprep.subr.bf16.mxu0 0
      %676 = vmatpush2.bf16.xpose.msra.mxu0 0
      %677 = vmatprep.subr.bf16.mxu0 0
      %678 = vmatpush2.bf16.xpose.msra.mxu0 0
      %679 = vmatprep.subr.bf16.mxu0 0
      %680 = vmatpush2.bf16.xpose.msra.mxu0 0
      %681 = vmatprep.subr.bf16.mxu0 0
      %682 = vmatpush2.bf16.xpose.msra.mxu0 0
      %683 = vmatprep.subr.bf16.mxu0 0
      %684 = vmatpush2.bf16.xpose.msra.mxu0 0
      %685 = vmatprep.subr.bf16.mxu0 0
      %686 = vmatpush2.bf16.xpose.msra.mxu0 0
      %687 = vmatprep.mubr.bf16.mxu0 0
      %688 = vmatmul.mubr.bf16.gmra.mxu0 %v632
      %v689 = vpop.f32.mrf.mxu0
      %v690 = vadd.f32 0.0, %v689
      %v691 = vpop.f32.mrf.mxu0
      %v692 = vpop.f32.mrf.mxu0
      %v693 = vadd.f32 0.0, %v692
      %v694 = vpop.f32.mrf.mxu0
      %695 = vmatprep.mubr.bf16.mxu0 0
      %696 = vmatmul.mubr.bf16.gmra.mxu0 %v635
      %v697 = vpop.f32.mrf.mxu0
      %v698 = vadd.f32 0.0, %v697
      %v699 = vpop.f32.mrf.mxu0
      %v700 = vpop.f32.mrf.mxu0
      %v701 = vadd.f32 0.0, %v700
      %v702 = vpop.f32.mrf.mxu0
      %703 = vmatprep.mubr.bf16.mxu0 0
      %704 = vmatmul.mubr.bf16.gmra.mxu0 %v638
      %v705 = vpop.f32.mrf.mxu0
      %v706 = vadd.f32 0.0, %v705
      %v707 = vpop.f32.mrf.mxu0
      %v708 = vpop.f32.mrf.mxu0
      %v709 = vadd.f32 0.0, %v708
      %v710 = vpop.f32.mrf.mxu0
      %711 = vmatprep.mubr.bf16.mxu0 0
      %712 = vmatmul.mubr.bf16.gmra.mxu0 %v641
      %v713 = vpop.f32.mrf.mxu0
      %v714 = vadd.f32 0.0, %v713
      %v715 = vpop.f32.mrf.mxu0
      %v716 = vpop.f32.mrf.mxu0
      %v717 = vadd.f32 0.0, %v716
      %v718 = vpop.f32.mrf.mxu0
      %719 = vdwg.mxu0
      %v728 = vunpack.c.l.b16 %v260
      %v729 = vunpack.c.l.b16 %v261
      %v730 = vunpack.c.l.b16 %v262
      %v731 = vunpack.c.l.b16 %v263
      %v732 = vunpack.c.l.b16 %v264
      %v733 = vunpack.c.l.b16 %v265
      %v734 = vunpack.c.l.b16 %v266
      %v735 = vunpack.c.l.b16 %v267
      %v736 = vpack.c.b16 %v729, %v728
      %v737 = vpack.c.b16 %v731, %v730
      %v738 = vpack.c.b16 %v733, %v732
      %v739 = vpack.c.b16 %v735, %v734
      %v748 = vunpack.c.l.b16 %v292
      %v749 = vunpack.c.l.b16 %v293
      %v750 = vunpack.c.l.b16 %v294
      %v751 = vunpack.c.l.b16 %v295
      %v752 = vunpack.c.l.b16 %v296
      %v753 = vunpack.c.l.b16 %v297
      %v754 = vunpack.c.l.b16 %v298
      %v755 = vunpack.c.l.b16 %v299
      %v756 = vpack.c.b16 %v749, %v748
      %v757 = vpack.c.b16 %v751, %v750
      %v758 = vpack.c.b16 %v753, %v752
      %v759 = vpack.c.b16 %v755, %v754
      %v761 = vsel %vm372, %v736, 0
      %v764 = vsel %vm372, %v737, 0
      %v767 = vsel %vm372, %v738, 0
      %v770 = vsel %vm372, %v739, 0
      %v773 = vsel %vm372, %v756, 0
      %v776 = vsel %vm372, %v757, 0
      %v779 = vsel %vm372, %v758, 0
      %v782 = vsel %vm372, %v759, 0
      %784 = vmatprep.subr.bf16.mxu0 0
      %785 = vmatpush1.bf16.xpose.msra.mxu0 0
      %786 = vmatprep.subr.bf16.mxu0 0
      %787 = vmatpush1.bf16.xpose.msra.mxu0 0
      %788 = vmatprep.subr.bf16.mxu0 0
      %789 = vmatpush1.bf16.xpose.msra.mxu0 0
      %790 = vmatprep.subr.bf16.mxu0 0
      %791 = vmatpush1.bf16.xpose.msra.mxu0 0
      %792 = vmatprep.subr.bf16.mxu0 0
      %793 = vmatpush1.bf16.xpose.msra.mxu0 %v782
      %794 = vmatprep.subr.bf16.mxu0 0
      %795 = vmatpush1.bf16.xpose.msra.mxu0 %v779
      %796 = vmatprep.subr.bf16.mxu0 0
      %797 = vmatpush1.bf16.xpose.msra.mxu0 %v776
      %798 = vmatprep.subr.bf16.mxu0 0
      %799 = vmatpush1.bf16.xpose.msra.mxu0 %v773
      %800 = vmatprep.subr.bf16.mxu0 0
      %801 = vmatpush2.bf16.xpose.msra.mxu0 0
      %802 = vmatprep.subr.bf16.mxu0 0
      %803 = vmatpush2.bf16.xpose.msra.mxu0 0
      %804 = vmatprep.subr.bf16.mxu0 0
      %805 = vmatpush2.bf16.xpose.msra.mxu0 0
      %806 = vmatprep.subr.bf16.mxu0 0
      %807 = vmatpush2.bf16.xpose.msra.mxu0 0
      %808 = vmatprep.subr.bf16.mxu0 0
      %809 = vmatpush2.bf16.xpose.msra.mxu0 0
      %810 = vmatprep.subr.bf16.mxu0 0
      %811 = vmatpush2.bf16.xpose.msra.mxu0 0
      %812 = vmatprep.subr.bf16.mxu0 0
      %813 = vmatpush2.bf16.xpose.msra.mxu0 0
      %814 = vmatprep.subr.bf16.mxu0 0
      %815 = vmatpush2.bf16.xpose.msra.mxu0 0
      %816 = vmatprep.mubr.bf16.mxu0 0
      %817 = vmatmul.mubr.bf16.gmra.mxu0 %v761
      %v818 = vpop.f32.mrf.mxu0
      %v819 = vadd.f32 0.0, %v818
      %v820 = vpop.f32.mrf.mxu0
      %v821 = vpop.f32.mrf.mxu0
      %v822 = vadd.f32 0.0, %v821
      %v823 = vpop.f32.mrf.mxu0
      %824 = vmatprep.mubr.bf16.mxu0 0
      %825 = vmatmul.mubr.bf16.gmra.mxu0 %v764
      %v826 = vpop.f32.mrf.mxu0
      %v827 = vadd.f32 0.0, %v826
      %v828 = vpop.f32.mrf.mxu0
      %v829 = vpop.f32.mrf.mxu0
      %v830 = vadd.f32 0.0, %v829
      %v831 = vpop.f32.mrf.mxu0
      %832 = vmatprep.mubr.bf16.mxu0 0
      %833 = vmatmul.mubr.bf16.gmra.mxu0 %v767
      %v834 = vpop.f32.mrf.mxu0
      %v835 = vadd.f32 0.0, %v834
      %v836 = vpop.f32.mrf.mxu0
      %v837 = vpop.f32.mrf.mxu0
      %v838 = vadd.f32 0.0, %v837
      %v839 = vpop.f32.mrf.mxu0
      %840 = vmatprep.mubr.bf16.mxu0 0
      %841 = vmatmul.mubr.bf16.gmra.mxu0 %v770
      %v842 = vpop.f32.mrf.mxu0
      %v843 = vadd.f32 0.0, %v842
      %v844 = vpop.f32.mrf.mxu0
      %v845 = vpop.f32.mrf.mxu0
      %v846 = vadd.f32 0.0, %v845
      %v847 = vpop.f32.mrf.mxu0
      %848 = vdwg.mxu0
      %v849 = vmul.f32 %v432, 0.17677669
      %v850 = vmul.f32 %v435, 0.17677669
      %v851 = vmul.f32 %v440, 0.17677669
      %v852 = vmul.f32 %v443, 0.17677669
      %v853 = vmul.f32 %v448, 0.17677669
      %v854 = vmul.f32 %v451, 0.17677669
      %v855 = vmul.f32 %v456, 0.17677669
      %v856 = vmul.f32 %v459, 0.17677669
      %v857 = vmul.f32 %v561, 0.17677669
      %v858 = vmul.f32 %v564, 0.17677669
      %v859 = vmul.f32 %v569, 0.17677669
      %v860 = vmul.f32 %v572, 0.17677669
      %v861 = vmul.f32 %v577, 0.17677669
      %v862 = vmul.f32 %v580, 0.17677669
      %v863 = vmul.f32 %v585, 0.17677669
      %v864 = vmul.f32 %v588, 0.17677669
      %v865 = vmul.f32 %v690, 0.17677669
      %v866 = vmul.f32 %v693, 0.17677669
      %v867 = vmul.f32 %v698, 0.17677669
      %v868 = vmul.f32 %v701, 0.17677669
      %v869 = vmul.f32 %v706, 0.17677669
      %v870 = vmul.f32 %v709, 0.17677669
      %v871 = vmul.f32 %v714, 0.17677669
      %v872 = vmul.f32 %v717, 0.17677669
      %v873 = vmul.f32 %v819, 0.17677669
      %v874 = vmul.f32 %v822, 0.17677669
      %v875 = vmul.f32 %v827, 0.17677669
      %v876 = vmul.f32 %v830, 0.17677669
      %v877 = vmul.f32 %v835, 0.17677669
      %v878 = vmul.f32 %v838, 0.17677669
      %v879 = vmul.f32 %v843, 0.17677669
      %v880 = vmul.f32 %v846, 0.17677669
      %vm881 = vcmask 523264
      %v882 = vsel %vm881, %v849, -inf
      %883 = vmax.xlane.f32.xlu0 %v882
      %v884 = vpop.xlane.xlu0 %883
      %v885 = vsel %vm881, %v850, -inf
      %886 = vmax.xlane.f32.xlu0 %v885
      %v887 = vpop.xlane.xlu0 %886
      %v888 = vsel %vm881, %v851, -inf
      %889 = vmax.xlane.f32.xlu0 %v888
      %v890 = vpop.xlane.xlu0 %889
      %v891 = vsel %vm881, %v852, -inf
      %892 = vmax.xlane.f32.xlu0 %v891
      %v893 = vpop.xlane.xlu0 %892
      %v894 = vsel %vm881, %v853, -inf
      %895 = vmax.xlane.f32.xlu0 %v894
      %v896 = vpop.xlane.xlu0 %895
      %v897 = vsel %vm881, %v854, -inf
      %898 = vmax.xlane.f32.xlu0 %v897
      %v899 = vpop.xlane.xlu0 %898
      %v900 = vsel %vm881, %v855, -inf
      %901 = vmax.xlane.f32.xlu0 %v900
      %v902 = vpop.xlane.xlu0 %901
      %v903 = vsel %vm881, %v856, -inf
      %904 = vmax.xlane.f32.xlu0 %v903
      %v905 = vpop.xlane.xlu0 %904
      %v906 = vsel %vm881, %v857, -inf
      %907 = vmax.xlane.f32.xlu0 %v906
      %v908 = vpop.xlane.xlu0 %907
      %v909 = vsel %vm881, %v858, -inf
      %910 = vmax.xlane.f32.xlu0 %v909
      %v911 = vpop.xlane.xlu0 %910
      %v912 = vsel %vm881, %v859, -inf
      %913 = vmax.xlane.f32.xlu0 %v912
      %v914 = vpop.xlane.xlu0 %913
      %v915 = vsel %vm881, %v860, -inf
      %916 = vmax.xlane.f32.xlu0 %v915
      %v917 = vpop.xlane.xlu0 %916
      %v918 = vsel %vm881, %v861, -inf
      %919 = vmax.xlane.f32.xlu0 %v918
      %v920 = vpop.xlane.xlu0 %919
      %v921 = vsel %vm881, %v862, -inf
      %922 = vmax.xlane.f32.xlu0 %v921
      %v923 = vpop.xlane.xlu0 %922
      %v924 = vsel %vm881, %v863, -inf
      %925 = vmax.xlane.f32.xlu0 %v924
      %v926 = vpop.xlane.xlu0 %925
      %v927 = vsel %vm881, %v864, -inf
      %928 = vmax.xlane.f32.xlu0 %v927
      %v929 = vpop.xlane.xlu0 %928
      %v930 = vsel %vm881, %v865, -inf
      %931 = vmax.xlane.f32.xlu0 %v930
      %v932 = vpop.xlane.xlu0 %931
      %v933 = vsel %vm881, %v866, -inf
      %934 = vmax.xlane.f32.xlu0 %v933
      %v935 = vpop.xlane.xlu0 %934
      %v936 = vsel %vm881, %v867, -inf
      %937 = vmax.xlane.f32.xlu0 %v936
      %v938 = vpop.xlane.xlu0 %937
      %v939 = vsel %vm881, %v868, -inf
      %940 = vmax.xlane.f32.xlu0 %v939
      %v941 = vpop.xlane.xlu0 %940
      %v942 = vsel %vm881, %v869, -inf
      %943 = vmax.xlane.f32.xlu0 %v942
      %v944 = vpop.xlane.xlu0 %943
      %v945 = vsel %vm881, %v870, -inf
      %946 = vmax.xlane.f32.xlu0 %v945
      %v947 = vpop.xlane.xlu0 %946
      %v948 = vsel %vm881, %v871, -inf
      %949 = vmax.xlane.f32.xlu0 %v948
      %v950 = vpop.xlane.xlu0 %949
      %v951 = vsel %vm881, %v872, -inf
      %952 = vmax.xlane.f32.xlu0 %v951
      %v953 = vpop.xlane.xlu0 %952
      %v954 = vsel %vm881, %v873, -inf
      %955 = vmax.xlane.f32.xlu0 %v954
      %v956 = vpop.xlane.xlu0 %955
      %v957 = vsel %vm881, %v874, -inf
      %958 = vmax.xlane.f32.xlu0 %v957
      %v959 = vpop.xlane.xlu0 %958
      %v960 = vsel %vm881, %v875, -inf
      %961 = vmax.xlane.f32.xlu0 %v960
      %v962 = vpop.xlane.xlu0 %961
      %v963 = vsel %vm881, %v876, -inf
      %964 = vmax.xlane.f32.xlu0 %v963
      %v965 = vpop.xlane.xlu0 %964
      %v966 = vsel %vm881, %v877, -inf
      %967 = vmax.xlane.f32.xlu0 %v966
      %v968 = vpop.xlane.xlu0 %967
      %v969 = vsel %vm881, %v878, -inf
      %970 = vmax.xlane.f32.xlu0 %v969
      %v971 = vpop.xlane.xlu0 %970
      %v972 = vsel %vm881, %v879, -inf
      %973 = vmax.xlane.f32.xlu0 %v972
      %v974 = vpop.xlane.xlu0 %973
      %v975 = vsel %vm881, %v880, -inf
      %976 = vmax.xlane.f32.xlu0 %v975
      %v977 = vpop.xlane.xlu0 %976
      %v978 = vsub.f32 %v849, %v884
      %v979 = vsub.f32 %v850, %v887
      %v980 = vsub.f32 %v851, %v890
      %v981 = vsub.f32 %v852, %v893
      %v982 = vsub.f32 %v853, %v896
      %v983 = vsub.f32 %v854, %v899
      %v984 = vsub.f32 %v855, %v902
      %v985 = vsub.f32 %v856, %v905
      %v986 = vsub.f32 %v857, %v908
      %v987 = vsub.f32 %v858, %v911
      %v988 = vsub.f32 %v859, %v914
      %v989 = vsub.f32 %v860, %v917
      %v990 = vsub.f32 %v861, %v920
      %v991 = vsub.f32 %v862, %v923
      %v992 = vsub.f32 %v863, %v926
      %v993 = vsub.f32 %v864, %v929
      %v994 = vsub.f32 %v865, %v932
      %v995 = vsub.f32 %v866, %v935
      %v996 = vsub.f32 %v867, %v938
      %v997 = vsub.f32 %v868, %v941
      %v998 = vsub.f32 %v869, %v944
      %v999 = vsub.f32 %v870, %v947
      %v1000 = vsub.f32 %v871, %v950
      %v1001 = vsub.f32 %v872, %v953
      %v1002 = vsub.f32 %v873, %v956
      %v1003 = vsub.f32 %v874, %v959
      %v1004 = vsub.f32 %v875, %v962
      %v1005 = vsub.f32 %v876, %v965
      %v1006 = vsub.f32 %v877, %v968
      %v1007 = vsub.f32 %v878, %v971
      %v1008 = vsub.f32 %v879, %v974
      %v1009 = vsub.f32 %v880, %v977
      %v1010 = vmul.f32 %v978, 1.442695
      %v1011 = vpow.pop %v1010
      %v1012 = vmul.f32 %v979, 1.442695
      %v1013 = vpow.pop %v1012
      %v1014 = vmul.f32 %v980, 1.442695
      %v1015 = vpow.pop %v1014
      %v1016 = vmul.f32 %v981, 1.442695
      %v1017 = vpow.pop %v1016
      %v1018 = vmul.f32 %v982, 1.442695
      %v1019 = vpow.pop %v1018
      %v1020 = vmul.f32 %v983, 1.442695
      %v1021 = vpow.pop %v1020
      %v1022 = vmul.f32 %v984, 1.442695
      %v1023 = vpow.pop %v1022
      %v1024 = vmul.f32 %v985, 1.442695
      %v1025 = vpow.pop %v1024
      %v1026 = vmul.f32 %v986, 1.442695
      %v1027 = vpow.pop %v1026
      %v1028 = vmul.f32 %v987, 1.442695
      %v1029 = vpow.pop %v1028
      %v1030 = vmul.f32 %v988, 1.442695
      %v1031 = vpow.pop %v1030
      %v1032 = vmul.f32 %v989, 1.442695
      %v1033 = vpow.pop %v1032
      %v1034 = vmul.f32 %v990, 1.442695
      %v1035 = vpow.pop %v1034
      %v1036 = vmul.f32 %v991, 1.442695
      %v1037 = vpow.pop %v1036
      %v1038 = vmul.f32 %v992, 1.442695
      %v1039 = vpow.pop %v1038
      %v1040 = vmul.f32 %v993, 1.442695
      %v1041 = vpow.pop %v1040
      %v1042 = vmul.f32 %v994, 1.442695
      %v1043 = vpow.pop %v1042
      %v1044 = vmul.f32 %v995, 1.442695
      %v1045 = vpow.pop %v1044
      %v1046 = vmul.f32 %v996, 1.442695
      %v1047 = vpow.pop %v1046
      %v1048 = vmul.f32 %v997, 1.442695
      %v1049 = vpow.pop %v1048
      %v1050 = vmul.f32 %v998, 1.442695
      %v1051 = vpow.pop %v1050
      %v1052 = vmul.f32 %v999, 1.442695
      %v1053 = vpow.pop %v1052
      %v1054 = vmul.f32 %v1000, 1.442695
      %v1055 = vpow.pop %v1054
      %v1056 = vmul.f32 %v1001, 1.442695
      %v1057 = vpow.pop %v1056
      %v1058 = vmul.f32 %v1002, 1.442695
      %v1059 = vpow.pop %v1058
      %v1060 = vmul.f32 %v1003, 1.442695
      %v1061 = vpow.pop %v1060
      %v1062 = vmul.f32 %v1004, 1.442695
      %v1063 = vpow.pop %v1062
      %v1064 = vmul.f32 %v1005, 1.442695
      %v1065 = vpow.pop %v1064
      %v1066 = vmul.f32 %v1006, 1.442695
      %v1067 = vpow.pop %v1066
      %v1068 = vmul.f32 %v1007, 1.442695
      %v1069 = vpow.pop %v1068
      %v1070 = vmul.f32 %v1008, 1.442695
      %v1071 = vpow.pop %v1070
      %v1072 = vmul.f32 %v1009, 1.442695
      %v1073 = vpow.pop %v1072
      %v1074 = vsel %vm881, %v1011, 0.0
      %1075 = vadd.xlane.f32.xlu0 %v1074
      %v1076 = vpop.xlane.xlu0 %1075
      %v1077 = vsel %vm881, %v1013, 0.0
      %1078 = vadd.xlane.f32.xlu0 %v1077
      %v1079 = vpop.xlane.xlu0 %1078
      %v1080 = vsel %vm881, %v1015, 0.0
      %1081 = vadd.xlane.f32.xlu0 %v1080
      %v1082 = vpop.xlane.xlu0 %1081
      %v1083 = vsel %vm881, %v1017, 0.0
      %1084 = vadd.xlane.f32.xlu0 %v1083
      %v1085 = vpop.xlane.xlu0 %1084
      %v1086 = vsel %vm881, %v1019, 0.0
      %1087 = vadd.xlane.f32.xlu0 %v1086
      %v1088 = vpop.xlane.xlu0 %1087
      %v1089 = vsel %vm881, %v1021, 0.0
      %1090 = vadd.xlane.f32.xlu0 %v1089
      %v1091 = vpop.xlane.xlu0 %1090
      %v1092 = vsel %vm881, %v1023, 0.0
      %1093 = vadd.xlane.f32.xlu0 %v1092
      %v1094 = vpop.xlane.xlu0 %1093
      %v1095 = vsel %vm881, %v1025, 0.0
      %1096 = vadd.xlane.f32.xlu0 %v1095
      %v1097 = vpop.xlane.xlu0 %1096
      %v1098 = vsel %vm881, %v1027, 0.0
      %1099 = vadd.xlane.f32.xlu0 %v1098
      %v1100 = vpop.xlane.xlu0 %1099
      %v1101 = vsel %vm881, %v1029, 0.0
      %1102 = vadd.xlane.f32.xlu0 %v1101
      %v1103 = vpop.xlane.xlu0 %1102
      %v1104 = vsel %vm881, %v1031, 0.0
      %1105 = vadd.xlane.f32.xlu0 %v1104
      %v1106 = vpop.xlane.xlu0 %1105
      %v1107 = vsel %vm881, %v1033, 0.0
      %1108 = vadd.xlane.f32.xlu0 %v1107
      %v1109 = vpop.xlane.xlu0 %1108
      %v1110 = vsel %vm881, %v1035, 0.0
      %1111 = vadd.xlane.f32.xlu0 %v1110
      %v1112 = vpop.xlane.xlu0 %1111
      %v1113 = vsel %vm881, %v1037, 0.0
      %1114 = vadd.xlane.f32.xlu0 %v1113
      %v1115 = vpop.xlane.xlu0 %1114
      %v1116 = vsel %vm881, %v1039, 0.0
      %1117 = vadd.xlane.f32.xlu0 %v1116
      %v1118 = vpop.xlane.xlu0 %1117
      %v1119 = vsel %vm881, %v1041, 0.0
      %1120 = vadd.xlane.f32.xlu0 %v1119
      %v1121 = vpop.xlane.xlu0 %1120
      %v1122 = vsel %vm881, %v1043, 0.0
      %1123 = vadd.xlane.f32.xlu0 %v1122
      %v1124 = vpop.xlane.xlu0 %1123
      %v1125 = vsel %vm881, %v1045, 0.0
      %1126 = vadd.xlane.f32.xlu0 %v1125
      %v1127 = vpop.xlane.xlu0 %1126
      %v1128 = vsel %vm881, %v1047, 0.0
      %1129 = vadd.xlane.f32.xlu0 %v1128
      %v1130 = vpop.xlane.xlu0 %1129
      %v1131 = vsel %vm881, %v1049, 0.0
      %1132 = vadd.xlane.f32.xlu0 %v1131
      %v1133 = vpop.xlane.xlu0 %1132
      %v1134 = vsel %vm881, %v1051, 0.0
      %1135 = vadd.xlane.f32.xlu0 %v1134
      %v1136 = vpop.xlane.xlu0 %1135
      %v1137 = vsel %vm881, %v1053, 0.0
      %1138 = vadd.xlane.f32.xlu0 %v1137
      %v1139 = vpop.xlane.xlu0 %1138
      %v1140 = vsel %vm881, %v1055, 0.0
      %1141 = vadd.xlane.f32.xlu0 %v1140
      %v1142 = vpop.xlane.xlu0 %1141
      %v1143 = vsel %vm881, %v1057, 0.0
      %1144 = vadd.xlane.f32.xlu0 %v1143
      %v1145 = vpop.xlane.xlu0 %1144
      %v1146 = vsel %vm881, %v1059, 0.0
      %1147 = vadd.xlane.f32.xlu0 %v1146
      %v1148 = vpop.xlane.xlu0 %1147
      %v1149 = vsel %vm881, %v1061, 0.0
      %1150 = vadd.xlane.f32.xlu0 %v1149
      %v1151 = vpop.xlane.xlu0 %1150
      %v1152 = vsel %vm881, %v1063, 0.0
      %1153 = vadd.xlane.f32.xlu0 %v1152
      %v1154 = vpop.xlane.xlu0 %1153
      %v1155 = vsel %vm881, %v1065, 0.0
      %1156 = vadd.xlane.f32.xlu0 %v1155
      %v1157 = vpop.xlane.xlu0 %1156
      %v1158 = vsel %vm881, %v1067, 0.0
      %1159 = vadd.xlane.f32.xlu0 %v1158
      %v1160 = vpop.xlane.xlu0 %1159
      %v1161 = vsel %vm881, %v1069, 0.0
      %1162 = vadd.xlane.f32.xlu0 %v1161
      %v1163 = vpop.xlane.xlu0 %1162
      %v1164 = vsel %vm881, %v1071, 0.0
      %1165 = vadd.xlane.f32.xlu0 %v1164
      %v1166 = vpop.xlane.xlu0 %1165
      %v1167 = vsel %vm881, %v1073, 0.0
      %1168 = vadd.xlane.f32.xlu0 %v1167
      %v1169 = vpop.xlane.xlu0 %1168
      %v1170 = vrcp.pop %v1076
      %v1171 = vrcp.pop %v1079
      %v1172 = vrcp.pop %v1082
      %v1173 = vrcp.pop %v1085
      %v1174 = vrcp.pop %v1088
      %v1175 = vrcp.pop %v1091
      %v1176 = vrcp.pop %v1094
      %v1177 = vrcp.pop %v1097
      %v1178 = vrcp.pop %v1100
      %v1179 = vrcp.pop %v1103
      %v1180 = vrcp.pop %v1106
      %v1181 = vrcp.pop %v1109
      %v1182 = vrcp.pop %v1112
      %v1183 = vrcp.pop %v1115
      %v1184 = vrcp.pop %v1118
      %v1185 = vrcp.pop %v1121
      %v1186 = vrcp.pop %v1124
      %v1187 = vrcp.pop %v1127
      %v1188 = vrcp.pop %v1130
      %v1189 = vrcp.pop %v1133
      %v1190 = vrcp.pop %v1136
      %v1191 = vrcp.pop %v1139
      %v1192 = vrcp.pop %v1142
      %v1193 = vrcp.pop %v1145
      %v1194 = vrcp.pop %v1148
      %v1195 = vrcp.pop %v1151
      %v1196 = vrcp.pop %v1154
      %v1197 = vrcp.pop %v1157
      %v1198 = vrcp.pop %v1160
      %v1199 = vrcp.pop %v1163
      %v1200 = vrcp.pop %v1166
      %v1201 = vrcp.pop %v1169
      %v1202 = vmul.f32 %v1011, %v1170
      %v1203 = vmul.f32 %v1013, %v1171
      %v1204 = vmul.f32 %v1015, %v1172
      %v1205 = vmul.f32 %v1017, %v1173
      %v1206 = vmul.f32 %v1019, %v1174
      %v1207 = vmul.f32 %v1021, %v1175
      %v1208 = vmul.f32 %v1023, %v1176
      %v1209 = vmul.f32 %v1025, %v1177
      %v1210 = vmul.f32 %v1027, %v1178
      %v1211 = vmul.f32 %v1029, %v1179
      %v1212 = vmul.f32 %v1031, %v1180
      %v1213 = vmul.f32 %v1033, %v1181
      %v1214 = vmul.f32 %v1035, %v1182
      %v1215 = vmul.f32 %v1037, %v1183
      %v1216 = vmul.f32 %v1039, %v1184
      %v1217 = vmul.f32 %v1041, %v1185
      %v1218 = vmul.f32 %v1043, %v1186
      %v1219 = vmul.f32 %v1045, %v1187
      %v1220 = vmul.f32 %v1047, %v1188
      %v1221 = vmul.f32 %v1049, %v1189
      %v1222 = vmul.f32 %v1051, %v1190
      %v1223 = vmul.f32 %v1053, %v1191
      %v1224 = vmul.f32 %v1055, %v1192
      %v1225 = vmul.f32 %v1057, %v1193
      %v1226 = vmul.f32 %v1059, %v1194
      %v1227 = vmul.f32 %v1061, %v1195
      %v1228 = vmul.f32 %v1063, %v1196
      %v1229 = vmul.f32 %v1065, %v1197
      %v1230 = vmul.f32 %v1067, %v1198
      %v1231 = vmul.f32 %v1069, %v1199
      %v1232 = vmul.f32 %v1071, %v1200
      %v1233 = vmul.f32 %v1073, %v1201
      %v1234 = vpack.c.bf16 %v1203, %v1202
      %v1235 = vpack.c.bf16 %v1205, %v1204
      %v1236 = vpack.c.bf16 %v1207, %v1206
      %v1237 = vpack.c.bf16 %v1209, %v1208
      %v1238 = vpack.c.bf16 %v1211, %v1210
      %v1239 = vpack.c.bf16 %v1213, %v1212
      %v1240 = vpack.c.bf16 %v1215, %v1214
      %v1241 = vpack.c.bf16 %v1217, %v1216
      %v1242 = vpack.c.bf16 %v1219, %v1218
      %v1243 = vpack.c.bf16 %v1221, %v1220
      %v1244 = vpack.c.bf16 %v1223, %v1222
      %v1245 = vpack.c.bf16 %v1225, %v1224
      %v1246 = vpack.c.bf16 %v1227, %v1226
      %v1247 = vpack.c.bf16 %v1229, %v1228
      %v1248 = vpack.c.bf16 %v1231, %v1230
      %v1249 = vpack.c.bf16 %v1233, %v1232
      %v1258 = vunpack.c.l.b16 %v300
      %v1259 = vunpack.c.l.b16 %v301
      %v1260 = vunpack.c.l.b16 %v302
      %v1261 = vunpack.c.l.b16 %v303
      %v1262 = vunpack.c.l.b16 %v304
      %v1263 = vunpack.c.l.b16 %v305
      %v1264 = vunpack.c.l.b16 %v306
      %v1265 = vunpack.c.l.b16 %v307
      %v1266 = vpack.c.b16 %v1259, %v1258
      %v1267 = vpack.c.b16 %v1261, %v1260
      %v1268 = vpack.c.b16 %v1263, %v1262
      %v1269 = vpack.c.b16 %v1265, %v1264
      %v1275 = vsel %vm881, %v1234, 0
      %v1278 = vsel %vm881, %v1235, 0
      %v1281 = vsel %vm881, %v1236, 0
      %v1284 = vsel %vm881, %v1237, 0
      %1286 = vmatprep.subr.bf16.mxu0 0
      %1287 = vmatpush1.bf16.msra.mxu0 0
      %1288 = vmatprep.subr.bf16.mxu0 0
      %1289 = vmatpush1.bf16.msra.mxu0 0
      %1290 = vmatprep.subr.bf16.mxu0 0
      %1291 = vmatpush1.bf16.msra.mxu0 0
      %1292 = vmatprep.subr.bf16.mxu0 0
      %1293 = vmatpush1.bf16.msra.mxu0 0
      %1294 = vmatprep.subr.bf16.mxu0 0
      %1295 = vmatpush1.bf16.msra.mxu0 %v1269
      %1296 = vmatprep.subr.bf16.mxu0 0
      %1297 = vmatpush1.bf16.msra.mxu0 %v1268
      %1298 = vmatprep.subr.bf16.mxu0 0
      %1299 = vmatpush1.bf16.msra.mxu0 %v1267
      %1300 = vmatprep.subr.bf16.mxu0 0
      %1301 = vmatpush1.bf16.msra.mxu0 %v1266
      %1302 = vmatprep.subr.bf16.mxu0 0
      %1303 = vmatpush2.bf16.msra.mxu0 0
      %1304 = vmatprep.subr.bf16.mxu0 0
      %1305 = vmatpush2.bf16.msra.mxu0 0
      %1306 = vmatprep.subr.bf16.mxu0 0
      %1307 = vmatpush2.bf16.msra.mxu0 0
      %1308 = vmatprep.subr.bf16.mxu0 0
      %1309 = vmatpush2.bf16.msra.mxu0 0
      %1310 = vmatprep.subr.bf16.mxu0 0
      %1311 = vmatpush2.bf16.msra.mxu0 0
      %1312 = vmatprep.subr.bf16.mxu0 0
      %1313 = vmatpush2.bf16.msra.mxu0 0
      %1314 = vmatprep.subr.bf16.mxu0 0
      %1315 = vmatpush2.bf16.msra.mxu0 0
      %1316 = vmatprep.subr.bf16.mxu0 0
      %1317 = vmatpush2.bf16.msra.mxu0 0
      %1318 = vmatprep.mubr.bf16.mxu0 0
      %1319 = vmatmul.mubr.bf16.gmra.mxu0 %v1275
      %v1320 = vpop.f32.mrf.mxu0
      %v1321 = vadd.f32 0.0, %v1320
      %v1322 = vpop.f32.mrf.mxu0
      %v1323 = vpop.f32.mrf.mxu0
      %v1324 = vadd.f32 0.0, %v1323
      %v1325 = vpop.f32.mrf.mxu0
      %1326 = vmatprep.mubr.bf16.mxu0 0
      %1327 = vmatmul.mubr.bf16.gmra.mxu0 %v1278
      %v1328 = vpop.f32.mrf.mxu0
      %v1329 = vadd.f32 0.0, %v1328
      %v1330 = vpop.f32.mrf.mxu0
      %v1331 = vpop.f32.mrf.mxu0
      %v1332 = vadd.f32 0.0, %v1331
      %v1333 = vpop.f32.mrf.mxu0
      %1334 = vmatprep.mubr.bf16.mxu0 0
      %1335 = vmatmul.mubr.bf16.gmra.mxu0 %v1281
      %v1336 = vpop.f32.mrf.mxu0
      %v1337 = vadd.f32 0.0, %v1336
      %v1338 = vpop.f32.mrf.mxu0
      %v1339 = vpop.f32.mrf.mxu0
      %v1340 = vadd.f32 0.0, %v1339
      %v1341 = vpop.f32.mrf.mxu0
      %1342 = vmatprep.mubr.bf16.mxu0 0
      %1343 = vmatmul.mubr.bf16.gmra.mxu0 %v1284
      %v1344 = vpop.f32.mrf.mxu0
      %v1345 = vadd.f32 0.0, %v1344
      %v1346 = vpop.f32.mrf.mxu0
      %v1347 = vpop.f32.mrf.mxu0
      %v1348 = vadd.f32 0.0, %v1347
      %v1349 = vpop.f32.mrf.mxu0
      %1350 = vdwg.mxu0
      %v1359 = vunpack.c.l.b16 %v308
      %v1360 = vunpack.c.l.b16 %v309
      %v1361 = vunpack.c.l.b16 %v310
      %v1362 = vunpack.c.l.b16 %v311
      %v1363 = vunpack.c.l.b16 %v312
      %v1364 = vunpack.c.l.b16 %v313
      %v1365 = vunpack.c.l.b16 %v314
      %v1366 = vunpack.c.l.b16 %v315
      %v1367 = vpack.c.b16 %v1360, %v1359
      %v1368 = vpack.c.b16 %v1362, %v1361
      %v1369 = vpack.c.b16 %v1364, %v1363
      %v1370 = vpack.c.b16 %v1366, %v1365
      %v1376 = vsel %vm881, %v1238, 0
      %v1379 = vsel %vm881, %v1239, 0
      %v1382 = vsel %vm881, %v1240, 0
      %v1385 = vsel %vm881, %v1241, 0
      %1387 = vmatprep.subr.bf16.mxu0 0
      %1388 = vmatpush1.bf16.msra.mxu0 0
      %1389 = vmatprep.subr.bf16.mxu0 0
      %1390 = vmatpush1.bf16.msra.mxu0 0
      %1391 = vmatprep.subr.bf16.mxu0 0
      %1392 = vmatpush1.bf16.msra.mxu0 0
      %1393 = vmatprep.subr.bf16.mxu0 0
      %1394 = vmatpush1.bf16.msra.mxu0 0
      %1395 = vmatprep.subr.bf16.mxu0 0
      %1396 = vmatpush1.bf16.msra.mxu0 %v1370
      %1397 = vmatprep.subr.bf16.mxu0 0
      %1398 = vmatpush1.bf16.msra.mxu0 %v1369
      %1399 = vmatprep.subr.bf16.mxu0 0
      %1400 = vmatpush1.bf16.msra.mxu0 %v1368
      %1401 = vmatprep.subr.bf16.mxu0 0
      %1402 = vmatpush1.bf16.msra.mxu0 %v1367
      %1403 = vmatprep.subr.bf16.mxu0 0
      %1404 = vmatpush2.bf16.msra.mxu0 0
      %1405 = vmatprep.subr.bf16.mxu0 0
      %1406 = vmatpush2.bf16.msra.mxu0 0
      %1407 = vmatprep.subr.bf16.mxu0 0
      %1408 = vmatpush2.bf16.msra.mxu0 0
      %1409 = vmatprep.subr.bf16.mxu0 0
      %1410 = vmatpush2.bf16.msra.mxu0 0
      %1411 = vmatprep.subr.bf16.mxu0 0
      %1412 = vmatpush2.bf16.msra.mxu0 0
      %1413 = vmatprep.subr.bf16.mxu0 0
      %1414 = vmatpush2.bf16.msra.mxu0 0
      %1415 = vmatprep.subr.bf16.mxu0 0
      %1416 = vmatpush2.bf16.msra.mxu0 0
      %1417 = vmatprep.subr.bf16.mxu0 0
      %1418 = vmatpush2.bf16.msra.mxu0 0
      %1419 = vmatprep.mubr.bf16.mxu0 0
      %1420 = vmatmul.mubr.bf16.gmra.mxu0 %v1376
      %v1421 = vpop.f32.mrf.mxu0
      %v1422 = vadd.f32 0.0, %v1421
      %v1423 = vpop.f32.mrf.mxu0
      %v1424 = vpop.f32.mrf.mxu0
      %v1425 = vadd.f32 0.0, %v1424
      %v1426 = vpop.f32.mrf.mxu0
      %1427 = vmatprep.mubr.bf16.mxu0 0
      %1428 = vmatmul.mubr.bf16.gmra.mxu0 %v1379
      %v1429 = vpop.f32.mrf.mxu0
      %v1430 = vadd.f32 0.0, %v1429
      %v1431 = vpop.f32.mrf.mxu0
      %v1432 = vpop.f32.mrf.mxu0
      %v1433 = vadd.f32 0.0, %v1432
      %v1434 = vpop.f32.mrf.mxu0
      %1435 = vmatprep.mubr.bf16.mxu0 0
      %1436 = vmatmul.mubr.bf16.gmra.mxu0 %v1382
      %v1437 = vpop.f32.mrf.mxu0
      %v1438 = vadd.f32 0.0, %v1437
      %v1439 = vpop.f32.mrf.mxu0
      %v1440 = vpop.f32.mrf.mxu0
      %v1441 = vadd.f32 0.0, %v1440
      %v1442 = vpop.f32.mrf.mxu0
      %1443 = vmatprep.mubr.bf16.mxu0 0
      %1444 = vmatmul.mubr.bf16.gmra.mxu0 %v1385
      %v1445 = vpop.f32.mrf.mxu0
      %v1446 = vadd.f32 0.0, %v1445
      %v1447 = vpop.f32.mrf.mxu0
      %v1448 = vpop.f32.mrf.mxu0
      %v1449 = vadd.f32 0.0, %v1448
      %v1450 = vpop.f32.mrf.mxu0
      %1451 = vdwg.mxu0
      %v1460 = vunpack.c.l.b16 %v316
      %v1461 = vunpack.c.l.b16 %v317
      %v1462 = vunpack.c.l.b16 %v318
      %v1463 = vunpack.c.l.b16 %v319
      %v1464 = vunpack.c.l.b16 %v320
      %v1465 = vunpack.c.l.b16 %v321
      %v1466 = vunpack.c.l.b16 %v322
      %v1467 = vunpack.c.l.b16 %v323
      %v1468 = vpack.c.b16 %v1461, %v1460
      %v1469 = vpack.c.b16 %v1463, %v1462
      %v1470 = vpack.c.b16 %v1465, %v1464
      %v1471 = vpack.c.b16 %v1467, %v1466
      %v1477 = vsel %vm881, %v1242, 0
      %v1480 = vsel %vm881, %v1243, 0
      %v1483 = vsel %vm881, %v1244, 0
      %v1486 = vsel %vm881, %v1245, 0
      %1488 = vmatprep.subr.bf16.mxu0 0
      %1489 = vmatpush1.bf16.msra.mxu0 0
      %1490 = vmatprep.subr.bf16.mxu0 0
      %1491 = vmatpush1.bf16.msra.mxu0 0
      %1492 = vmatprep.subr.bf16.mxu0 0
      %1493 = vmatpush1.bf16.msra.mxu0 0
      %1494 = vmatprep.subr.bf16.mxu0 0
      %1495 = vmatpush1.bf16.msra.mxu0 0
      %1496 = vmatprep.subr.bf16.mxu0 0
      %1497 = vmatpush1.bf16.msra.mxu0 %v1471
      %1498 = vmatprep.subr.bf16.mxu0 0
      %1499 = vmatpush1.bf16.msra.mxu0 %v1470
      %1500 = vmatprep.subr.bf16.mxu0 0
      %1501 = vmatpush1.bf16.msra.mxu0 %v1469
      %1502 = vmatprep.subr.bf16.mxu0 0
      %1503 = vmatpush1.bf16.msra.mxu0 %v1468
      %1504 = vmatprep.subr.bf16.mxu0 0
      %1505 = vmatpush2.bf16.msra.mxu0 0
      %1506 = vmatprep.subr.bf16.mxu0 0
      %1507 = vmatpush2.bf16.msra.mxu0 0
      %1508 = vmatprep.subr.bf16.mxu0 0
      %1509 = vmatpush2.bf16.msra.mxu0 0
      %1510 = vmatprep.subr.bf16.mxu0 0
      %1511 = vmatpush2.bf16.msra.mxu0 0
      %1512 = vmatprep.subr.bf16.mxu0 0
      %1513 = vmatpush2.bf16.msra.mxu0 0
      %1514 = vmatprep.subr.bf16.mxu0 0
      %1515 = vmatpush2.bf16.msra.mxu0 0
      %1516 = vmatprep.subr.bf16.mxu0 0
      %1517 = vmatpush2.bf16.msra.mxu0 0
      %1518 = vmatprep.subr.bf16.mxu0 0
      %1519 = vmatpush2.bf16.msra.mxu0 0
      %1520 = vmatprep.mubr.bf16.mxu0 0
      %1521 = vmatmul.mubr.bf16.gmra.mxu0 %v1477
      %v1522 = vpop.f32.mrf.mxu0
      %v1523 = vadd.f32 0.0, %v1522
      %v1524 = vpop.f32.mrf.mxu0
      %v1525 = vpop.f32.mrf.mxu0
      %v1526 = vadd.f32 0.0, %v1525
      %v1527 = vpop.f32.mrf.mxu0
      %1528 = vmatprep.mubr.bf16.mxu0 0
      %1529 = vmatmul.mubr.bf16.gmra.mxu0 %v1480
      %v1530 = vpop.f32.mrf.mxu0
      %v1531 = vadd.f32 0.0, %v1530
      %v1532 = vpop.f32.mrf.mxu0
      %v1533 = vpop.f32.mrf.mxu0
      %v1534 = vadd.f32 0.0, %v1533
      %v1535 = vpop.f32.mrf.mxu0
      %1536 = vmatprep.mubr.bf16.mxu0 0
      %1537 = vmatmul.mubr.bf16.gmra.mxu0 %v1483
      %v1538 = vpop.f32.mrf.mxu0
      %v1539 = vadd.f32 0.0, %v1538
      %v1540 = vpop.f32.mrf.mxu0
      %v1541 = vpop.f32.mrf.mxu0
      %v1542 = vadd.f32 0.0, %v1541
      %v1543 = vpop.f32.mrf.mxu0
      %1544 = vmatprep.mubr.bf16.mxu0 0
      %1545 = vmatmul.mubr.bf16.gmra.mxu0 %v1486
      %v1546 = vpop.f32.mrf.mxu0
      %v1547 = vadd.f32 0.0, %v1546
      %v1548 = vpop.f32.mrf.mxu0
      %v1549 = vpop.f32.mrf.mxu0
      %v1550 = vadd.f32 0.0, %v1549
      %v1551 = vpop.f32.mrf.mxu0
      %1552 = vdwg.mxu0
      %v1561 = vunpack.c.l.b16 %v324
      %v1562 = vunpack.c.l.b16 %v325
      %v1563 = vunpack.c.l.b16 %v326
      %v1564 = vunpack.c.l.b16 %v327
      %v1565 = vunpack.c.l.b16 %v328
      %v1566 = vunpack.c.l.b16 %v329
      %v1567 = vunpack.c.l.b16 %v330
      %v1568 = vunpack.c.l.b16 %v331
      %v1569 = vpack.c.b16 %v1562, %v1561
      %v1570 = vpack.c.b16 %v1564, %v1563
      %v1571 = vpack.c.b16 %v1566, %v1565
      %v1572 = vpack.c.b16 %v1568, %v1567
      %v1578 = vsel %vm881, %v1246, 0
      %v1581 = vsel %vm881, %v1247, 0
      %v1584 = vsel %vm881, %v1248, 0
      %v1587 = vsel %vm881, %v1249, 0
      %1589 = vmatprep.subr.bf16.mxu0 0
      %1590 = vmatpush1.bf16.msra.mxu0 0
      %1591 = vmatprep.subr.bf16.mxu0 0
      %1592 = vmatpush1.bf16.msra.mxu0 0
      %1593 = vmatprep.subr.bf16.mxu0 0
      %1594 = vmatpush1.bf16.msra.mxu0 0
      %1595 = vmatprep.subr.bf16.mxu0 0
      %1596 = vmatpush1.bf16.msra.mxu0 0
      %1597 = vmatprep.subr.bf16.mxu0 0
      %1598 = vmatpush1.bf16.msra.mxu0 %v1572
      %1599 = vmatprep.subr.bf16.mxu0 0
      %1600 = vmatpush1.bf16.msra.mxu0 %v1571
      %1601 = vmatprep.subr.bf16.mxu0 0
      %1602 = vmatpush1.bf16.msra.mxu0 %v1570
      %1603 = vmatprep.subr.bf16.mxu0 0
      %1604 = vmatpush1.bf16.msra.mxu0 %v1569
      %1605 = vmatprep.subr.bf16.mxu0 0
      %1606 = vmatpush2.bf16.msra.mxu0 0
      %1607 = vmatprep.subr.bf16.mxu0 0
      %1608 = vmatpush2.bf16.msra.mxu0 0
      %1609 = vmatprep.subr.bf16.mxu0 0
      %1610 = vmatpush2.bf16.msra.mxu0 0
      %1611 = vmatprep.subr.bf16.mxu0 0
      %1612 = vmatpush2.bf16.msra.mxu0 0
      %1613 = vmatprep.subr.bf16.mxu0 0
      %1614 = vmatpush2.bf16.msra.mxu0 0
      %1615 = vmatprep.subr.bf16.mxu0 0
      %1616 = vmatpush2.bf16.msra.mxu0 0
      %1617 = vmatprep.subr.bf16.mxu0 0
      %1618 = vmatpush2.bf16.msra.mxu0 0
      %1619 = vmatprep.subr.bf16.mxu0 0
      %1620 = vmatpush2.bf16.msra.mxu0 0
      %1621 = vmatprep.mubr.bf16.mxu0 0
      %1622 = vmatmul.mubr.bf16.gmra.mxu0 %v1578
      %v1623 = vpop.f32.mrf.mxu0
      %v1624 = vadd.f32 0.0, %v1623
      %v1625 = vpop.f32.mrf.mxu0
      %v1626 = vpop.f32.mrf.mxu0
      %v1627 = vadd.f32 0.0, %v1626
      %v1628 = vpop.f32.mrf.mxu0
      %1629 = vmatprep.mubr.bf16.mxu0 0
      %1630 = vmatmul.mubr.bf16.gmra.mxu0 %v1581
      %v1631 = vpop.f32.mrf.mxu0
      %v1632 = vadd.f32 0.0, %v1631
      %v1633 = vpop.f32.mrf.mxu0
      %v1634 = vpop.f32.mrf.mxu0
      %v1635 = vadd.f32 0.0, %v1634
      %v1636 = vpop.f32.mrf.mxu0
      %1637 = vmatprep.mubr.bf16.mxu0 0
      %1638 = vmatmul.mubr.bf16.gmra.mxu0 %v1584
      %v1639 = vpop.f32.mrf.mxu0
      %v1640 = vadd.f32 0.0, %v1639
      %v1641 = vpop.f32.mrf.mxu0
      %v1642 = vpop.f32.mrf.mxu0
      %v1643 = vadd.f32 0.0, %v1642
      %v1644 = vpop.f32.mrf.mxu0
      %1645 = vmatprep.mubr.bf16.mxu0 0
      %1646 = vmatmul.mubr.bf16.gmra.mxu0 %v1587
      %v1647 = vpop.f32.mrf.mxu0
      %v1648 = vadd.f32 0.0, %v1647
      %v1649 = vpop.f32.mrf.mxu0
      %v1650 = vpop.f32.mrf.mxu0
      %v1651 = vadd.f32 0.0, %v1650
      %v1652 = vpop.f32.mrf.mxu0
      %1653 = vdwg.mxu0
      %v1654 = vpack.c.bf16 %v1324, %v1321
      %v1655 = vpack.c.bf16 %v1332, %v1329
      %v1656 = vpack.c.bf16 %v1340, %v1337
      %v1657 = vpack.c.bf16 %v1348, %v1345
      %v1658 = vpack.c.bf16 %v1425, %v1422
      %v1659 = vpack.c.bf16 %v1433, %v1430
      %v1660 = vpack.c.bf16 %v1441, %v1438
      %v1661 = vpack.c.bf16 %v1449, %v1446
      %v1662 = vpack.c.bf16 %v1526, %v1523
      %v1663 = vpack.c.bf16 %v1534, %v1531
      %v1664 = vpack.c.bf16 %v1542, %v1539
      %v1665 = vpack.c.bf16 %v1550, %v1547
      %v1666 = vpack.c.bf16 %v1627, %v1624
      %v1667 = vpack.c.bf16 %v1635, %v1632
      %v1668 = vpack.c.bf16 %v1643, %v1640
      %v1669 = vpack.c.bf16 %v1651, %v1648
      %v1686 = vunpack.c.l.b16 %v1654
      %v1687 = vunpack.c.h.b16 %v1654
      %v1688 = vunpack.c.l.b16 %v1655
      %v1689 = vunpack.c.h.b16 %v1655
      %v1690 = vunpack.c.l.b16 %v1656
      %v1691 = vunpack.c.h.b16 %v1656
      %v1692 = vunpack.c.l.b16 %v1657
      %v1693 = vunpack.c.h.b16 %v1657
      %v1694 = vunpack.c.l.b16 %v1658
      %v1695 = vunpack.c.h.b16 %v1658
      %v1696 = vunpack.c.l.b16 %v1659
      %v1697 = vunpack.c.h.b16 %v1659
      %v1698 = vunpack.c.l.b16 %v1660
      %v1699 = vunpack.c.h.b16 %v1660
      %v1700 = vunpack.c.l.b16 %v1661
      %v1701 = vunpack.c.h.b16 %v1661
      %v1702 = vunpack.c.l.b16 %v1662
      %v1703 = vunpack.c.h.b16 %v1662
      %v1704 = vunpack.c.l.b16 %v1663
      %v1705 = vunpack.c.h.b16 %v1663
      %v1706 = vunpack.c.l.b16 %v1664
      %v1707 = vunpack.c.h.b16 %v1664
      %v1708 = vunpack.c.l.b16 %v1665
      %v1709 = vunpack.c.h.b16 %v1665
      %v1710 = vunpack.c.l.b16 %v1666
      %v1711 = vunpack.c.h.b16 %v1666
      %v1712 = vunpack.c.l.b16 %v1667
      %v1713 = vunpack.c.h.b16 %v1667
      %v1714 = vunpack.c.l.b16 %v1668
      %v1715 = vunpack.c.h.b16 %v1668
      %v1716 = vunpack.c.l.b16 %v1669
      %v1717 = vunpack.c.h.b16 %v1669
      %v1718 = vpack.c.b16 %v1686, %v1686
      %v1719 = vpack.c.b16 %v1687, %v1687
      %v1720 = vpack.c.b16 %v1688, %v1688
      %v1721 = vpack.c.b16 %v1689, %v1689
      %v1722 = vpack.c.b16 %v1690, %v1690
      %v1723 = vpack.c.b16 %v1691, %v1691
      %v1724 = vpack.c.b16 %v1692, %v1692
      %v1725 = vpack.c.b16 %v1693, %v1693
      %v1726 = vpack.c.b16 %v1694, %v1694
      %v1727 = vpack.c.b16 %v1695, %v1695
      %v1728 = vpack.c.b16 %v1696, %v1696
      %v1729 = vpack.c.b16 %v1697, %v1697
      %v1730 = vpack.c.b16 %v1698, %v1698
      %v1731 = vpack.c.b16 %v1699, %v1699
      %v1732 = vpack.c.b16 %v1700, %v1700
      %v1733 = vpack.c.b16 %v1701, %v1701
      %v1734 = vpack.c.b16 %v1702, %v1702
      %v1735 = vpack.c.b16 %v1703, %v1703
      %v1736 = vpack.c.b16 %v1704, %v1704
      %v1737 = vpack.c.b16 %v1705, %v1705
      %v1738 = vpack.c.b16 %v1706, %v1706
      %v1739 = vpack.c.b16 %v1707, %v1707
      %v1740 = vpack.c.b16 %v1708, %v1708
      %v1741 = vpack.c.b16 %v1709, %v1709
      %v1742 = vpack.c.b16 %v1710, %v1710
      %v1743 = vpack.c.b16 %v1711, %v1711
      %v1744 = vpack.c.b16 %v1712, %v1712
      %v1745 = vpack.c.b16 %v1713, %v1713
      %v1746 = vpack.c.b16 %v1714, %v1714
      %v1747 = vpack.c.b16 %v1715, %v1715
      %v1748 = vpack.c.b16 %v1716, %v1716
      %v1749 = vpack.c.b16 %v1717, %v1717
      %vm1782 = vcmask 257024
      %1783 = vst.msk [vmem:[%s233] sm:$0xf] %vm1782, %v1718
      %1784 = vst.msk [vmem:[%s233 + $0x4] sm:$0xf] %vm1782, %v1719
      %1785 = vst.msk [vmem:[%s233 + $0x8] sm:$0xf] %vm1782, %v1720
      %1786 = vst.msk [vmem:[%s233 + $0xc] sm:$0xf] %vm1782, %v1721
      %1787 = vst.msk [vmem:[%s233 + $0x10] sm:$0xf] %vm1782, %v1722
      %1788 = vst.msk [vmem:[%s233 + $0x14] sm:$0xf] %vm1782, %v1723
      %1789 = vst.msk [vmem:[%s233 + $0x18] sm:$0xf] %vm1782, %v1724
      %1790 = vst.msk [vmem:[%s233 + $0x1c] sm:$0xf] %vm1782, %v1725
      %1791 = vst.msk [vmem:[%s233 + $0x20] sm:$0xf] %vm1782, %v1726
      %1792 = vst.msk [vmem:[%s233 + $0x24] sm:$0xf] %vm1782, %v1727
      %1793 = vst.msk [vmem:[%s233 + $0x28] sm:$0xf] %vm1782, %v1728
      %1794 = vst.msk [vmem:[%s233 + $0x2c] sm:$0xf] %vm1782, %v1729
      %1795 = vst.msk [vmem:[%s233 + $0x30] sm:$0xf] %vm1782, %v1730
      %1796 = vst.msk [vmem:[%s233 + $0x34] sm:$0xf] %vm1782, %v1731
      %1797 = vst.msk [vmem:[%s233 + $0x38] sm:$0xf] %vm1782, %v1732
      %1798 = vst.msk [vmem:[%s233 + $0x3c] sm:$0xf] %vm1782, %v1733
      %1799 = vst.msk [vmem:[%s233 + $0x40] sm:$0xf] %vm1782, %v1734
      %1800 = vst.msk [vmem:[%s233 + $0x44] sm:$0xf] %vm1782, %v1735
      %1801 = vst.msk [vmem:[%s233 + $0x48] sm:$0xf] %vm1782, %v1736
      %1802 = vst.msk [vmem:[%s233 + $0x4c] sm:$0xf] %vm1782, %v1737
      %1803 = vst.msk [vmem:[%s233 + $0x50] sm:$0xf] %vm1782, %v1738
      %1804 = vst.msk [vmem:[%s233 + $0x54] sm:$0xf] %vm1782, %v1739
      %1805 = vst.msk [vmem:[%s233 + $0x58] sm:$0xf] %vm1782, %v1740
      %1806 = vst.msk [vmem:[%s233 + $0x5c] sm:$0xf] %vm1782, %v1741
      %1807 = vst.msk [vmem:[%s233 + $0x60] sm:$0xf] %vm1782, %v1742
      %1808 = vst.msk [vmem:[%s233 + $0x64] sm:$0xf] %vm1782, %v1743
      %1809 = vst.msk [vmem:[%s233 + $0x68] sm:$0xf] %vm1782, %v1744
      %1810 = vst.msk [vmem:[%s233 + $0x6c] sm:$0xf] %vm1782, %v1745
      %1811 = vst.msk [vmem:[%s233 + $0x70] sm:$0xf] %vm1782, %v1746
      %1812 = vst.msk [vmem:[%s233 + $0x74] sm:$0xf] %vm1782, %v1747
      %1813 = vst.msk [vmem:[%s233 + $0x78] sm:$0xf] %vm1782, %v1748
      %1814 = vst.msk [vmem:[%s233 + $0x7c] sm:$0xf] %vm1782, %v1749
      %s1815 = smul.u32 4, %s14
      %p1816 = scmp.lt.s32.totalorder %s1815, 7
      %s1817 = scalar_select %p1816, %s1815, 7
      %s1818 = smul.addr %s1817, 8
      %s1819 = smul.addr %s1818, 4
      %s1820 = scalar_lea.vmem %s3, %s1819
      // Predicated region
      $region33: #{block_forward.6} parent=31 // pred_check
        %p1821 = pneg %p110
      $region34: #{block_forward.6} parent=31 // pred_check_branch
        %1823 = sbr.rel (%p1821) target = $region36
      $region35: #{block_forward.6} parent=31 // pred_region
        %s1824 = smul.u32 4, %s14
      $region36: #{block_forward.6} parent=31 // pred_fallthru
        _
    $region32: #{block_forward.6} parent=5 // pred_fallthru
      _
    %p1825 = scmp.le.s32.totalorder 2, %s9
    // Predicated region
    $region37: #{block_forward.6} parent=5 // pred_check
      %p1826 = pneg %p1825
    $region38: #{block_forward.6} parent=5 // pred_check_branch
      %1828 = sbr.rel (%p1826) target = $region40
    $region39: #{block_forward.6} parent=5 // pred_region
      %s1829 = ssub.s32 %s9, 2
      // Predicated region
      $region41: #{block_forward.6} parent=39 // pred_check
        %p1830 = pneg %p116
      $region42: #{block_forward.6} parent=39 // pred_check_branch
        %1832 = sbr.rel (%p1830) target = $region44
      $region43: #{block_forward.6} parent=39 // pred_region
        %s1833 = smul.u32 4, %s15
        %p1834 = scmp.lt.s32.totalorder %s1833, 7
        %s1835 = scalar_select %p1834, %s1833, 7
        %s1836 = smul.addr %s1835, 8
        %s1837 = smul.addr %s1836, 4
        %s1838 = scalar_lea.vmem %s3, %s1837
      $region44: #{block_forward.6} parent=39 // pred_fallthru
        _
    $region40: #{block_forward.6} parent=5 // pred_fallthru
      _
  $region6: #{block_forward.6} parent=0 // loop_footer
    %s13 = sadd.s32 1, %s9
  $region7: #{block_forward.6} parent=0 // loop_footer_branch
    %8 = sbr.rel target = $region3
  $region8: #{block_forward.6} parent=0 // loop_exit
    _

// kernel: block_forward.7
$region0: #{block_forward.7}
  #allocation0 [shape = 'u32[]', space=smem, size = 0x4, offset = 0x4, fixed_abs, tag = 'smem constant byte address 0x4 - core index']
  #allocation1 [shape = 'u32[144,128]{1,0:T(1,128)}', space=vmem, size = 0x12000, scoped, tag = 'internal scratch']
  %s0 = inlined_call_operand.vmem [shape: bf16[128,128], index: 0, kind: input, shape index: {}]
  %s1 = inlined_call_operand.vmem [shape: bf16[128,128], index: 1, kind: input, shape index: {}]
  %s2 = inlined_call_operand.vmem [shape: f32[1,128], index: 2, kind: input, shape index: {}]
  %s3 = inlined_call_operand.vmem [shape: bf16[128,128], index: 3, kind: input, shape index: {}]
  %s4 = inlined_call_operand.vmem [shape: bf16[128,128], index: 4, kind: output, shape index: {}]
  %s5 = sld [smem:[#allocation0]]
  $region26: #{block_forward.7} parent=0
    _
  %s7 = ssub.s32 1, %s5
  %s8 = scalar_select 0, %s7, %s5
  // Predicated region
  $region2: #{block_forward.7} parent=0 // pred_check
    _
  $region3: #{block_forward.7} parent=0 // pred_check_branch
    %10 = sbr.rel (0) target = $region5
  $region4: #{block_forward.7} parent=0 // pred_region
    _
  $region5: #{block_forward.7} parent=0 // pred_fallthru
    _
  // Predicated region
  $region6: #{block_forward.7} parent=0 // pred_check
    _
  $region7: #{block_forward.7} parent=0 // pred_check_branch
    %12 = sbr.rel (0) target = $region9
  $region8: #{block_forward.7} parent=0 // pred_region
    _
  $region9: #{block_forward.7} parent=0 // pred_fallthru
    _
  // Predicated region
  $region10: #{block_forward.7} parent=0 // pred_check
    _
  $region11: #{block_forward.7} parent=0 // pred_check_branch
    %14 = sbr.rel (0) target = $region13
  $region12: #{block_forward.7} parent=0 // pred_region
    _
  $region13: #{block_forward.7} parent=0 // pred_fallthru
    _
  // Predicated region
  $region14: #{block_forward.7} parent=0 // pred_check
    _
  $region15: #{block_forward.7} parent=0 // pred_check_branch
    %16 = sbr.rel (0) target = $region17
  $region16: #{block_forward.7} parent=0 // pred_region
    _
  $region17: #{block_forward.7} parent=0 // pred_fallthru
    _
  %v18 = vld [vmem:[%s0] sm:$0xf]
  %v19 = vld [vmem:[%s0 + $0x4] sm:$0xf]
  %v20 = vld [vmem:[%s0 + $0x8] sm:$0xf]
  %v21 = vld [vmem:[%s0 + $0xc] sm:$0xf]
  %v22 = vld [vmem:[%s0 + $0x10] sm:$0xf]
  %v23 = vld [vmem:[%s0 + $0x14] sm:$0xf]
  %v24 = vld [vmem:[%s0 + $0x18] sm:$0xf]
  %v25 = vld [vmem:[%s0 + $0x1c] sm:$0xf]
  %v26 = vld [vmem:[%s0 + $0x20] sm:$0xf]
  %v27 = vld [vmem:[%s0 + $0x24] sm:$0xf]
  %v28 = vld [vmem:[%s0 + $0x28] sm:$0xf]
  %v29 = vld [vmem:[%s0 + $0x2c] sm:$0xf]
  %v30 = vld [vmem:[%s0 + $0x30] sm:$0xf]
  %v31 = vld [vmem:[%s0 + $0x34] sm:$0xf]
  %v32 = vld [vmem:[%s0 + $0x38] sm:$0xf]
  %v33 = vld [vmem:[%s0 + $0x3c] sm:$0xf]
  %v34 = vld [vmem:[%s1] sm:$0xf]
  %v35 = vld [vmem:[%s1 + $0x4] sm:$0xf]
  %v36 = vld [vmem:[%s1 + $0x8] sm:$0xf]
  %v37 = vld [vmem:[%s1 + $0xc] sm:$0xf]
  %v38 = vld [vmem:[%s1 + $0x10] sm:$0xf]
  %v39 = vld [vmem:[%s1 + $0x14] sm:$0xf]
  %v40 = vld [vmem:[%s1 + $0x18] sm:$0xf]
  %v41 = vld [vmem:[%s1 + $0x1c] sm:$0xf]
  %v42 = vld [vmem:[%s1 + $0x20] sm:$0xf]
  %v43 = vld [vmem:[%s1 + $0x24] sm:$0xf]
  %v44 = vld [vmem:[%s1 + $0x28] sm:$0xf]
  %v45 = vld [vmem:[%s1 + $0x2c] sm:$0xf]
  %v46 = vld [vmem:[%s1 + $0x30] sm:$0xf]
  %v47 = vld [vmem:[%s1 + $0x34] sm:$0xf]
  %v48 = vld [vmem:[%s1 + $0x38] sm:$0xf]
  %v49 = vld [vmem:[%s1 + $0x3c] sm:$0xf]
  %v50 = vld [vmem:[%s2] sm:$0x1]
  %v52 = vlaneseq
  %v53 = vshrl.u32 %v52, 7
  %v54 = vsub.s32 0, %v53
  %v55 = vrot.slane %v50, %v54
  %v73 = vunpack.c.l.b16 %v18
  %v74 = vunpack.c.l.b16 %v19
  %v75 = vunpack.c.l.b16 %v20
  %v76 = vunpack.c.l.b16 %v21
  %v77 = vunpack.c.l.b16 %v22
  %v78 = vunpack.c.l.b16 %v23
  %v79 = vunpack.c.l.b16 %v24
  %v80 = vunpack.c.l.b16 %v25
  %v81 = vunpack.c.l.b16 %v26
  %v82 = vunpack.c.l.b16 %v27
  %v83 = vunpack.c.l.b16 %v28
  %v84 = vunpack.c.l.b16 %v29
  %v85 = vunpack.c.l.b16 %v30
  %v86 = vunpack.c.l.b16 %v31
  %v87 = vunpack.c.l.b16 %v32
  %v88 = vunpack.c.l.b16 %v33
  %v89 = vpack.c.b16 %v74, %v73
  %v90 = vpack.c.b16 %v76, %v75
  %v91 = vpack.c.b16 %v78, %v77
  %v92 = vpack.c.b16 %v80, %v79
  %v93 = vpack.c.b16 %v82, %v81
  %v94 = vpack.c.b16 %v84, %v83
  %v95 = vpack.c.b16 %v86, %v85
  %v96 = vpack.c.b16 %v88, %v87
  %v121 = vunpack.c.l.b16 %v34
  %v122 = vunpack.c.l.b16 %v35
  %v123 = vunpack.c.l.b16 %v36
  %v124 = vunpack.c.l.b16 %v37
  %v125 = vunpack.c.l.b16 %v38
  %v126 = vunpack.c.l.b16 %v39
  %v127 = vunpack.c.l.b16 %v40
  %v128 = vunpack.c.l.b16 %v41
  %v129 = vunpack.c.l.b16 %v42
  %v130 = vunpack.c.l.b16 %v43
  %v131 = vunpack.c.l.b16 %v44
  %v132 = vunpack.c.l.b16 %v45
  %v133 = vunpack.c.l.b16 %v46
  %v134 = vunpack.c.l.b16 %v47
  %v135 = vunpack.c.l.b16 %v48
  %v136 = vunpack.c.l.b16 %v49
  %v137 = vpack.c.b16 %v122, %v121
  %v138 = vpack.c.b16 %v124, %v123
  %v139 = vpack.c.b16 %v126, %v125
  %v140 = vpack.c.b16 %v128, %v127
  %v141 = vpack.c.b16 %v130, %v129
  %v142 = vpack.c.b16 %v132, %v131
  %v143 = vpack.c.b16 %v134, %v133
  %v144 = vpack.c.b16 %v136, %v135
  %153 = vmatprep.subr.bf16.mxu0 0
  %154 = vmatpush1.bf16.msra.mxu0 %v144
  %155 = vmatprep.subr.bf16.mxu0 0
  %156 = vmatpush1.bf16.msra.mxu0 %v143
  %157 = vmatprep.subr.bf16.mxu0 0
  %158 = vmatpush1.bf16.msra.mxu0 %v142
  %159 = vmatprep.subr.bf16.mxu0 0
  %160 = vmatpush1.bf16.msra.mxu0 %v141
  %161 = vmatprep.subr.bf16.mxu0 0
  %162 = vmatpush1.bf16.msra.mxu0 %v140
  %163 = vmatprep.subr.bf16.mxu0 0
  %164 = vmatpush1.bf16.msra.mxu0 %v139
  %165 = vmatprep.subr.bf16.mxu0 0
  %166 = vmatpush1.bf16.msra.mxu0 %v138
  %167 = vmatprep.subr.bf16.mxu0 0
  %168 = vmatpush1.bf16.msra.mxu0 %v137
  %169 = vmatprep.subr.bf16.mxu0 0
  %170 = vmatpush2.bf16.msra.mxu0 0
  %171 = vmatprep.subr.bf16.mxu0 0
  %172 = vmatpush2.bf16.msra.mxu0 0
  %173 = vmatprep.subr.bf16.mxu0 0
  %174 = vmatpush2.bf16.msra.mxu0 0
  %175 = vmatprep.subr.bf16.mxu0 0
  %176 = vmatpush2.bf16.msra.mxu0 0
  %177 = vmatprep.subr.bf16.mxu0 0
  %178 = vmatpush2.bf16.msra.mxu0 0
  %179 = vmatprep.subr.bf16.mxu0 0
  %180 = vmatpush2.bf16.msra.mxu0 0
  %181 = vmatprep.subr.bf16.mxu0 0
  %182 = vmatpush2.bf16.msra.mxu0 0
  %183 = vmatprep.subr.bf16.mxu0 0
  %184 = vmatpush2.bf16.msra.mxu0 0
  %185 = vmatprep.mubr.bf16.mxu0 0
  %186 = vmatmul.mubr.bf16.gmra.mxu0 %v89
  %v187 = vpop.f32.mrf.mxu0
  %v188 = vadd.f32 %v55, %v187
  %v189 = vpop.f32.mrf.mxu0
  %v190 = vpop.f32.mrf.mxu0
  %v191 = vadd.f32 %v55, %v190
  %v192 = vpop.f32.mrf.mxu0
  %193 = vmatprep.mubr.bf16.mxu0 0
  %194 = vmatmul.mubr.bf16.gmra.mxu0 %v90
  %v195 = vpop.f32.mrf.mxu0
  %v196 = vadd.f32 %v55, %v195
  %v197 = vpop.f32.mrf.mxu0
  %v198 = vpop.f32.mrf.mxu0
  %v199 = vadd.f32 %v55, %v198
  %v200 = vpop.f32.mrf.mxu0
  %201 = vmatprep.mubr.bf16.mxu0 0
  %202 = vmatmul.mubr.bf16.gmra.mxu0 %v91
  %v203 = vpop.f32.mrf.mxu0
  %v204 = vadd.f32 %v55, %v203
  %v205 = vpop.f32.mrf.mxu0
  %v206 = vpop.f32.mrf.mxu0
  %v207 = vadd.f32 %v55, %v206
  %v208 = vpop.f32.mrf.mxu0
  %209 = vmatprep.mubr.bf16.mxu0 0
  %210 = vmatmul.mubr.bf16.gmra.mxu0 %v92
  %v211 = vpop.f32.mrf.mxu0
  %v212 = vadd.f32 %v55, %v211
  %v213 = vpop.f32.mrf.mxu0
  %v214 = vpop.f32.mrf.mxu0
  %v215 = vadd.f32 %v55, %v214
  %v216 = vpop.f32.mrf.mxu0
  %217 = vmatprep.mubr.bf16.mxu0 0
  %218 = vmatmul.mubr.bf16.gmra.mxu0 %v93
  %v219 = vpop.f32.mrf.mxu0
  %v220 = vadd.f32 %v55, %v219
  %v221 = vpop.f32.mrf.mxu0
  %v222 = vpop.f32.mrf.mxu0
  %v223 = vadd.f32 %v55, %v222
  %v224 = vpop.f32.mrf.mxu0
  %225 = vmatprep.mubr.bf16.mxu0 0
  %226 = vmatmul.mubr.bf16.gmra.mxu0 %v94
  %v227 = vpop.f32.mrf.mxu0
  %v228 = vadd.f32 %v55, %v227
  %v229 = vpop.f32.mrf.mxu0
  %v230 = vpop.f32.mrf.mxu0
  %v231 = vadd.f32 %v55, %v230
  %v232 = vpop.f32.mrf.mxu0
  %233 = vmatprep.mubr.bf16.mxu0 0
  %234 = vmatmul.mubr.bf16.gmra.mxu0 %v95
  %v235 = vpop.f32.mrf.mxu0
  %v236 = vadd.f32 %v55, %v235
  %v237 = vpop.f32.mrf.mxu0
  %v238 = vpop.f32.mrf.mxu0
  %v239 = vadd.f32 %v55, %v238
  %v240 = vpop.f32.mrf.mxu0
  %241 = vmatprep.mubr.bf16.mxu0 0
  %242 = vmatmul.mubr.bf16.gmra.mxu0 %v96
  %v243 = vpop.f32.mrf.mxu0
  %v244 = vadd.f32 %v55, %v243
  %v245 = vpop.f32.mrf.mxu0
  %v246 = vpop.f32.mrf.mxu0
  %v247 = vadd.f32 %v55, %v246
  %v248 = vpop.f32.mrf.mxu0
  %249 = vdwg.mxu0
  %v250 = vld [vmem:[%s3] sm:$0xf]
  %v251 = vld [vmem:[%s3 + $0x4] sm:$0xf]
  %v252 = vld [vmem:[%s3 + $0x8] sm:$0xf]
  %v253 = vld [vmem:[%s3 + $0xc] sm:$0xf]
  %v254 = vld [vmem:[%s3 + $0x10] sm:$0xf]
  %v255 = vld [vmem:[%s3 + $0x14] sm:$0xf]
  %v256 = vld [vmem:[%s3 + $0x18] sm:$0xf]
  %v257 = vld [vmem:[%s3 + $0x1c] sm:$0xf]
  %v258 = vld [vmem:[%s3 + $0x20] sm:$0xf]
  %v259 = vld [vmem:[%s3 + $0x24] sm:$0xf]
  %v260 = vld [vmem:[%s3 + $0x28] sm:$0xf]
  %v261 = vld [vmem:[%s3 + $0x2c] sm:$0xf]
  %v262 = vld [vmem:[%s3 + $0x30] sm:$0xf]
  %v263 = vld [vmem:[%s3 + $0x34] sm:$0xf]
  %v264 = vld [vmem:[%s3 + $0x38] sm:$0xf]
  %v265 = vld [vmem:[%s3 + $0x3c] sm:$0xf]
  %v266 = vunpack.c.l.bf16 %v250
  %v267 = vunpack.c.l.bf16 %v251
  %v268 = vunpack.c.l.bf16 %v252
  %v269 = vunpack.c.l.bf16 %v253
  %v270 = vunpack.c.l.bf16 %v254
  %v271 = vunpack.c.l.bf16 %v255
  %v272 = vunpack.c.l.bf16 %v256
  %v273 = vunpack.c.l.bf16 %v257
  %v274 = vunpack.c.l.bf16 %v258
  %v275 = vunpack.c.l.bf16 %v259
  %v276 = vunpack.c.l.bf16 %v260
  %v277 = vunpack.c.l.bf16 %v261
  %v278 = vunpack.c.l.bf16 %v262
  %v279 = vunpack.c.l.bf16 %v263
  %v280 = vunpack.c.l.bf16 %v264
  %v281 = vunpack.c.l.bf16 %v265
  %v282 = vadd.f32 %v188, %v266
  %v283 = vadd.f32 %v191, %v267
  %v284 = vadd.f32 %v196, %v268
  %v285 = vadd.f32 %v199, %v269
  %v286 = vadd.f32 %v204, %v270
  %v287 = vadd.f32 %v207, %v271
  %v288 = vadd.f32 %v212, %v272
  %v289 = vadd.f32 %v215, %v273
  %v290 = vadd.f32 %v220, %v274
  %v291 = vadd.f32 %v223, %v275
  %v292 = vadd.f32 %v228, %v276
  %v293 = vadd.f32 %v231, %v277
  %v294 = vadd.f32 %v236, %v278
  %v295 = vadd.f32 %v239, %v279
  %v296 = vadd.f32 %v244, %v280
  %v297 = vadd.f32 %v247, %v281
  %v298 = vpack.c.bf16 %v283, %v282
  %v299 = vpack.c.bf16 %v285, %v284
  %v300 = vpack.c.bf16 %v287, %v286
  %v301 = vpack.c.bf16 %v289, %v288
  %v302 = vpack.c.bf16 %v291, %v290
  %v303 = vpack.c.bf16 %v293, %v292
  %v304 = vpack.c.bf16 %v295, %v294
  %v305 = vpack.c.bf16 %v297, %v296
  %v314 = vunpack.c.l.b16 %v298
  %v315 = vunpack.c.h.b16 %v298
  %v316 = vunpack.c.l.b16 %v299
  %v317 = vunpack.c.h.b16 %v299
  %v318 = vunpack.c.l.b16 %v300
  %v319 = vunpack.c.h.b16 %v300
  %v320 = vunpack.c.l.b16 %v301
  %v321 = vunpack.c.h.b16 %v301
  %v322 = vunpack.c.l.b16 %v302
  %v323 = vunpack.c.h.b16 %v302
  %v324 = vunpack.c.l.b16 %v303
  %v325 = vunpack.c.h.b16 %v303
  %v326 = vunpack.c.l.b16 %v304
  %v327 = vunpack.c.h.b16 %v304
  %v328 = vunpack.c.l.b16 %v305
  %v329 = vunpack.c.h.b16 %v305
  %v330 = vpack.c.b16 %v314, %v314
  %v331 = vpack.c.b16 %v315, %v315
  %v332 = vpack.c.b16 %v316, %v316
  %v333 = vpack.c.b16 %v317, %v317
  %v334 = vpack.c.b16 %v318, %v318
  %v335 = vpack.c.b16 %v319, %v319
  %v336 = vpack.c.b16 %v320, %v320
  %v337 = vpack.c.b16 %v321, %v321
  %v338 = vpack.c.b16 %v322, %v322
  %v339 = vpack.c.b16 %v323, %v323
  %v340 = vpack.c.b16 %v324, %v324
  %v341 = vpack.c.b16 %v325, %v325
  %v342 = vpack.c.b16 %v326, %v326
  %v343 = vpack.c.b16 %v327, %v327
  %v344 = vpack.c.b16 %v328, %v328
  %v345 = vpack.c.b16 %v329, %v329
  %362 = vst [vmem:[%s4] sm:$0xf] %v330
  %363 = vst [vmem:[%s4 + $0x4] sm:$0xf] %v331
  %364 = vst [vmem:[%s4 + $0x8] sm:$0xf] %v332
  %365 = vst [vmem:[%s4 + $0xc] sm:$0xf] %v333
  %366 = vst [vmem:[%s4 + $0x10] sm:$0xf] %v334
  %367 = vst [vmem:[%s4 + $0x14] sm:$0xf] %v335
  %368 = vst [vmem:[%s4 + $0x18] sm:$0xf] %v336
  %369 = vst [vmem:[%s4 + $0x1c] sm:$0xf] %v337
  %370 = vst [vmem:[%s4 + $0x20] sm:$0xf] %v338
  %371 = vst [vmem:[%s4 + $0x24] sm:$0xf] %v339
  %372 = vst [vmem:[%s4 + $0x28] sm:$0xf] %v340
  %373 = vst [vmem:[%s4 + $0x2c] sm:$0xf] %v341
  %374 = vst [vmem:[%s4 + $0x30] sm:$0xf] %v342
  %375 = vst [vmem:[%s4 + $0x34] sm:$0xf] %v343
  %376 = vst [vmem:[%s4 + $0x38] sm:$0xf] %v344
  %377 = vst [vmem:[%s4 + $0x3c] sm:$0xf] %v345
  // Predicated region
  $region18: #{block_forward.7} parent=0 // pred_check
    _
  $region19: #{block_forward.7} parent=0 // pred_check_branch
    %379 = sbr.rel (0) target = $region21
  $region20: #{block_forward.7} parent=0 // pred_region
    _
  $region21: #{block_forward.7} parent=0 // pred_fallthru
    _
  // Predicated region
  $region22: #{block_forward.7} parent=0 // pred_check
    _
  $region23: #{block_forward.7} parent=0 // pred_check_branch
    %381 = sbr.rel (0) target = $region25
  $region24: #{block_forward.7} parent=0 // pred_region
    _
  $region25: #{block_forward.7} parent=0 // pred_fallthru
    _

// kernel: block_forward.8
$region0: #{block_forward.8}
  #allocation0 [shape = 'u32[]', space=smem, size = 0x4, offset = 0x4, fixed_abs, tag = 'smem constant byte address 0x4 - core index']
  #allocation1 [shape = 'u32[144,128]{1,0:T(1,128)}', space=vmem, size = 0x12000, scoped, tag = 'internal scratch']
  %s0 = inlined_call_operand.vmem [shape: bf16[128,128], index: 0, kind: input, shape index: {}]
  %s1 = inlined_call_operand.vmem [shape: f32[1,128], index: 1, kind: input, shape index: {}]
  %s2 = inlined_call_operand.vmem [shape: f32[1,128], index: 2, kind: input, shape index: {}]
  %s3 = inlined_call_operand.vmem [shape: bf16[128,512], index: 3, kind: input, shape index: {}]
  %s4 = inlined_call_operand.vmem [shape: f32[1,512], index: 4, kind: input, shape index: {}]
  %s5 = inlined_call_operand.vmem [shape: bf16[128,512], index: 5, kind: output, shape index: {}]
  %s6 = sld [smem:[#allocation0]]
  $region30: #{block_forward.8} parent=0
    _
  %s8 = ssub.s32 1, %s6
  %s9 = scalar_select 0, %s8, %s6
  // Predicated region
  $region2: #{block_forward.8} parent=0 // pred_check
    _
  $region3: #{block_forward.8} parent=0 // pred_check_branch
    %11 = sbr.rel (0) target = $region5
  $region4: #{block_forward.8} parent=0 // pred_region
    _
  $region5: #{block_forward.8} parent=0 // pred_fallthru
    _
  // Predicated region
  $region6: #{block_forward.8} parent=0 // pred_check
    _
  $region7: #{block_forward.8} parent=0 // pred_check_branch
    %13 = sbr.rel (0) target = $region9
  $region8: #{block_forward.8} parent=0 // pred_region
    _
  $region9: #{block_forward.8} parent=0 // pred_fallthru
    _
  // Predicated region
  $region10: #{block_forward.8} parent=0 // pred_check
    _
  $region11: #{block_forward.8} parent=0 // pred_check_branch
    %15 = sbr.rel (0) target = $region13
  $region12: #{block_forward.8} parent=0 // pred_region
    _
  $region13: #{block_forward.8} parent=0 // pred_fallthru
    _
  // Predicated region
  $region14: #{block_forward.8} parent=0 // pred_check
    _
  $region15: #{block_forward.8} parent=0 // pred_check_branch
    %17 = sbr.rel (0) target = $region17
  $region16: #{block_forward.8} parent=0 // pred_region
    _
  $region17: #{block_forward.8} parent=0 // pred_fallthru
    _
  // Predicated region
  $region18: #{block_forward.8} parent=0 // pred_check
    _
  $region19: #{block_forward.8} parent=0 // pred_check_branch
    %19 = sbr.rel (0) target = $region21
  $region20: #{block_forward.8} parent=0 // pred_region
    _
  $region21: #{block_forward.8} parent=0 // pred_fallthru
    _
  %v21 = vld [vmem:[%s0] sm:$0xf]
  %v22 = vld [vmem:[%s0 + $0x4] sm:$0xf]
  %v23 = vld [vmem:[%s0 + $0x8] sm:$0xf]
  %v24 = vld [vmem:[%s0 + $0xc] sm:$0xf]
  %v25 = vld [vmem:[%s0 + $0x10] sm:$0xf]
  %v26 = vld [vmem:[%s0 + $0x14] sm:$0xf]
  %v27 = vld [vmem:[%s0 + $0x18] sm:$0xf]
  %v28 = vld [vmem:[%s0 + $0x1c] sm:$0xf]
  %v29 = vld [vmem:[%s0 + $0x20] sm:$0xf]
  %v30 = vld [vmem:[%s0 + $0x24] sm:$0xf]
  %v31 = vld [vmem:[%s0 + $0x28] sm:$0xf]
  %v32 = vld [vmem:[%s0 + $0x2c] sm:$0xf]
  %v33 = vld [vmem:[%s0 + $0x30] sm:$0xf]
  %v34 = vld [vmem:[%s0 + $0x34] sm:$0xf]
  %v35 = vld [vmem:[%s0 + $0x38] sm:$0xf]
  %v36 = vld [vmem:[%s0 + $0x3c] sm:$0xf]
  %v37 = vunpack.c.l.bf16 %v21
  %v38 = vunpack.c.l.bf16 %v22
  %v39 = vunpack.c.l.bf16 %v23
  %v40 = vunpack.c.l.bf16 %v24
  %v41 = vunpack.c.l.bf16 %v25
  %v42 = vunpack.c.l.bf16 %v26
  %v43 = vunpack.c.l.bf16 %v27
  %v44 = vunpack.c.l.bf16 %v28
  %v45 = vunpack.c.l.bf16 %v29
  %v46 = vunpack.c.l.bf16 %v30
  %v47 = vunpack.c.l.bf16 %v31
  %v48 = vunpack.c.l.bf16 %v32
  %v49 = vunpack.c.l.bf16 %v33
  %v50 = vunpack.c.l.bf16 %v34
  %v51 = vunpack.c.l.bf16 %v35
  %v52 = vunpack.c.l.bf16 %v36
  %53 = vadd.xlane.f32.xlu0 %v37
  %v54 = vpop.xlane.xlu0 %53
  %55 = vadd.xlane.f32.xlu0 %v38
  %v56 = vpop.xlane.xlu0 %55
  %57 = vadd.xlane.f32.xlu0 %v39
  %v58 = vpop.xlane.xlu0 %57
  %59 = vadd.xlane.f32.xlu0 %v40
  %v60 = vpop.xlane.xlu0 %59
  %61 = vadd.xlane.f32.xlu0 %v41
  %v62 = vpop.xlane.xlu0 %61
  %63 = vadd.xlane.f32.xlu0 %v42
  %v64 = vpop.xlane.xlu0 %63
  %65 = vadd.xlane.f32.xlu0 %v43
  %v66 = vpop.xlane.xlu0 %65
  %67 = vadd.xlane.f32.xlu0 %v44
  %v68 = vpop.xlane.xlu0 %67
  %69 = vadd.xlane.f32.xlu0 %v45
  %v70 = vpop.xlane.xlu0 %69
  %71 = vadd.xlane.f32.xlu0 %v46
  %v72 = vpop.xlane.xlu0 %71
  %73 = vadd.xlane.f32.xlu0 %v47
  %v74 = vpop.xlane.xlu0 %73
  %75 = vadd.xlane.f32.xlu0 %v48
  %v76 = vpop.xlane.xlu0 %75
  %77 = vadd.xlane.f32.xlu0 %v49
  %v78 = vpop.xlane.xlu0 %77
  %79 = vadd.xlane.f32.xlu0 %v50
  %v80 = vpop.xlane.xlu0 %79
  %81 = vadd.xlane.f32.xlu0 %v51
  %v82 = vpop.xlane.xlu0 %81
  %83 = vadd.xlane.f32.xlu0 %v52
  %v84 = vpop.xlane.xlu0 %83
  %v85 = vrcp.pop 128.0
  %v86 = vmul.f32 %v54, %v85
  %v87 = vmul.f32 %v56, %v85
  %v88 = vmul.f32 %v58, %v85
  %v89 = vmul.f32 %v60, %v85
  %v90 = vmul.f32 %v62, %v85
  %v91 = vmul.f32 %v64, %v85
  %v92 = vmul.f32 %v66, %v85
  %v93 = vmul.f32 %v68, %v85
  %v94 = vmul.f32 %v70, %v85
  %v95 = vmul.f32 %v72, %v85
  %v96 = vmul.f32 %v74, %v85
  %v97 = vmul.f32 %v76, %v85
  %v98 = vmul.f32 %v78, %v85
  %v99 = vmul.f32 %v80, %v85
  %v100 = vmul.f32 %v82, %v85
  %v101 = vmul.f32 %v84, %v85
  %v102 = vsub.f32 %v37, %v86
  %v103 = vsub.f32 %v38, %v87
  %v104 = vsub.f32 %v39, %v88
  %v105 = vsub.f32 %v40, %v89
  %v106 = vsub.f32 %v41, %v90
  %v107 = vsub.f32 %v42, %v91
  %v108 = vsub.f32 %v43, %v92
  %v109 = vsub.f32 %v44, %v93
  %v110 = vsub.f32 %v45, %v94
  %v111 = vsub.f32 %v46, %v95
  %v112 = vsub.f32 %v47, %v96
  %v113 = vsub.f32 %v48, %v97
  %v114 = vsub.f32 %v49, %v98
  %v115 = vsub.f32 %v50, %v99
  %v116 = vsub.f32 %v51, %v100
  %v117 = vsub.f32 %v52, %v101
  %v118 = vmul.f32 %v102, %v102
  %v119 = vmul.f32 %v103, %v103
  %v120 = vmul.f32 %v104, %v104
  %v121 = vmul.f32 %v105, %v105
  %v122 = vmul.f32 %v106, %v106
  %v123 = vmul.f32 %v107, %v107
  %v124 = vmul.f32 %v108, %v108
  %v125 = vmul.f32 %v109, %v109
  %v126 = vmul.f32 %v110, %v110
  %v127 = vmul.f32 %v111, %v111
  %v128 = vmul.f32 %v112, %v112
  %v129 = vmul.f32 %v113, %v113
  %v130 = vmul.f32 %v114, %v114
  %v131 = vmul.f32 %v115, %v115
  %v132 = vmul.f32 %v116, %v116
  %v133 = vmul.f32 %v117, %v117
  %134 = vadd.xlane.f32.xlu0 %v118
  %v135 = vpop.xlane.xlu0 %134
  %136 = vadd.xlane.f32.xlu0 %v119
  %v137 = vpop.xlane.xlu0 %136
  %138 = vadd.xlane.f32.xlu0 %v120
  %v139 = vpop.xlane.xlu0 %138
  %140 = vadd.xlane.f32.xlu0 %v121
  %v141 = vpop.xlane.xlu0 %140
  %142 = vadd.xlane.f32.xlu0 %v122
  %v143 = vpop.xlane.xlu0 %142
  %144 = vadd.xlane.f32.xlu0 %v123
  %v145 = vpop.xlane.xlu0 %144
  %146 = vadd.xlane.f32.xlu0 %v124
  %v147 = vpop.xlane.xlu0 %146
  %148 = vadd.xlane.f32.xlu0 %v125
  %v149 = vpop.xlane.xlu0 %148
  %150 = vadd.xlane.f32.xlu0 %v126
  %v151 = vpop.xlane.xlu0 %150
  %152 = vadd.xlane.f32.xlu0 %v127
  %v153 = vpop.xlane.xlu0 %152
  %154 = vadd.xlane.f32.xlu0 %v128
  %v155 = vpop.xlane.xlu0 %154
  %156 = vadd.xlane.f32.xlu0 %v129
  %v157 = vpop.xlane.xlu0 %156
  %158 = vadd.xlane.f32.xlu0 %v130
  %v159 = vpop.xlane.xlu0 %158
  %160 = vadd.xlane.f32.xlu0 %v131
  %v161 = vpop.xlane.xlu0 %160
  %162 = vadd.xlane.f32.xlu0 %v132
  %v163 = vpop.xlane.xlu0 %162
  %164 = vadd.xlane.f32.xlu0 %v133
  %v165 = vpop.xlane.xlu0 %164
  %v166 = vmul.f32 %v135, %v85
  %v167 = vmul.f32 %v137, %v85
  %v168 = vmul.f32 %v139, %v85
  %v169 = vmul.f32 %v141, %v85
  %v170 = vmul.f32 %v143, %v85
  %v171 = vmul.f32 %v145, %v85
  %v172 = vmul.f32 %v147, %v85
  %v173 = vmul.f32 %v149, %v85
  %v174 = vmul.f32 %v151, %v85
  %v175 = vmul.f32 %v153, %v85
  %v176 = vmul.f32 %v155, %v85
  %v177 = vmul.f32 %v157, %v85
  %v178 = vmul.f32 %v159, %v85
  %v179 = vmul.f32 %v161, %v85
  %v180 = vmul.f32 %v163, %v85
  %v181 = vmul.f32 %v165, %v85
  %v182 = vadd.f32 %v166, 1e-06
  %v183 = vadd.f32 %v167, 1e-06
  %v184 = vadd.f32 %v168, 1e-06
  %v185 = vadd.f32 %v169, 1e-06
  %v186 = vadd.f32 %v170, 1e-06
  %v187 = vadd.f32 %v171, 1e-06
  %v188 = vadd.f32 %v172, 1e-06
  %v189 = vadd.f32 %v173, 1e-06
  %v190 = vadd.f32 %v174, 1e-06
  %v191 = vadd.f32 %v175, 1e-06
  %v192 = vadd.f32 %v176, 1e-06
  %v193 = vadd.f32 %v177, 1e-06
  %v194 = vadd.f32 %v178, 1e-06
  %v195 = vadd.f32 %v179, 1e-06
  %v196 = vadd.f32 %v180, 1e-06
  %v197 = vadd.f32 %v181, 1e-06
  %v198 = vrsqrt.pop %v182
  %v199 = vrsqrt.pop %v183
  %v200 = vrsqrt.pop %v184
  %v201 = vrsqrt.pop %v185
  %v202 = vrsqrt.pop %v186
  %v203 = vrsqrt.pop %v187
  %v204 = vrsqrt.pop %v188
  %v205 = vrsqrt.pop %v189
  %v206 = vrsqrt.pop %v190
  %v207 = vrsqrt.pop %v191
  %v208 = vrsqrt.pop %v192
  %v209 = vrsqrt.pop %v193
  %v210 = vrsqrt.pop %v194
  %v211 = vrsqrt.pop %v195
  %v212 = vrsqrt.pop %v196
  %v213 = vrsqrt.pop %v197
  %v214 = vmul.f32 %v102, %v198
  %v215 = vmul.f32 %v103, %v199
  %v216 = vmul.f32 %v104, %v200
  %v217 = vmul.f32 %v105, %v201
  %v218 = vmul.f32 %v106, %v202
  %v219 = vmul.f32 %v107, %v203
  %v220 = vmul.f32 %v108, %v204
  %v221 = vmul.f32 %v109, %v205
  %v222 = vmul.f32 %v110, %v206
  %v223 = vmul.f32 %v111, %v207
  %v224 = vmul.f32 %v112, %v208
  %v225 = vmul.f32 %v113, %v209
  %v226 = vmul.f32 %v114, %v210
  %v227 = vmul.f32 %v115, %v211
  %v228 = vmul.f32 %v116, %v212
  %v229 = vmul.f32 %v117, %v213
  %v230 = vld [vmem:[%s1] sm:$0x1]
  %v232 = vlaneseq
  %v233 = vshrl.u32 %v232, 7
  %v234 = vsub.s32 0, %v233
  %v235 = vrot.slane %v230, %v234
  %v237 = vmul.f32 %v214, %v235
  %v238 = vmul.f32 %v215, %v235
  %v239 = vmul.f32 %v216, %v235
  %v240 = vmul.f32 %v217, %v235
  %v241 = vmul.f32 %v218, %v235
  %v242 = vmul.f32 %v219, %v235
  %v243 = vmul.f32 %v220, %v235
  %v244 = vmul.f32 %v221, %v235
  %v245 = vmul.f32 %v222, %v235
  %v246 = vmul.f32 %v223, %v235
  %v247 = vmul.f32 %v224, %v235
  %v248 = vmul.f32 %v225, %v235
  %v249 = vmul.f32 %v226, %v235
  %v250 = vmul.f32 %v227, %v235
  %v251 = vmul.f32 %v228, %v235
  %v252 = vmul.f32 %v229, %v235
  %v253 = vld [vmem:[%s2] sm:$0x1]
  %v255 = vlaneseq
  %v256 = vshrl.u32 %v255, 7
  %v257 = vsub.s32 0, %v256
  %v258 = vrot.slane %v253, %v257
  %v260 = vadd.f32 %v237, %v258
  %v261 = vadd.f32 %v238, %v258
  %v262 = vadd.f32 %v239, %v258
  %v263 = vadd.f32 %v240, %v258
  %v264 = vadd.f32 %v241, %v258
  %v265 = vadd.f32 %v242, %v258
  %v266 = vadd.f32 %v243, %v258
  %v267 = vadd.f32 %v244, %v258
  %v268 = vadd.f32 %v245, %v258
  %v269 = vadd.f32 %v246, %v258
  %v270 = vadd.f32 %v247, %v258
  %v271 = vadd.f32 %v248, %v258
  %v272 = vadd.f32 %v249, %v258
  %v273 = vadd.f32 %v250, %v258
  %v274 = vadd.f32 %v251, %v258
  %v275 = vadd.f32 %v252, %v258
  %v276 = vpack.c.bf16 %v261, %v260
  %v277 = vpack.c.bf16 %v263, %v262
  %v278 = vpack.c.bf16 %v265, %v264
  %v279 = vpack.c.bf16 %v267, %v266
  %v280 = vpack.c.bf16 %v269, %v268
  %v281 = vpack.c.bf16 %v271, %v270
  %v282 = vpack.c.bf16 %v273, %v272
  %v283 = vpack.c.bf16 %v275, %v274
  %v284 = vld [vmem:[%s3] sm:$0xff]
  %v285 = vld [vmem:[%s3 + $0x8] sm:$0xff]
  %v286 = vld [vmem:[%s3 + $0x10] sm:$0xff]
  %v287 = vld [vmem:[%s3 + $0x18] sm:$0xff]
  %v288 = vld [vmem:[%s3 + $0x20] sm:$0xff]
  %v289 = vld [vmem:[%s3 + $0x28] sm:$0xff]
  %v290 = vld [vmem:[%s3 + $0x30] sm:$0xff]
  %v291 = vld [vmem:[%s3 + $0x38] sm:$0xff]
  %v292 = vld [vmem:[%s3 + $0x40] sm:$0xff]
  %v293 = vld [vmem:[%s3 + $0x48] sm:$0xff]
  %v294 = vld [vmem:[%s3 + $0x50] sm:$0xff]
  %v295 = vld [vmem:[%s3 + $0x58] sm:$0xff]
  %v296 = vld [vmem:[%s3 + $0x60] sm:$0xff]
  %v297 = vld [vmem:[%s3 + $0x68] sm:$0xff]
  %v298 = vld [vmem:[%s3 + $0x70] sm:$0xff]
  %v299 = vld [vmem:[%s3 + $0x78] sm:$0xff]
  %v300 = vld [vmem:[%s3 + $0x80] sm:$0xff]
  %v301 = vld [vmem:[%s3 + $0x88] sm:$0xff]
  %v302 = vld [vmem:[%s3 + $0x90] sm:$0xff]
  %v303 = vld [vmem:[%s3 + $0x98] sm:$0xff]
  %v304 = vld [vmem:[%s3 + $0xa0] sm:$0xff]
  %v305 = vld [vmem:[%s3 + $0xa8] sm:$0xff]
  %v306 = vld [vmem:[%s3 + $0xb0] sm:$0xff]
  %v307 = vld [vmem:[%s3 + $0xb8] sm:$0xff]
  %v308 = vld [vmem:[%s3 + $0xc0] sm:$0xff]
  %v309 = vld [vmem:[%s3 + $0xc8] sm:$0xff]
  %v310 = vld [vmem:[%s3 + $0xd0] sm:$0xff]
  %v311 = vld [vmem:[%s3 + $0xd8] sm:$0xff]
  %v312 = vld [vmem:[%s3 + $0xe0] sm:$0xff]
  %v313 = vld [vmem:[%s3 + $0xe8] sm:$0xff]
  %v314 = vld [vmem:[%s3 + $0xf0] sm:$0xff]
  %v315 = vld [vmem:[%s3 + $0xf8] sm:$0xff]
  %v316 = vld [vmem:[%s4] sm:$0xf]
  %v318 = vlaneseq
  %v319 = vshrl.u32 %v318, 7
  %v320 = vsub.s32 0, %v319
  %v321 = vrot.slane %v316, %v320
  %v322 = vlaneseq
  %v323 = vshrl.u32 %v322, 7
  %v324 = vsub.s32 1, %v323
  %v325 = vrot.slane %v316, %v324
  %v326 = vlaneseq
  %v327 = vshrl.u32 %v326, 7
  %v328 = vsub.s32 2, %v327
  %v329 = vrot.slane %v316, %v328
  %v330 = vlaneseq
  %v331 = vshrl.u32 %v330, 7
  %v332 = vsub.s32 3, %v331
  %v333 = vrot.slane %v316, %v332
  %v370 = vunpack.c.l.b16 %v284
  %v371 = vunpack.c.h.b16 %v284
  %v372 = vunpack.c.l.b16 %v285
  %v373 = vunpack.c.h.b16 %v285
  %v374 = vunpack.c.l.b16 %v286
  %v375 = vunpack.c.h.b16 %v286
  %v376 = vunpack.c.l.b16 %v287
  %v377 = vunpack.c.h.b16 %v287
  %v378 = vunpack.c.l.b16 %v288
  %v379 = vunpack.c.h.b16 %v288
  %v380 = vunpack.c.l.b16 %v289
  %v381 = vunpack.c.h.b16 %v289
  %v382 = vunpack.c.l.b16 %v290
  %v383 = vunpack.c.h.b16 %v290
  %v384 = vunpack.c.l.b16 %v291
  %v385 = vunpack.c.h.b16 %v291
  %v386 = vunpack.c.l.b16 %v292
  %v387 = vunpack.c.h.b16 %v292
  %v388 = vunpack.c.l.b16 %v293
  %v389 = vunpack.c.h.b16 %v293
  %v390 = vunpack.c.l.b16 %v294
  %v391 = vunpack.c.h.b16 %v294
  %v392 = vunpack.c.l.b16 %v295
  %v393 = vunpack.c.h.b16 %v295
  %v394 = vunpack.c.l.b16 %v296
  %v395 = vunpack.c.h.b16 %v296
  %v396 = vunpack.c.l.b16 %v297
  %v397 = vunpack.c.h.b16 %v297
  %v398 = vunpack.c.l.b16 %v298
  %v399 = vunpack.c.h.b16 %v298
  %v400 = vunpack.c.l.b16 %v299
  %v401 = vunpack.c.h.b16 %v299
  %v402 = vunpack.c.l.b16 %v300
  %v403 = vunpack.c.h.b16 %v300
  %v404 = vunpack.c.l.b16 %v301
  %v405 = vunpack.c.h.b16 %v301
  %v406 = vunpack.c.l.b16 %v302
  %v407 = vunpack.c.h.b16 %v302
  %v408 = vunpack.c.l.b16 %v303
  %v409 = vunpack.c.h.b16 %v303
  %v410 = vunpack.c.l.b16 %v304
  %v411 = vunpack.c.h.b16 %v304
  %v412 = vunpack.c.l.b16 %v305
  %v413 = vunpack.c.h.b16 %v305
  %v414 = vunpack.c.l.b16 %v306
  %v415 = vunpack.c.h.b16 %v306
  %v416 = vunpack.c.l.b16 %v307
  %v417 = vunpack.c.h.b16 %v307
  %v418 = vunpack.c.l.b16 %v308
  %v419 = vunpack.c.h.b16 %v308
  %v420 = vunpack.c.l.b16 %v309
  %v421 = vunpack.c.h.b16 %v309
  %v422 = vunpack.c.l.b16 %v310
  %v423 = vunpack.c.h.b16 %v310
  %v424 = vunpack.c.l.b16 %v311
  %v425 = vunpack.c.h.b16 %v311
  %v426 = vunpack.c.l.b16 %v312
  %v427 = vunpack.c.h.b16 %v312
  %v428 = vunpack.c.l.b16 %v313
  %v429 = vunpack.c.h.b16 %v313
  %v430 = vunpack.c.l.b16 %v314
  %v431 = vunpack.c.h.b16 %v314
  %v432 = vunpack.c.l.b16 %v315
  %v433 = vunpack.c.h.b16 %v315
  %v434 = vpack.c.b16 %v374, %v370
  %v435 = vpack.c.b16 %v375, %v371
  %v436 = vpack.c.b16 %v376, %v372
  %v437 = vpack.c.b16 %v377, %v373
  %v438 = vpack.c.b16 %v382, %v378
  %v439 = vpack.c.b16 %v383, %v379
  %v440 = vpack.c.b16 %v384, %v380
  %v441 = vpack.c.b16 %v385, %v381
  %v442 = vpack.c.b16 %v390, %v386
  %v443 = vpack.c.b16 %v391, %v387
  %v444 = vpack.c.b16 %v392, %v388
  %v445 = vpack.c.b16 %v393, %v389
  %v446 = vpack.c.b16 %v398, %v394
  %v447 = vpack.c.b16 %v399, %v395
  %v448 = vpack.c.b16 %v400, %v396
  %v449 = vpack.c.b16 %v401, %v397
  %v450 = vpack.c.b16 %v406, %v402
  %v451 = vpack.c.b16 %v407, %v403
  %v452 = vpack.c.b16 %v408, %v404
  %v453 = vpack.c.b16 %v409, %v405
  %v454 = vpack.c.b16 %v414, %v410
  %v455 = vpack.c.b16 %v415, %v411
  %v456 = vpack.c.b16 %v416, %v412
  %v457 = vpack.c.b16 %v417, %v413
  %v458 = vpack.c.b16 %v422, %v418
  %v459 = vpack.c.b16 %v423, %v419
  %v460 = vpack.c.b16 %v424, %v420
  %v461 = vpack.c.b16 %v425, %v421
  %v462 = vpack.c.b16 %v430, %v426
  %v463 = vpack.c.b16 %v431, %v427
  %v464 = vpack.c.b16 %v432, %v428
  %v465 = vpack.c.b16 %v433, %v429
  %498 = vmatprep.subr.bf16.mxu0 %v463
  %499 = vmatpush1.bf16.msra.mxu0 %v462
  %500 = vmatprep.subr.bf16.mxu0 %v459
  %501 = vmatpush1.bf16.msra.mxu0 %v458
  %502 = vmatprep.subr.bf16.mxu0 %v455
  %503 = vmatpush1.bf16.msra.mxu0 %v454
  %504 = vmatprep.subr.bf16.mxu0 %v451
  %505 = vmatpush1.bf16.msra.mxu0 %v450
  %506 = vmatprep.subr.bf16.mxu0 %v447
  %507 = vmatpush1.bf16.msra.mxu0 %v446
  %508 = vmatprep.subr.bf16.mxu0 %v443
  %509 = vmatpush1.bf16.msra.mxu0 %v442
  %510 = vmatprep.subr.bf16.mxu0 %v439
  %511 = vmatpush1.bf16.msra.mxu0 %v438
  %512 = vmatprep.subr.bf16.mxu0 %v435
  %513 = vmatpush1.bf16.msra.mxu0 %v434
  %514 = vmatprep.subr.bf16.mxu0 0
  %515 = vmatpush2.bf16.msra.mxu0 0
  %516 = vmatprep.subr.bf16.mxu0 0
  %517 = vmatpush2.bf16.msra.mxu0 0
  %518 = vmatprep.subr.bf16.mxu0 0
  %519 = vmatpush2.bf16.msra.mxu0 0
  %520 = vmatprep.subr.bf16.mxu0 0
  %521 = vmatpush2.bf16.msra.mxu0 0
  %522 = vmatprep.subr.bf16.mxu0 0
  %523 = vmatpush2.bf16.msra.mxu0 0
  %524 = vmatprep.subr.bf16.mxu0 0
  %525 = vmatpush2.bf16.msra.mxu0 0
  %526 = vmatprep.subr.bf16.mxu0 0
  %527 = vmatpush2.bf16.msra.mxu0 0
  %528 = vmatprep.subr.bf16.mxu0 0
  %529 = vmatpush2.bf16.msra.mxu0 0
  %530 = vmatprep.mubr.bf16.mxu0 0
  %531 = vmatmul.mubr.bf16.gmra.mxu0 %v276
  %v532 = vpop.f32.mrf.mxu0
  %v533 = vadd.f32 %v321, %v532
  %v534 = vpop.f32.mrf.mxu0
  %v535 = vadd.f32 %v325, %v534
  %v536 = vpop.f32.mrf.mxu0
  %v537 = vadd.f32 %v321, %v536
  %v538 = vpop.f32.mrf.mxu0
  %v539 = vadd.f32 %v325, %v538
  %540 = vmatprep.mubr.bf16.mxu0 0
  %541 = vmatmul.mubr.bf16.gmra.mxu0 %v277
  %v542 = vpop.f32.mrf.mxu0
  %v543 = vadd.f32 %v321, %v542
  %v544 = vpop.f32.mrf.mxu0
  %v545 = vadd.f32 %v325, %v544
  %v546 = vpop.f32.mrf.mxu0
  %v547 = vadd.f32 %v321, %v546
  %v548 = vpop.f32.mrf.mxu0
  %v549 = vadd.f32 %v325, %v548
  %550 = vmatprep.mubr.bf16.mxu0 0
  %551 = vmatmul.mubr.bf16.gmra.mxu0 %v278
  %v552 = vpop.f32.mrf.mxu0
  %v553 = vadd.f32 %v321, %v552
  %v554 = vpop.f32.mrf.mxu0
  %v555 = vadd.f32 %v325, %v554
  %v556 = vpop.f32.mrf.mxu0
  %v557 = vadd.f32 %v321, %v556
  %v558 = vpop.f32.mrf.mxu0
  %v559 = vadd.f32 %v325, %v558
  %560 = vmatprep.mubr.bf16.mxu0 0
  %561 = vmatmul.mubr.bf16.gmra.mxu0 %v279
  %v562 = vpop.f32.mrf.mxu0
  %v563 = vadd.f32 %v321, %v562
  %v564 = vpop.f32.mrf.mxu0
  %v565 = vadd.f32 %v325, %v564
  %v566 = vpop.f32.mrf.mxu0
  %v567 = vadd.f32 %v321, %v566
  %v568 = vpop.f32.mrf.mxu0
  %v569 = vadd.f32 %v325, %v568
  %570 = vmatprep.mubr.bf16.mxu0 0
  %571 = vmatmul.mubr.bf16.gmra.mxu0 %v280
  %v572 = vpop.f32.mrf.mxu0
  %v573 = vadd.f32 %v321, %v572
  %v574 = vpop.f32.mrf.mxu0
  %v575 = vadd.f32 %v325, %v574
  %v576 = vpop.f32.mrf.mxu0
  %v577 = vadd.f32 %v321, %v576
  %v578 = vpop.f32.mrf.mxu0
  %v579 = vadd.f32 %v325, %v578
  %580 = vmatprep.mubr.bf16.mxu0 0
  %581 = vmatmul.mubr.bf16.gmra.mxu0 %v281
  %v582 = vpop.f32.mrf.mxu0
  %v583 = vadd.f32 %v321, %v582
  %v584 = vpop.f32.mrf.mxu0
  %v585 = vadd.f32 %v325, %v584
  %v586 = vpop.f32.mrf.mxu0
  %v587 = vadd.f32 %v321, %v586
  %v588 = vpop.f32.mrf.mxu0
  %v589 = vadd.f32 %v325, %v588
  %590 = vmatprep.mubr.bf16.mxu0 0
  %591 = vmatmul.mubr.bf16.gmra.mxu0 %v282
  %v592 = vpop.f32.mrf.mxu0
  %v593 = vadd.f32 %v321, %v592
  %v594 = vpop.f32.mrf.mxu0
  %v595 = vadd.f32 %v325, %v594
  %v596 = vpop.f32.mrf.mxu0
  %v597 = vadd.f32 %v321, %v596
  %v598 = vpop.f32.mrf.mxu0
  %v599 = vadd.f32 %v325, %v598
  %600 = vmatprep.mubr.bf16.mxu0 0
  %601 = vmatmul.mubr.bf16.gmra.mxu0 %v283
  %v602 = vpop.f32.mrf.mxu0
  %v603 = vadd.f32 %v321, %v602
  %v604 = vpop.f32.mrf.mxu0
  %v605 = vadd.f32 %v325, %v604
  %v606 = vpop.f32.mrf.mxu0
  %v607 = vadd.f32 %v321, %v606
  %v608 = vpop.f32.mrf.mxu0
  %v609 = vadd.f32 %v325, %v608
  %610 = vdwg.mxu0
  %611 = vmatprep.subr.bf16.mxu0 %v465
  %612 = vmatpush1.bf16.msra.mxu0 %v464
  %613 = vmatprep.subr.bf16.mxu0 %v461
  %614 = vmatpush1.bf16.msra.mxu0 %v460
  %615 = vmatprep.subr.bf16.mxu0 %v457
  %616 = vmatpush1.bf16.msra.mxu0 %v456
  %617 = vmatprep.subr.bf16.mxu0 %v453
  %618 = vmatpush1.bf16.msra.mxu0 %v452
  %619 = vmatprep.subr.bf16.mxu0 %v449
  %620 = vmatpush1.bf16.msra.mxu0 %v448
  %621 = vmatprep.subr.bf16.mxu0 %v445
  %622 = vmatpush1.bf16.msra.mxu0 %v444
  %623 = vmatprep.subr.bf16.mxu0 %v441
  %624 = vmatpush1.bf16.msra.mxu0 %v440
  %625 = vmatprep.subr.bf16.mxu0 %v437
  %626 = vmatpush1.bf16.msra.mxu0 %v436
  %627 = vmatprep.subr.bf16.mxu0 0
  %628 = vmatpush2.bf16.msra.mxu0 0
  %629 = vmatprep.subr.bf16.mxu0 0
  %630 = vmatpush2.bf16.msra.mxu0 0
  %631 = vmatprep.subr.bf16.mxu0 0
  %632 = vmatpush2.bf16.msra.mxu0 0
  %633 = vmatprep.subr.bf16.mxu0 0
  %634 = vmatpush2.bf16.msra.mxu0 0
  %635 = vmatprep.subr.bf16.mxu0 0
  %636 = vmatpush2.bf16.msra.mxu0 0
  %637 = vmatprep.subr.bf16.mxu0 0
  %638 = vmatpush2.bf16.msra.mxu0 0
  %639 = vmatprep.subr.bf16.mxu0 0
  %640 = vmatpush2.bf16.msra.mxu0 0
  %641 = vmatprep.subr.bf16.mxu0 0
  %642 = vmatpush2.bf16.msra.mxu0 0
  %643 = vmatprep.mubr.bf16.mxu0 0
  %644 = vmatmul.mubr.bf16.gmra.mxu0 %v276
  %v645 = vpop.f32.mrf.mxu0
  %v646 = vadd.f32 %v329, %v645
  %v647 = vpop.f32.mrf.mxu0
  %v648 = vadd.f32 %v333, %v647
  %v649 = vpop.f32.mrf.mxu0
  %v650 = vadd.f32 %v329, %v649
  %v651 = vpop.f32.mrf.mxu0
  %v652 = vadd.f32 %v333, %v651
  %653 = vmatprep.mubr.bf16.mxu0 0
  %654 = vmatmul.mubr.bf16.gmra.mxu0 %v277
  %v655 = vpop.f32.mrf.mxu0
  %v656 = vadd.f32 %v329, %v655
  %v657 = vpop.f32.mrf.mxu0
  %v658 = vadd.f32 %v333, %v657
  %v659 = vpop.f32.mrf.mxu0
  %v660 = vadd.f32 %v329, %v659
  %v661 = vpop.f32.mrf.mxu0
  %v662 = vadd.f32 %v333, %v661
  %663 = vmatprep.mubr.bf16.mxu0 0
  %664 = vmatmul.mubr.bf16.gmra.mxu0 %v278
  %v665 = vpop.f32.mrf.mxu0
  %v666 = vadd.f32 %v329, %v665
  %v667 = vpop.f32.mrf.mxu0
  %v668 = vadd.f32 %v333, %v667
  %v669 = vpop.f32.mrf.mxu0
  %v670 = vadd.f32 %v329, %v669
  %v671 = vpop.f32.mrf.mxu0
  %v672 = vadd.f32 %v333, %v671
  %673 = vmatprep.mubr.bf16.mxu0 0
  %674 = vmatmul.mubr.bf16.gmra.mxu0 %v279
  %v675 = vpop.f32.mrf.mxu0
  %v676 = vadd.f32 %v329, %v675
  %v677 = vpop.f32.mrf.mxu0
  %v678 = vadd.f32 %v333, %v677
  %v679 = vpop.f32.mrf.mxu0
  %v680 = vadd.f32 %v329, %v679
  %v681 = vpop.f32.mrf.mxu0
  %v682 = vadd.f32 %v333, %v681
  %683 = vmatprep.mubr.bf16.mxu0 0
  %684 = vmatmul.mubr.bf16.gmra.mxu0 %v280
  %v685 = vpop.f32.mrf.mxu0
  %v686 = vadd.f32 %v329, %v685
  %v687 = vpop.f32.mrf.mxu0
  %v688 = vadd.f32 %v333, %v687
  %v689 = vpop.f32.mrf.mxu0
  %v690 = vadd.f32 %v329, %v689
  %v691 = vpop.f32.mrf.mxu0
  %v692 = vadd.f32 %v333, %v691
  %693 = vmatprep.mubr.bf16.mxu0 0
  %694 = vmatmul.mubr.bf16.gmra.mxu0 %v281
  %v695 = vpop.f32.mrf.mxu0
  %v696 = vadd.f32 %v329, %v695
  %v697 = vpop.f32.mrf.mxu0
  %v698 = vadd.f32 %v333, %v697
  %v699 = vpop.f32.mrf.mxu0
  %v700 = vadd.f32 %v329, %v699
  %v701 = vpop.f32.mrf.mxu0
  %v702 = vadd.f32 %v333, %v701
  %703 = vmatprep.mubr.bf16.mxu0 0
  %704 = vmatmul.mubr.bf16.gmra.mxu0 %v282
  %v705 = vpop.f32.mrf.mxu0
  %v706 = vadd.f32 %v329, %v705
  %v707 = vpop.f32.mrf.mxu0
  %v708 = vadd.f32 %v333, %v707
  %v709 = vpop.f32.mrf.mxu0
  %v710 = vadd.f32 %v329, %v709
  %v711 = vpop.f32.mrf.mxu0
  %v712 = vadd.f32 %v333, %v711
  %713 = vmatprep.mubr.bf16.mxu0 0
  %714 = vmatmul.mubr.bf16.gmra.mxu0 %v283
  %v715 = vpop.f32.mrf.mxu0
  %v716 = vadd.f32 %v329, %v715
  %v717 = vpop.f32.mrf.mxu0
  %v718 = vadd.f32 %v333, %v717
  %v719 = vpop.f32.mrf.mxu0
  %v720 = vadd.f32 %v329, %v719
  %v721 = vpop.f32.mrf.mxu0
  %v722 = vadd.f32 %v333, %v721
  %723 = vdwg.mxu0
  %v724 = vmul.f32 %v533, %v533
  %v725 = vmul.f32 %v535, %v535
  %v726 = vmul.f32 %v646, %v646
  %v727 = vmul.f32 %v648, %v648
  %v728 = vmul.f32 %v537, %v537
  %v729 = vmul.f32 %v539, %v539
  %v730 = vmul.f32 %v650, %v650
  %v731 = vmul.f32 %v652, %v652
  %v732 = vmul.f32 %v543, %v543
  %v733 = vmul.f32 %v545, %v545
  %v734 = vmul.f32 %v656, %v656
  %v735 = vmul.f32 %v658, %v658
  %v736 = vmul.f32 %v547, %v547
  %v737 = vmul.f32 %v549, %v549
  %v738 = vmul.f32 %v660, %v660
  %v739 = vmul.f32 %v662, %v662
  %v740 = vmul.f32 %v553, %v553
  %v741 = vmul.f32 %v555, %v555
  %v742 = vmul.f32 %v666, %v666
  %v743 = vmul.f32 %v668, %v668
  %v744 = vmul.f32 %v557, %v557
  %v745 = vmul.f32 %v559, %v559
  %v746 = vmul.f32 %v670, %v670
  %v747 = vmul.f32 %v672, %v672
  %v748 = vmul.f32 %v563, %v563
  %v749 = vmul.f32 %v565, %v565
  %v750 = vmul.f32 %v676, %v676
  %v751 = vmul.f32 %v678, %v678
  %v752 = vmul.f32 %v567, %v567
  %v753 = vmul.f32 %v569, %v569
  %v754 = vmul.f32 %v680, %v680
  %v755 = vmul.f32 %v682, %v682
  %v756 = vmul.f32 %v573, %v573
  %v757 = vmul.f32 %v575, %v575
  %v758 = vmul.f32 %v686, %v686
  %v759 = vmul.f32 %v688, %v688
  %v760 = vmul.f32 %v577, %v577
  %v761 = vmul.f32 %v579, %v579
  %v762 = vmul.f32 %v690, %v690
  %v763 = vmul.f32 %v692, %v692
  %v764 = vmul.f32 %v583, %v583
  %v765 = vmul.f32 %v585, %v585
  %v766 = vmul.f32 %v696, %v696
  %v767 = vmul.f32 %v698, %v698
  %v768 = vmul.f32 %v587, %v587
  %v769 = vmul.f32 %v589, %v589
  %v770 = vmul.f32 %v700, %v700
  %v771 = vmul.f32 %v702, %v702
  %v772 = vmul.f32 %v593, %v593
  %v773 = vmul.f32 %v595, %v595
  %v774 = vmul.f32 %v706, %v706
  %v775 = vmul.f32 %v708, %v708
  %v776 = vmul.f32 %v597, %v597
  %v777 = vmul.f32 %v599, %v599
  %v778 = vmul.f32 %v710, %v710
  %v779 = vmul.f32 %v712, %v712
  %v780 = vmul.f32 %v603, %v603
  %v781 = vmul.f32 %v605, %v605
  %v782 = vmul.f32 %v716, %v716
  %v783 = vmul.f32 %v718, %v718
  %v784 = vmul.f32 %v607, %v607
  %v785 = vmul.f32 %v609, %v609
  %v786 = vmul.f32 %v720, %v720
  %v787 = vmul.f32 %v722, %v722
  %v788 = vmul.f32 %v533, %v724
  %v789 = vmul.f32 %v535, %v725
  %v790 = vmul.f32 %v646, %v726
  %v791 = vmul.f32 %v648, %v727
  %v792 = vmul.f32 %v537, %v728
  %v793 = vmul.f32 %v539, %v729
  %v794 = vmul.f32 %v650, %v730
  %v795 = vmul.f32 %v652, %v731
  %v796 = vmul.f32 %v543, %v732
  %v797 = vmul.f32 %v545, %v733
  %v798 = vmul.f32 %v656, %v734
  %v799 = vmul.f32 %v658, %v735
  %v800 = vmul.f32 %v547, %v736
  %v801 = vmul.f32 %v549, %v737
  %v802 = vmul.f32 %v660, %v738
  %v803 = vmul.f32 %v662, %v739
  %v804 = vmul.f32 %v553, %v740
  %v805 = vmul.f32 %v555, %v741
  %v806 = vmul.f32 %v666, %v742
  %v807 = vmul.f32 %v668, %v743
  %v808 = vmul.f32 %v557, %v744
  %v809 = vmul.f32 %v559, %v745
  %v810 = vmul.f32 %v670, %v746
  %v811 = vmul.f32 %v672, %v747
  %v812 = vmul.f32 %v563, %v748
  %v813 = vmul.f32 %v565, %v749
  %v814 = vmul.f32 %v676, %v750
  %v815 = vmul.f32 %v678, %v751
  %v816 = vmul.f32 %v567, %v752
  %v817 = vmul.f32 %v569, %v753
  %v818 = vmul.f32 %v680, %v754
  %v819 = vmul.f32 %v682, %v755
  %v820 = vmul.f32 %v573, %v756
  %v821 = vmul.f32 %v575, %v757
  %v822 = vmul.f32 %v686, %v758
  %v823 = vmul.f32 %v688, %v759
  %v824 = vmul.f32 %v577, %v760
  %v825 = vmul.f32 %v579, %v761
  %v826 = vmul.f32 %v690, %v762
  %v827 = vmul.f32 %v692, %v763
  %v828 = vmul.f32 %v583, %v764
  %v829 = vmul.f32 %v585, %v765
  %v830 = vmul.f32 %v696, %v766
  %v831 = vmul.f32 %v698, %v767
  %v832 = vmul.f32 %v587, %v768
  %v833 = vmul.f32 %v589, %v769
  %v834 = vmul.f32 %v700, %v770
  %v835 = vmul.f32 %v702, %v771
  %v836 = vmul.f32 %v593, %v772
  %v837 = vmul.f32 %v595, %v773
  %v838 = vmul.f32 %v706, %v774
  %v839 = vmul.f32 %v708, %v775
  %v840 = vmul.f32 %v597, %v776
  %v841 = vmul.f32 %v599, %v777
  %v842 = vmul.f32 %v710, %v778
  %v843 = vmul.f32 %v712, %v779
  %v844 = vmul.f32 %v603, %v780
  %v845 = vmul.f32 %v605, %v781
  %v846 = vmul.f32 %v716, %v782
  %v847 = vmul.f32 %v718, %v783
  %v848 = vmul.f32 %v607, %v784
  %v849 = vmul.f32 %v609, %v785
  %v850 = vmul.f32 %v720, %v786
  %v851 = vmul.f32 %v722, %v787
  %v852 = vmul.f32 %v788, 0.044715
  %v853 = vmul.f32 %v789, 0.044715
  %v854 = vmul.f32 %v790, 0.044715
  %v855 = vmul.f32 %v791, 0.044715
  %v856 = vmul.f32 %v792, 0.044715
  %v857 = vmul.f32 %v793, 0.044715
  %v858 = vmul.f32 %v794, 0.044715
  %v859 = vmul.f32 %v795, 0.044715
  %v860 = vmul.f32 %v796, 0.044715
  %v861 = vmul.f32 %v797, 0.044715
  %v862 = vmul.f32 %v798, 0.044715
  %v863 = vmul.f32 %v799, 0.044715
  %v864 = vmul.f32 %v800, 0.044715
  %v865 = vmul.f32 %v801, 0.044715
  %v866 = vmul.f32 %v802, 0.044715
  %v867 = vmul.f32 %v803, 0.044715
  %v868 = vmul.f32 %v804, 0.044715
  %v869 = vmul.f32 %v805, 0.044715
  %v870 = vmul.f32 %v806, 0.044715
  %v871 = vmul.f32 %v807, 0.044715
  %v872 = vmul.f32 %v808, 0.044715
  %v873 = vmul.f32 %v809, 0.044715
  %v874 = vmul.f32 %v810, 0.044715
  %v875 = vmul.f32 %v811, 0.044715
  %v876 = vmul.f32 %v812, 0.044715
  %v877 = vmul.f32 %v813, 0.044715
  %v878 = vmul.f32 %v814, 0.044715
  %v879 = vmul.f32 %v815, 0.044715
  %v880 = vmul.f32 %v816, 0.044715
  %v881 = vmul.f32 %v817, 0.044715
  %v882 = vmul.f32 %v818, 0.044715
  %v883 = vmul.f32 %v819, 0.044715
  %v884 = vmul.f32 %v820, 0.044715
  %v885 = vmul.f32 %v821, 0.044715
  %v886 = vmul.f32 %v822, 0.044715
  %v887 = vmul.f32 %v823, 0.044715
  %v888 = vmul.f32 %v824, 0.044715
  %v889 = vmul.f32 %v825, 0.044715
  %v890 = vmul.f32 %v826, 0.044715
  %v891 = vmul.f32 %v827, 0.044715
  %v892 = vmul.f32 %v828, 0.044715
  %v893 = vmul.f32 %v829, 0.044715
  %v894 = vmul.f32 %v830, 0.044715
  %v895 = vmul.f32 %v831, 0.044715
  %v896 = vmul.f32 %v832, 0.044715
  %v897 = vmul.f32 %v833, 0.044715
  %v898 = vmul.f32 %v834, 0.044715
  %v899 = vmul.f32 %v835, 0.044715
  %v900 = vmul.f32 %v836, 0.044715
  %v901 = vmul.f32 %v837, 0.044715
  %v902 = vmul.f32 %v838, 0.044715
  %v903 = vmul.f32 %v839, 0.044715
  %v904 = vmul.f32 %v840, 0.044715
  %v905 = vmul.f32 %v841, 0.044715
  %v906 = vmul.f32 %v842, 0.044715
  %v907 = vmul.f32 %v843, 0.044715
  %v908 = vmul.f32 %v844, 0.044715
  %v909 = vmul.f32 %v845, 0.044715
  %v910 = vmul.f32 %v846, 0.044715
  %v911 = vmul.f32 %v847, 0.044715
  %v912 = vmul.f32 %v848, 0.044715
  %v913 = vmul.f32 %v849, 0.044715
  %v914 = vmul.f32 %v850, 0.044715
  %v915 = vmul.f32 %v851, 0.044715
  %v916 = vadd.f32 %v533, %v852
  %v917 = vadd.f32 %v535, %v853
  %v918 = vadd.f32 %v646, %v854
  %v919 = vadd.f32 %v648, %v855
  %v920 = vadd.f32 %v537, %v856
  %v921 = vadd.f32 %v539, %v857
  %v922 = vadd.f32 %v650, %v858
  %v923 = vadd.f32 %v652, %v859
  %v924 = vadd.f32 %v543, %v860
  %v925 = vadd.f32 %v545, %v861
  %v926 = vadd.f32 %v656, %v862
  %v927 = vadd.f32 %v658, %v863
  %v928 = vadd.f32 %v547, %v864
  %v929 = vadd.f32 %v549, %v865
  %v930 = vadd.f32 %v660, %v866
  %v931 = vadd.f32 %v662, %v867
  %v932 = vadd.f32 %v553, %v868
  %v933 = vadd.f32 %v555, %v869
  %v934 = vadd.f32 %v666, %v870
  %v935 = vadd.f32 %v668, %v871
  %v936 = vadd.f32 %v557, %v872
  %v937 = vadd.f32 %v559, %v873
  %v938 = vadd.f32 %v670, %v874
  %v939 = vadd.f32 %v672, %v875
  %v940 = vadd.f32 %v563, %v876
  %v941 = vadd.f32 %v565, %v877
  %v942 = vadd.f32 %v676, %v878
  %v943 = vadd.f32 %v678, %v879
  %v944 = vadd.f32 %v567, %v880
  %v945 = vadd.f32 %v569, %v881
  %v946 = vadd.f32 %v680, %v882
  %v947 = vadd.f32 %v682, %v883
  %v948 = vadd.f32 %v573, %v884
  %v949 = vadd.f32 %v575, %v885
  %v950 = vadd.f32 %v686, %v886
  %v951 = vadd.f32 %v688, %v887
  %v952 = vadd.f32 %v577, %v888
  %v953 = vadd.f32 %v579, %v889
  %v954 = vadd.f32 %v690, %v890
  %v955 = vadd.f32 %v692, %v891
  %v956 = vadd.f32 %v583, %v892
  %v957 = vadd.f32 %v585, %v893
  %v958 = vadd.f32 %v696, %v894
  %v959 = vadd.f32 %v698, %v895
  %v960 = vadd.f32 %v587, %v896
  %v961 = vadd.f32 %v589, %v897
  %v962 = vadd.f32 %v700, %v898
  %v963 = vadd.f32 %v702, %v899
  %v964 = vadd.f32 %v593, %v900
  %v965 = vadd.f32 %v595, %v901
  %v966 = vadd.f32 %v706, %v902
  %v967 = vadd.f32 %v708, %v903
  %v968 = vadd.f32 %v597, %v904
  %v969 = vadd.f32 %v599, %v905
  %v970 = vadd.f32 %v710, %v906
  %v971 = vadd.f32 %v712, %v907
  %v972 = vadd.f32 %v603, %v908
  %v973 = vadd.f32 %v605, %v909
  %v974 = vadd.f32 %v716, %v910
  %v975 = vadd.f32 %v718, %v911
  %v976 = vadd.f32 %v607, %v912
  %v977 = vadd.f32 %v609, %v913
  %v978 = vadd.f32 %v720, %v914
  %v979 = vadd.f32 %v722, %v915
  %v980 = vmul.f32 %v916, 0.7978846
  %v981 = vmul.f32 %v917, 0.7978846
  %v982 = vmul.f32 %v918, 0.7978846
  %v983 = vmul.f32 %v919, 0.7978846
  %v984 = vmul.f32 %v920, 0.7978846
  %v985 = vmul.f32 %v921, 0.7978846
  %v986 = vmul.f32 %v922, 0.7978846
  %v987 = vmul.f32 %v923, 0.7978846
  %v988 = vmul.f32 %v924, 0.7978846
  %v989 = vmul.f32 %v925, 0.7978846
  %v990 = vmul.f32 %v926, 0.7978846
  %v991 = vmul.f32 %v927, 0.7978846
  %v992 = vmul.f32 %v928, 0.7978846
  %v993 = vmul.f32 %v929, 0.7978846
  %v994 = vmul.f32 %v930, 0.7978846
  %v995 = vmul.f32 %v931, 0.7978846
  %v996 = vmul.f32 %v932, 0.7978846
  %v997 = vmul.f32 %v933, 0.7978846
  %v998 = vmul.f32 %v934, 0.7978846
  %v999 = vmul.f32 %v935, 0.7978846
  %v1000 = vmul.f32 %v936, 0.7978846
  %v1001 = vmul.f32 %v937, 0.7978846
  %v1002 = vmul.f32 %v938, 0.7978846
  %v1003 = vmul.f32 %v939, 0.7978846
  %v1004 = vmul.f32 %v940, 0.7978846
  %v1005 = vmul.f32 %v941, 0.7978846
  %v1006 = vmul.f32 %v942, 0.7978846
  %v1007 = vmul.f32 %v943, 0.7978846
  %v1008 = vmul.f32 %v944, 0.7978846
  %v1009 = vmul.f32 %v945, 0.7978846
  %v1010 = vmul.f32 %v946, 0.7978846
  %v1011 = vmul.f32 %v947, 0.7978846
  %v1012 = vmul.f32 %v948, 0.7978846
  %v1013 = vmul.f32 %v949, 0.7978846
  %v1014 = vmul.f32 %v950, 0.7978846
  %v1015 = vmul.f32 %v951, 0.7978846
  %v1016 = vmul.f32 %v952, 0.7978846
  %v1017 = vmul.f32 %v953, 0.7978846
  %v1018 = vmul.f32 %v954, 0.7978846
  %v1019 = vmul.f32 %v955, 0.7978846
  %v1020 = vmul.f32 %v956, 0.7978846
  %v1021 = vmul.f32 %v957, 0.7978846
  %v1022 = vmul.f32 %v958, 0.7978846
  %v1023 = vmul.f32 %v959, 0.7978846
  %v1024 = vmul.f32 %v960, 0.7978846
  %v1025 = vmul.f32 %v961, 0.7978846
  %v1026 = vmul.f32 %v962, 0.7978846
  %v1027 = vmul.f32 %v963, 0.7978846
  %v1028 = vmul.f32 %v964, 0.7978846
  %v1029 = vmul.f32 %v965, 0.7978846
  %v1030 = vmul.f32 %v966, 0.7978846
  %v1031 = vmul.f32 %v967, 0.7978846
  %v1032 = vmul.f32 %v968, 0.7978846
  %v1033 = vmul.f32 %v969, 0.7978846
  %v1034 = vmul.f32 %v970, 0.7978846
  %v1035 = vmul.f32 %v971, 0.7978846
  %v1036 = vmul.f32 %v972, 0.7978846
  %v1037 = vmul.f32 %v973, 0.7978846
  %v1038 = vmul.f32 %v974, 0.7978846
  %v1039 = vmul.f32 %v975, 0.7978846
  %v1040 = vmul.f32 %v976, 0.7978846
  %v1041 = vmul.f32 %v977, 0.7978846
  %v1042 = vmul.f32 %v978, 0.7978846
  %v1043 = vmul.f32 %v979, 0.7978846
  %v1044 = vtanh.pop %v980
  %v1045 = vtanh.pop %v981
  %v1046 = vtanh.pop %v982
  %v1047 = vtanh.pop %v983
  %v1048 = vtanh.pop %v984
  %v1049 = vtanh.pop %v985
  %v1050 = vtanh.pop %v986
  %v1051 = vtanh.pop %v987
  %v1052 = vtanh.pop %v988
  %v1053 = vtanh.pop %v989
  %v1054 = vtanh.pop %v990
  %v1055 = vtanh.pop %v991
  %v1056 = vtanh.pop %v992
  %v1057 = vtanh.pop %v993
  %v1058 = vtanh.pop %v994
  %v1059 = vtanh.pop %v995
  %v1060 = vtanh.pop %v996
  %v1061 = vtanh.pop %v997
  %v1062 = vtanh.pop %v998
  %v1063 = vtanh.pop %v999
  %v1064 = vtanh.pop %v1000
  %v1065 = vtanh.pop %v1001
  %v1066 = vtanh.pop %v1002
  %v1067 = vtanh.pop %v1003
  %v1068 = vtanh.pop %v1004
  %v1069 = vtanh.pop %v1005
  %v1070 = vtanh.pop %v1006
  %v1071 = vtanh.pop %v1007
  %v1072 = vtanh.pop %v1008
  %v1073 = vtanh.pop %v1009
  %v1074 = vtanh.pop %v1010
  %v1075 = vtanh.pop %v1011
  %v1076 = vtanh.pop %v1012
  %v1077 = vtanh.pop %v1013
  %v1078 = vtanh.pop %v1014
  %v1079 = vtanh.pop %v1015
  %v1080 = vtanh.pop %v1016
  %v1081 = vtanh.pop %v1017
  %v1082 = vtanh.pop %v1018
  %v1083 = vtanh.pop %v1019
  %v1084 = vtanh.pop %v1020
  %v1085 = vtanh.pop %v1021
  %v1086 = vtanh.pop %v1022
  %v1087 = vtanh.pop %v1023
  %v1088 = vtanh.pop %v1024
  %v1089 = vtanh.pop %v1025
  %v1090 = vtanh.pop %v1026
  %v1091 = vtanh.pop %v1027
  %v1092 = vtanh.pop %v1028
  %v1093 = vtanh.pop %v1029
  %v1094 = vtanh.pop %v1030
  %v1095 = vtanh.pop %v1031
  %v1096 = vtanh.pop %v1032
  %v1097 = vtanh.pop %v1033
  %v1098 = vtanh.pop %v1034
  %v1099 = vtanh.pop %v1035
  %v1100 = vtanh.pop %v1036
  %v1101 = vtanh.pop %v1037
  %v1102 = vtanh.pop %v1038
  %v1103 = vtanh.pop %v1039
  %v1104 = vtanh.pop %v1040
  %v1105 = vtanh.pop %v1041
  %v1106 = vtanh.pop %v1042
  %v1107 = vtanh.pop %v1043
  %v1108 = vadd.f32 %v1044, 1.0
  %v1109 = vadd.f32 %v1045, 1.0
  %v1110 = vadd.f32 %v1046, 1.0
  %v1111 = vadd.f32 %v1047, 1.0
  %v1112 = vadd.f32 %v1048, 1.0
  %v1113 = vadd.f32 %v1049, 1.0
  %v1114 = vadd.f32 %v1050, 1.0
  %v1115 = vadd.f32 %v1051, 1.0
  %v1116 = vadd.f32 %v1052, 1.0
  %v1117 = vadd.f32 %v1053, 1.0
  %v1118 = vadd.f32 %v1054, 1.0
  %v1119 = vadd.f32 %v1055, 1.0
  %v1120 = vadd.f32 %v1056, 1.0
  %v1121 = vadd.f32 %v1057, 1.0
  %v1122 = vadd.f32 %v1058, 1.0
  %v1123 = vadd.f32 %v1059, 1.0
  %v1124 = vadd.f32 %v1060, 1.0
  %v1125 = vadd.f32 %v1061, 1.0
  %v1126 = vadd.f32 %v1062, 1.0
  %v1127 = vadd.f32 %v1063, 1.0
  %v1128 = vadd.f32 %v1064, 1.0
  %v1129 = vadd.f32 %v1065, 1.0
  %v1130 = vadd.f32 %v1066, 1.0
  %v1131 = vadd.f32 %v1067, 1.0
  %v1132 = vadd.f32 %v1068, 1.0
  %v1133 = vadd.f32 %v1069, 1.0
  %v1134 = vadd.f32 %v1070, 1.0
  %v1135 = vadd.f32 %v1071, 1.0
  %v1136 = vadd.f32 %v1072, 1.0
  %v1137 = vadd.f32 %v1073, 1.0
  %v1138 = vadd.f32 %v1074, 1.0
  %v1139 = vadd.f32 %v1075, 1.0
  %v1140 = vadd.f32 %v1076, 1.0
  %v1141 = vadd.f32 %v1077, 1.0
  %v1142 = vadd.f32 %v1078, 1.0
  %v1143 = vadd.f32 %v1079, 1.0
  %v1144 = vadd.f32 %v1080, 1.0
  %v1145 = vadd.f32 %v1081, 1.0
  %v1146 = vadd.f32 %v1082, 1.0
  %v1147 = vadd.f32 %v1083, 1.0
  %v1148 = vadd.f32 %v1084, 1.0
  %v1149 = vadd.f32 %v1085, 1.0
  %v1150 = vadd.f32 %v1086, 1.0
  %v1151 = vadd.f32 %v1087, 1.0
  %v1152 = vadd.f32 %v1088, 1.0
  %v1153 = vadd.f32 %v1089, 1.0
  %v1154 = vadd.f32 %v1090, 1.0
  %v1155 = vadd.f32 %v1091, 1.0
  %v1156 = vadd.f32 %v1092, 1.0
  %v1157 = vadd.f32 %v1093, 1.0
  %v1158 = vadd.f32 %v1094, 1.0
  %v1159 = vadd.f32 %v1095, 1.0
  %v1160 = vadd.f32 %v1096, 1.0
  %v1161 = vadd.f32 %v1097, 1.0
  %v1162 = vadd.f32 %v1098, 1.0
  %v1163 = vadd.f32 %v1099, 1.0
  %v1164 = vadd.f32 %v1100, 1.0
  %v1165 = vadd.f32 %v1101, 1.0
  %v1166 = vadd.f32 %v1102, 1.0
  %v1167 = vadd.f32 %v1103, 1.0
  %v1168 = vadd.f32 %v1104, 1.0
  %v1169 = vadd.f32 %v1105, 1.0
  %v1170 = vadd.f32 %v1106, 1.0
  %v1171 = vadd.f32 %v1107, 1.0
  %v1172 = vmul.f32 %v1108, 0.5
  %v1173 = vmul.f32 %v1109, 0.5
  %v1174 = vmul.f32 %v1110, 0.5
  %v1175 = vmul.f32 %v1111, 0.5
  %v1176 = vmul.f32 %v1112, 0.5
  %v1177 = vmul.f32 %v1113, 0.5
  %v1178 = vmul.f32 %v1114, 0.5
  %v1179 = vmul.f32 %v1115, 0.5
  %v1180 = vmul.f32 %v1116, 0.5
  %v1181 = vmul.f32 %v1117, 0.5
  %v1182 = vmul.f32 %v1118, 0.5
  %v1183 = vmul.f32 %v1119, 0.5
  %v1184 = vmul.f32 %v1120, 0.5
  %v1185 = vmul.f32 %v1121, 0.5
  %v1186 = vmul.f32 %v1122, 0.5
  %v1187 = vmul.f32 %v1123, 0.5
  %v1188 = vmul.f32 %v1124, 0.5
  %v1189 = vmul.f32 %v1125, 0.5
  %v1190 = vmul.f32 %v1126, 0.5
  %v1191 = vmul.f32 %v1127, 0.5
  %v1192 = vmul.f32 %v1128, 0.5
  %v1193 = vmul.f32 %v1129, 0.5
  %v1194 = vmul.f32 %v1130, 0.5
  %v1195 = vmul.f32 %v1131, 0.5
  %v1196 = vmul.f32 %v1132, 0.5
  %v1197 = vmul.f32 %v1133, 0.5
  %v1198 = vmul.f32 %v1134, 0.5
  %v1199 = vmul.f32 %v1135, 0.5
  %v1200 = vmul.f32 %v1136, 0.5
  %v1201 = vmul.f32 %v1137, 0.5
  %v1202 = vmul.f32 %v1138, 0.5
  %v1203 = vmul.f32 %v1139, 0.5
  %v1204 = vmul.f32 %v1140, 0.5
  %v1205 = vmul.f32 %v1141, 0.5
  %v1206 = vmul.f32 %v1142, 0.5
  %v1207 = vmul.f32 %v1143, 0.5
  %v1208 = vmul.f32 %v1144, 0.5
  %v1209 = vmul.f32 %v1145, 0.5
  %v1210 = vmul.f32 %v1146, 0.5
  %v1211 = vmul.f32 %v1147, 0.5
  %v1212 = vmul.f32 %v1148, 0.5
  %v1213 = vmul.f32 %v1149, 0.5
  %v1214 = vmul.f32 %v1150, 0.5
  %v1215 = vmul.f32 %v1151, 0.5
  %v1216 = vmul.f32 %v1152, 0.5
  %v1217 = vmul.f32 %v1153, 0.5
  %v1218 = vmul.f32 %v1154, 0.5
  %v1219 = vmul.f32 %v1155, 0.5
  %v1220 = vmul.f32 %v1156, 0.5
  %v1221 = vmul.f32 %v1157, 0.5
  %v1222 = vmul.f32 %v1158, 0.5
  %v1223 = vmul.f32 %v1159, 0.5
  %v1224 = vmul.f32 %v1160, 0.5
  %v1225 = vmul.f32 %v1161, 0.5
  %v1226 = vmul.f32 %v1162, 0.5
  %v1227 = vmul.f32 %v1163, 0.5
  %v1228 = vmul.f32 %v1164, 0.5
  %v1229 = vmul.f32 %v1165, 0.5
  %v1230 = vmul.f32 %v1166, 0.5
  %v1231 = vmul.f32 %v1167, 0.5
  %v1232 = vmul.f32 %v1168, 0.5
  %v1233 = vmul.f32 %v1169, 0.5
  %v1234 = vmul.f32 %v1170, 0.5
  %v1235 = vmul.f32 %v1171, 0.5
  %v1236 = vmul.f32 %v533, %v1172
  %v1237 = vmul.f32 %v535, %v1173
  %v1238 = vmul.f32 %v646, %v1174
  %v1239 = vmul.f32 %v648, %v1175
  %v1240 = vmul.f32 %v537, %v1176
  %v1241 = vmul.f32 %v539, %v1177
  %v1242 = vmul.f32 %v650, %v1178
  %v1243 = vmul.f32 %v652, %v1179
  %v1244 = vmul.f32 %v543, %v1180
  %v1245 = vmul.f32 %v545, %v1181
  %v1246 = vmul.f32 %v656, %v1182
  %v1247 = vmul.f32 %v658, %v1183
  %v1248 = vmul.f32 %v547, %v1184
  %v1249 = vmul.f32 %v549, %v1185
  %v1250 = vmul.f32 %v660, %v1186
  %v1251 = vmul.f32 %v662, %v1187
  %v1252 = vmul.f32 %v553, %v1188
  %v1253 = vmul.f32 %v555, %v1189
  %v1254 = vmul.f32 %v666, %v1190
  %v1255 = vmul.f32 %v668, %v1191
  %v1256 = vmul.f32 %v557, %v1192
  %v1257 = vmul.f32 %v559, %v1193
  %v1258 = vmul.f32 %v670, %v1194
  %v1259 = vmul.f32 %v672, %v1195
  %v1260 = vmul.f32 %v563, %v1196
  %v1261 = vmul.f32 %v565, %v1197
  %v1262 = vmul.f32 %v676, %v1198
  %v1263 = vmul.f32 %v678, %v1199
  %v1264 = vmul.f32 %v567, %v1200
  %v1265 = vmul.f32 %v569, %v1201
  %v1266 = vmul.f32 %v680, %v1202
  %v1267 = vmul.f32 %v682, %v1203
  %v1268 = vmul.f32 %v573, %v1204
  %v1269 = vmul.f32 %v575, %v1205
  %v1270 = vmul.f32 %v686, %v1206
  %v1271 = vmul.f32 %v688, %v1207
  %v1272 = vmul.f32 %v577, %v1208
  %v1273 = vmul.f32 %v579, %v1209
  %v1274 = vmul.f32 %v690, %v1210
  %v1275 = vmul.f32 %v692, %v1211
  %v1276 = vmul.f32 %v583, %v1212
  %v1277 = vmul.f32 %v585, %v1213
  %v1278 = vmul.f32 %v696, %v1214
  %v1279 = vmul.f32 %v698, %v1215
  %v1280 = vmul.f32 %v587, %v1216
  %v1281 = vmul.f32 %v589, %v1217
  %v1282 = vmul.f32 %v700, %v1218
  %v1283 = vmul.f32 %v702, %v1219
  %v1284 = vmul.f32 %v593, %v1220
  %v1285 = vmul.f32 %v595, %v1221
  %v1286 = vmul.f32 %v706, %v1222
  %v1287 = vmul.f32 %v708, %v1223
  %v1288 = vmul.f32 %v597, %v1224
  %v1289 = vmul.f32 %v599, %v1225
  %v1290 = vmul.f32 %v710, %v1226
  %v1291 = vmul.f32 %v712, %v1227
  %v1292 = vmul.f32 %v603, %v1228
  %v1293 = vmul.f32 %v605, %v1229
  %v1294 = vmul.f32 %v716, %v1230
  %v1295 = vmul.f32 %v718, %v1231
  %v1296 = vmul.f32 %v607, %v1232
  %v1297 = vmul.f32 %v609, %v1233
  %v1298 = vmul.f32 %v720, %v1234
  %v1299 = vmul.f32 %v722, %v1235
  %v1300 = vpack.c.bf16 %v1240, %v1236
  %v1301 = vpack.c.bf16 %v1241, %v1237
  %v1302 = vpack.c.bf16 %v1242, %v1238
  %v1303 = vpack.c.bf16 %v1243, %v1239
  %v1304 = vpack.c.bf16 %v1248, %v1244
  %v1305 = vpack.c.bf16 %v1249, %v1245
  %v1306 = vpack.c.bf16 %v1250, %v1246
  %v1307 = vpack.c.bf16 %v1251, %v1247
  %v1308 = vpack.c.bf16 %v1256, %v1252
  %v1309 = vpack.c.bf16 %v1257, %v1253
  %v1310 = vpack.c.bf16 %v1258, %v1254
  %v1311 = vpack.c.bf16 %v1259, %v1255
  %v1312 = vpack.c.bf16 %v1264, %v1260
  %v1313 = vpack.c.bf16 %v1265, %v1261
  %v1314 = vpack.c.bf16 %v1266, %v1262
  %v1315 = vpack.c.bf16 %v1267, %v1263
  %v1316 = vpack.c.bf16 %v1272, %v1268
  %v1317 = vpack.c.bf16 %v1273, %v1269
  %v1318 = vpack.c.bf16 %v1274, %v1270
  %v1319 = vpack.c.bf16 %v1275, %v1271
  %v1320 = vpack.c.bf16 %v1280, %v1276
  %v1321 = vpack.c.bf16 %v1281, %v1277
  %v1322 = vpack.c.bf16 %v1282, %v1278
  %v1323 = vpack.c.bf16 %v1283, %v1279
  %v1324 = vpack.c.bf16 %v1288, %v1284
  %v1325 = vpack.c.bf16 %v1289, %v1285
  %v1326 = vpack.c.bf16 %v1290, %v1286
  %v1327 = vpack.c.bf16 %v1291, %v1287
  %v1328 = vpack.c.bf16 %v1296, %v1292
  %v1329 = vpack.c.bf16 %v1297, %v1293
  %v1330 = vpack.c.bf16 %v1298, %v1294
  %v1331 = vpack.c.bf16 %v1299, %v1295
  %v1364 = vunpack.c.l.b16 %v1300
  %v1365 = vunpack.c.l.b16 %v1301
  %v1366 = vunpack.c.l.b16 %v1302
  %v1367 = vunpack.c.l.b16 %v1303
  %v1368 = vunpack.c.h.b16 %v1300
  %v1369 = vunpack.c.h.b16 %v1301
  %v1370 = vunpack.c.h.b16 %v1302
  %v1371 = vunpack.c.h.b16 %v1303
  %v1372 = vunpack.c.l.b16 %v1304
  %v1373 = vunpack.c.l.b16 %v1305
  %v1374 = vunpack.c.l.b16 %v1306
  %v1375 = vunpack.c.l.b16 %v1307
  %v1376 = vunpack.c.h.b16 %v1304
  %v1377 = vunpack.c.h.b16 %v1305
  %v1378 = vunpack.c.h.b16 %v1306
  %v1379 = vunpack.c.h.b16 %v1307
  %v1380 = vunpack.c.l.b16 %v1308
  %v1381 = vunpack.c.l.b16 %v1309
  %v1382 = vunpack.c.l.b16 %v1310
  %v1383 = vunpack.c.l.b16 %v1311
  %v1384 = vunpack.c.h.b16 %v1308
  %v1385 = vunpack.c.h.b16 %v1309
  %v1386 = vunpack.c.h.b16 %v1310
  %v1387 = vunpack.c.h.b16 %v1311
  %v1388 = vunpack.c.l.b16 %v1312
  %v1389 = vunpack.c.l.b16 %v1313
  %v1390 = vunpack.c.l.b16 %v1314
  %v1391 = vunpack.c.l.b16 %v1315
  %v1392 = vunpack.c.h.b16 %v1312
  %v1393 = vunpack.c.h.b16 %v1313
  %v1394 = vunpack.c.h.b16 %v1314
  %v1395 = vunpack.c.h.b16 %v1315
  %v1396 = vunpack.c.l.b16 %v1316
  %v1397 = vunpack.c.l.b16 %v1317
  %v1398 = vunpack.c.l.b16 %v1318
  %v1399 = vunpack.c.l.b16 %v1319
  %v1400 = vunpack.c.h.b16 %v1316
  %v1401 = vunpack.c.h.b16 %v1317
  %v1402 = vunpack.c.h.b16 %v1318
  %v1403 = vunpack.c.h.b16 %v1319
  %v1404 = vunpack.c.l.b16 %v1320
  %v1405 = vunpack.c.l.b16 %v1321
  %v1406 = vunpack.c.l.b16 %v1322
  %v1407 = vunpack.c.l.b16 %v1323
  %v1408 = vunpack.c.h.b16 %v1320
  %v1409 = vunpack.c.h.b16 %v1321
  %v1410 = vunpack.c.h.b16 %v1322
  %v1411 = vunpack.c.h.b16 %v1323
  %v1412 = vunpack.c.l.b16 %v1324
  %v1413 = vunpack.c.l.b16 %v1325
  %v1414 = vunpack.c.l.b16 %v1326
  %v1415 = vunpack.c.l.b16 %v1327
  %v1416 = vunpack.c.h.b16 %v1324
  %v1417 = vunpack.c.h.b16 %v1325
  %v1418 = vunpack.c.h.b16 %v1326
  %v1419 = vunpack.c.h.b16 %v1327
  %v1420 = vunpack.c.l.b16 %v1328
  %v1421 = vunpack.c.l.b16 %v1329
  %v1422 = vunpack.c.l.b16 %v1330
  %v1423 = vunpack.c.l.b16 %v1331
  %v1424 = vunpack.c.h.b16 %v1328
  %v1425 = vunpack.c.h.b16 %v1329
  %v1426 = vunpack.c.h.b16 %v1330
  %v1427 = vunpack.c.h.b16 %v1331
  %v1428 = vpack.c.b16 %v1365, %v1364
  %v1429 = vpack.c.b16 %v1367, %v1366
  %v1430 = vpack.c.b16 %v1369, %v1368
  %v1431 = vpack.c.b16 %v1371, %v1370
  %v1432 = vpack.c.b16 %v1373, %v1372
  %v1433 = vpack.c.b16 %v1375, %v1374
  %v1434 = vpack.c.b16 %v1377, %v1376
  %v1435 = vpack.c.b16 %v1379, %v1378
  %v1436 = vpack.c.b16 %v1381, %v1380
  %v1437 = vpack.c.b16 %v1383, %v1382
  %v1438 = vpack.c.b16 %v1385, %v1384
  %v1439 = vpack.c.b16 %v1387, %v1386
  %v1440 = vpack.c.b16 %v1389, %v1388
  %v1441 = vpack.c.b16 %v1391, %v1390
  %v1442 = vpack.c.b16 %v1393, %v1392
  %v1443 = vpack.c.b16 %v1395, %v1394
  %v1444 = vpack.c.b16 %v1397, %v1396
  %v1445 = vpack.c.b16 %v1399, %v1398
  %v1446 = vpack.c.b16 %v1401, %v1400
  %v1447 = vpack.c.b16 %v1403, %v1402
  %v1448 = vpack.c.b16 %v1405, %v1404
  %v1449 = vpack.c.b16 %v1407, %v1406
  %v1450 = vpack.c.b16 %v1409, %v1408
  %v1451 = vpack.c.b16 %v1411, %v1410
  %v1452 = vpack.c.b16 %v1413, %v1412
  %v1453 = vpack.c.b16 %v1415, %v1414
  %v1454 = vpack.c.b16 %v1417, %v1416
  %v1455 = vpack.c.b16 %v1419, %v1418
  %v1456 = vpack.c.b16 %v1421, %v1420
  %v1457 = vpack.c.b16 %v1423, %v1422
  %v1458 = vpack.c.b16 %v1425, %v1424
  %v1459 = vpack.c.b16 %v1427, %v1426
  %1492 = vst [vmem:[%s5] sm:$0xff] %v1428
  %1493 = vst [vmem:[%s5 + $0x8] sm:$0xff] %v1429
  %1494 = vst [vmem:[%s5 + $0x10] sm:$0xff] %v1430
  %1495 = vst [vmem:[%s5 + $0x18] sm:$0xff] %v1431
  %1496 = vst [vmem:[%s5 + $0x20] sm:$0xff] %v1432
  %1497 = vst [vmem:[%s5 + $0x28] sm:$0xff] %v1433
  %1498 = vst [vmem:[%s5 + $0x30] sm:$0xff] %v1434
  %1499 = vst [vmem:[%s5 + $0x38] sm:$0xff] %v1435
  %1500 = vst [vmem:[%s5 + $0x40] sm:$0xff] %v1436
  %1501 = vst [vmem:[%s5 + $0x48] sm:$0xff] %v1437
  %1502 = vst [vmem:[%s5 + $0x50] sm:$0xff] %v1438
  %1503 = vst [vmem:[%s5 + $0x58] sm:$0xff] %v1439
  %1504 = vst [vmem:[%s5 + $0x60] sm:$0xff] %v1440
  %1505 = vst [vmem:[%s5 + $0x68] sm:$0xff] %v1441
  %1506 = vst [vmem:[%s5 + $0x70] sm:$0xff] %v1442
  %1507 = vst [vmem:[%s5 + $0x78] sm:$0xff] %v1443
  %1508 = vst [vmem:[%s5 + $0x80] sm:$0xff] %v1444
  %1509 = vst [vmem:[%s5 + $0x88] sm:$0xff] %v1445
  %1510 = vst [vmem:[%s5 + $0x90] sm:$0xff] %v1446
  %1511 = vst [vmem:[%s5 + $0x98] sm:$0xff] %v1447
  %1512 = vst [vmem:[%s5 + $0xa0] sm:$0xff] %v1448
  %1513 = vst [vmem:[%s5 + $0xa8] sm:$0xff] %v1449
  %1514 = vst [vmem:[%s5 + $0xb0] sm:$0xff] %v1450
  %1515 = vst [vmem:[%s5 + $0xb8] sm:$0xff] %v1451
  %1516 = vst [vmem:[%s5 + $0xc0] sm:$0xff] %v1452
  %1517 = vst [vmem:[%s5 + $0xc8] sm:$0xff] %v1453
  %1518 = vst [vmem:[%s5 + $0xd0] sm:$0xff] %v1454
  %1519 = vst [vmem:[%s5 + $0xd8] sm:$0xff] %v1455
  %1520 = vst [vmem:[%s5 + $0xe0] sm:$0xff] %v1456
  %1521 = vst [vmem:[%s5 + $0xe8] sm:$0xff] %v1457
  %1522 = vst [vmem:[%s5 + $0xf0] sm:$0xff] %v1458
  %1523 = vst [vmem:[%s5 + $0xf8] sm:$0xff] %v1459
  // Predicated region
  $region22: #{block_forward.8} parent=0 // pred_check
    _
  $region23: #{block_forward.8} parent=0 // pred_check_branch
    %1525 = sbr.rel (0) target = $region25
  $region24: #{block_forward.8} parent=0 // pred_region
    _
  $region25: #{block_forward.8} parent=0 // pred_fallthru
    _
  // Predicated region
  $region26: #{block_forward.8} parent=0 // pred_check
    _
  $region27: #{block_forward.8} parent=0 // pred_check_branch
    %1527 = sbr.rel (0) target = $region29
  $region28: #{block_forward.8} parent=0 // pred_region
    _
  $region29: #{block_forward.8} parent=0 // pred_fallthru
    _

// kernel: block_forward.9
$region0: #{block_forward.9}
  #allocation0 [shape = 'u32[]', space=smem, size = 0x4, offset = 0x4, fixed_abs, tag = 'smem constant byte address 0x4 - core index']
  #allocation1 [shape = 'u32[144,128]{1,0:T(1,128)}', space=vmem, size = 0x12000, scoped, tag = 'internal scratch']
  %s0 = inlined_call_operand.vmem [shape: bf16[128,512], index: 0, kind: input, shape index: {}]
  %s1 = inlined_call_operand.vmem [shape: bf16[512,128], index: 1, kind: input, shape index: {}]
  %s2 = inlined_call_operand.vmem [shape: f32[1,128], index: 2, kind: input, shape index: {}]
  %s3 = inlined_call_operand.vmem [shape: bf16[128,128], index: 3, kind: input, shape index: {}]
  %s4 = inlined_call_operand.hbm [shape: f32[128,128], index: 4, kind: output, shape index: {}]
  %s5 = sld [smem:[#allocation0]]
  $region26: #{block_forward.9} parent=0
    _
  %s7 = ssub.s32 1, %s5
  %s8 = scalar_select 0, %s7, %s5
  $region1: #{block_forward.9} parent=0
    #allocation2 [shape = 'u8[65536]{0}', space=vmem, size = 0x10000, scoped, tag = 'output window, operand 0, single buffered']
    #allocation3 [shape = 's32[1]{0}', space=sflag, size = 0x4, scoped, tag = 'scoped memory for block_forward.9']
    %9 = vsyncpa [#allocation3], 0
    // Predicated region
    $region2: #{block_forward.9} parent=1 // pred_check
      _
    $region3: #{block_forward.9} parent=1 // pred_check_branch
      %11 = sbr.rel (0) target = $region5
    $region4: #{block_forward.9} parent=1 // pred_region
      _
    $region5: #{block_forward.9} parent=1 // pred_fallthru
      _
    // Predicated region
    $region6: #{block_forward.9} parent=1 // pred_check
      _
    $region7: #{block_forward.9} parent=1 // pred_check_branch
      %13 = sbr.rel (0) target = $region9
    $region8: #{block_forward.9} parent=1 // pred_region
      _
    $region9: #{block_forward.9} parent=1 // pred_fallthru
      _
    // Predicated region
    $region10: #{block_forward.9} parent=1 // pred_check
      _
    $region11: #{block_forward.9} parent=1 // pred_check_branch
      %15 = sbr.rel (0) target = $region13
    $region12: #{block_forward.9} parent=1 // pred_region
      _
    $region13: #{block_forward.9} parent=1 // pred_fallthru
      _
    // Predicated region
    $region14: #{block_forward.9} parent=1 // pred_check
      _
    $region15: #{block_forward.9} parent=1 // pred_check_branch
      %17 = sbr.rel (0) target = $region17
    $region16: #{block_forward.9} parent=1 // pred_region
      _
    $region17: #{block_forward.9} parent=1 // pred_fallthru
      _
    %v19 = vld [vmem:[%s0] sm:$0xff]
    %v20 = vld [vmem:[%s0 + $0x8] sm:$0xff]
    %v21 = vld [vmem:[%s0 + $0x10] sm:$0xff]
    %v22 = vld [vmem:[%s0 + $0x18] sm:$0xff]
    %v23 = vld [vmem:[%s0 + $0x20] sm:$0xff]
    %v24 = vld [vmem:[%s0 + $0x28] sm:$0xff]
    %v25 = vld [vmem:[%s0 + $0x30] sm:$0xff]
    %v26 = vld [vmem:[%s0 + $0x38] sm:$0xff]
    %v27 = vld [vmem:[%s0 + $0x40] sm:$0xff]
    %v28 = vld [vmem:[%s0 + $0x48] sm:$0xff]
    %v29 = vld [vmem:[%s0 + $0x50] sm:$0xff]
    %v30 = vld [vmem:[%s0 + $0x58] sm:$0xff]
    %v31 = vld [vmem:[%s0 + $0x60] sm:$0xff]
    %v32 = vld [vmem:[%s0 + $0x68] sm:$0xff]
    %v33 = vld [vmem:[%s0 + $0x70] sm:$0xff]
    %v34 = vld [vmem:[%s0 + $0x78] sm:$0xff]
    %v35 = vld [vmem:[%s0 + $0x80] sm:$0xff]
    %v36 = vld [vmem:[%s0 + $0x88] sm:$0xff]
    %v37 = vld [vmem:[%s0 + $0x90] sm:$0xff]
    %v38 = vld [vmem:[%s0 + $0x98] sm:$0xff]
    %v39 = vld [vmem:[%s0 + $0xa0] sm:$0xff]
    %v40 = vld [vmem:[%s0 + $0xa8] sm:$0xff]
    %v41 = vld [vmem:[%s0 + $0xb0] sm:$0xff]
    %v42 = vld [vmem:[%s0 + $0xb8] sm:$0xff]
    %v43 = vld [vmem:[%s0 + $0xc0] sm:$0xff]
    %v44 = vld [vmem:[%s0 + $0xc8] sm:$0xff]
    %v45 = vld [vmem:[%s0 + $0xd0] sm:$0xff]
    %v46 = vld [vmem:[%s0 + $0xd8] sm:$0xff]
    %v47 = vld [vmem:[%s0 + $0xe0] sm:$0xff]
    %v48 = vld [vmem:[%s0 + $0xe8] sm:$0xff]
    %v49 = vld [vmem:[%s0 + $0xf0] sm:$0xff]
    %v50 = vld [vmem:[%s0 + $0xf8] sm:$0xff]
    %v51 = vld [vmem:[%s1] sm:$0xf]
    %v52 = vld [vmem:[%s1 + $0x4] sm:$0xf]
    %v53 = vld [vmem:[%s1 + $0x8] sm:$0xf]
    %v54 = vld [vmem:[%s1 + $0xc] sm:$0xf]
    %v55 = vld [vmem:[%s1 + $0x10] sm:$0xf]
    %v56 = vld [vmem:[%s1 + $0x14] sm:$0xf]
    %v57 = vld [vmem:[%s1 + $0x18] sm:$0xf]
    %v58 = vld [vmem:[%s1 + $0x1c] sm:$0xf]
    %v59 = vld [vmem:[%s1 + $0x20] sm:$0xf]
    %v60 = vld [vmem:[%s1 + $0x24] sm:$0xf]
    %v61 = vld [vmem:[%s1 + $0x28] sm:$0xf]
    %v62 = vld [vmem:[%s1 + $0x2c] sm:$0xf]
    %v63 = vld [vmem:[%s1 + $0x30] sm:$0xf]
    %v64 = vld [vmem:[%s1 + $0x34] sm:$0xf]
    %v65 = vld [vmem:[%s1 + $0x38] sm:$0xf]
    %v66 = vld [vmem:[%s1 + $0x3c] sm:$0xf]
    %v67 = vld [vmem:[%s1 + $0x40] sm:$0xf]
    %v68 = vld [vmem:[%s1 + $0x44] sm:$0xf]
    %v69 = vld [vmem:[%s1 + $0x48] sm:$0xf]
    %v70 = vld [vmem:[%s1 + $0x4c] sm:$0xf]
    %v71 = vld [vmem:[%s1 + $0x50] sm:$0xf]
    %v72 = vld [vmem:[%s1 + $0x54] sm:$0xf]
    %v73 = vld [vmem:[%s1 + $0x58] sm:$0xf]
    %v74 = vld [vmem:[%s1 + $0x5c] sm:$0xf]
    %v75 = vld [vmem:[%s1 + $0x60] sm:$0xf]
    %v76 = vld [vmem:[%s1 + $0x64] sm:$0xf]
    %v77 = vld [vmem:[%s1 + $0x68] sm:$0xf]
    %v78 = vld [vmem:[%s1 + $0x6c] sm:$0xf]
    %v79 = vld [vmem:[%s1 + $0x70] sm:$0xf]
    %v80 = vld [vmem:[%s1 + $0x74] sm:$0xf]
    %v81 = vld [vmem:[%s1 + $0x78] sm:$0xf]
    %v82 = vld [vmem:[%s1 + $0x7c] sm:$0xf]
    %v83 = vld [vmem:[%s1 + $0x80] sm:$0xf]
    %v84 = vld [vmem:[%s1 + $0x84] sm:$0xf]
    %v85 = vld [vmem:[%s1 + $0x88] sm:$0xf]
    %v86 = vld [vmem:[%s1 + $0x8c] sm:$0xf]
    %v87 = vld [vmem:[%s1 + $0x90] sm:$0xf]
    %v88 = vld [vmem:[%s1 + $0x94] sm:$0xf]
    %v89 = vld [vmem:[%s1 + $0x98] sm:$0xf]
    %v90 = vld [vmem:[%s1 + $0x9c] sm:$0xf]
    %v91 = vld [vmem:[%s1 + $0xa0] sm:$0xf]
    %v92 = vld [vmem:[%s1 + $0xa4] sm:$0xf]
    %v93 = vld [vmem:[%s1 + $0xa8] sm:$0xf]
    %v94 = vld [vmem:[%s1 + $0xac] sm:$0xf]
    %v95 = vld [vmem:[%s1 + $0xb0] sm:$0xf]
    %v96 = vld [vmem:[%s1 + $0xb4] sm:$0xf]
    %v97 = vld [vmem:[%s1 + $0xb8] sm:$0xf]
    %v98 = vld [vmem:[%s1 + $0xbc] sm:$0xf]
    %v99 = vld [vmem:[%s1 + $0xc0] sm:$0xf]
    %v100 = vld [vmem:[%s1 + $0xc4] sm:$0xf]
    %v101 = vld [vmem:[%s1 + $0xc8] sm:$0xf]
    %v102 = vld [vmem:[%s1 + $0xcc] sm:$0xf]
    %v103 = vld [vmem:[%s1 + $0xd0] sm:$0xf]
    %v104 = vld [vmem:[%s1 + $0xd4] sm:$0xf]
    %v105 = vld [vmem:[%s1 + $0xd8] sm:$0xf]
    %v106 = vld [vmem:[%s1 + $0xdc] sm:$0xf]
    %v107 = vld [vmem:[%s1 + $0xe0] sm:$0xf]
    %v108 = vld [vmem:[%s1 + $0xe4] sm:$0xf]
    %v109 = vld [vmem:[%s1 + $0xe8] sm:$0xf]
    %v110 = vld [vmem:[%s1 + $0xec] sm:$0xf]
    %v111 = vld [vmem:[%s1 + $0xf0] sm:$0xf]
    %v112 = vld [vmem:[%s1 + $0xf4] sm:$0xf]
    %v113 = vld [vmem:[%s1 + $0xf8] sm:$0xf]
    %v114 = vld [vmem:[%s1 + $0xfc] sm:$0xf]
    %v115 = vld [vmem:[%s2] sm:$0x1]
    %v117 = vlaneseq
    %v118 = vshrl.u32 %v117, 7
    %v119 = vsub.s32 0, %v118
    %v120 = vrot.slane %v115, %v119
    %v154 = vunpack.c.l.b16 %v19
    %v155 = vunpack.c.h.b16 %v19
    %v156 = vunpack.c.l.b16 %v20
    %v157 = vunpack.c.h.b16 %v20
    %v158 = vunpack.c.l.b16 %v21
    %v159 = vunpack.c.h.b16 %v21
    %v160 = vunpack.c.l.b16 %v22
    %v161 = vunpack.c.h.b16 %v22
    %v162 = vunpack.c.l.b16 %v23
    %v163 = vunpack.c.h.b16 %v23
    %v164 = vunpack.c.l.b16 %v24
    %v165 = vunpack.c.h.b16 %v24
    %v166 = vunpack.c.l.b16 %v25
    %v167 = vunpack.c.h.b16 %v25
    %v168 = vunpack.c.l.b16 %v26
    %v169 = vunpack.c.h.b16 %v26
    %v170 = vunpack.c.l.b16 %v27
    %v171 = vunpack.c.h.b16 %v27
    %v172 = vunpack.c.l.b16 %v28
    %v173 = vunpack.c.h.b16 %v28
    %v174 = vunpack.c.l.b16 %v29
    %v175 = vunpack.c.h.b16 %v29
    %v176 = vunpack.c.l.b16 %v30
    %v177 = vunpack.c.h.b16 %v30
    %v178 = vunpack.c.l.b16 %v31
    %v179 = vunpack.c.h.b16 %v31
    %v180 = vunpack.c.l.b16 %v32
    %v181 = vunpack.c.h.b16 %v32
    %v182 = vunpack.c.l.b16 %v33
    %v183 = vunpack.c.h.b16 %v33
    %v184 = vunpack.c.l.b16 %v34
    %v185 = vunpack.c.h.b16 %v34
    %v186 = vunpack.c.l.b16 %v35
    %v187 = vunpack.c.h.b16 %v35
    %v188 = vunpack.c.l.b16 %v36
    %v189 = vunpack.c.h.b16 %v36
    %v190 = vunpack.c.l.b16 %v37
    %v191 = vunpack.c.h.b16 %v37
    %v192 = vunpack.c.l.b16 %v38
    %v193 = vunpack.c.h.b16 %v38
    %v194 = vunpack.c.l.b16 %v39
    %v195 = vunpack.c.h.b16 %v39
    %v196 = vunpack.c.l.b16 %v40
    %v197 = vunpack.c.h.b16 %v40
    %v198 = vunpack.c.l.b16 %v41
    %v199 = vunpack.c.h.b16 %v41
    %v200 = vunpack.c.l.b16 %v42
    %v201 = vunpack.c.h.b16 %v42
    %v202 = vunpack.c.l.b16 %v43
    %v203 = vunpack.c.h.b16 %v43
    %v204 = vunpack.c.l.b16 %v44
    %v205 = vunpack.c.h.b16 %v44
    %v206 = vunpack.c.l.b16 %v45
    %v207 = vunpack.c.h.b16 %v45
    %v208 = vunpack.c.l.b16 %v46
    %v209 = vunpack.c.h.b16 %v46
    %v210 = vunpack.c.l.b16 %v47
    %v211 = vunpack.c.h.b16 %v47
    %v212 = vunpack.c.l.b16 %v48
    %v213 = vunpack.c.h.b16 %v48
    %v214 = vunpack.c.l.b16 %v49
    %v215 = vunpack.c.h.b16 %v49
    %v216 = vunpack.c.l.b16 %v50
    %v217 = vunpack.c.h.b16 %v50
    %v218 = vpack.c.b16 %v158, %v154
    %v219 = vpack.c.b16 %v159, %v155
    %v220 = vpack.c.b16 %v160, %v156
    %v221 = vpack.c.b16 %v161, %v157
    %v222 = vpack.c.b16 %v166, %v162
    %v223 = vpack.c.b16 %v167, %v163
    %v224 = vpack.c.b16 %v168, %v164
    %v225 = vpack.c.b16 %v169, %v165
    %v226 = vpack.c.b16 %v174, %v170
    %v227 = vpack.c.b16 %v175, %v171
    %v228 = vpack.c.b16 %v176, %v172
    %v229 = vpack.c.b16 %v177, %v173
    %v230 = vpack.c.b16 %v182, %v178
    %v231 = vpack.c.b16 %v183, %v179
    %v232 = vpack.c.b16 %v184, %v180
    %v233 = vpack.c.b16 %v185, %v181
    %v234 = vpack.c.b16 %v190, %v186
    %v235 = vpack.c.b16 %v191, %v187
    %v236 = vpack.c.b16 %v192, %v188
    %v237 = vpack.c.b16 %v193, %v189
    %v238 = vpack.c.b16 %v198, %v194
    %v239 = vpack.c.b16 %v199, %v195
    %v240 = vpack.c.b16 %v200, %v196
    %v241 = vpack.c.b16 %v201, %v197
    %v242 = vpack.c.b16 %v206, %v202
    %v243 = vpack.c.b16 %v207, %v203
    %v244 = vpack.c.b16 %v208, %v204
    %v245 = vpack.c.b16 %v209, %v205
    %v246 = vpack.c.b16 %v214, %v210
    %v247 = vpack.c.b16 %v215, %v211
    %v248 = vpack.c.b16 %v216, %v212
    %v249 = vpack.c.b16 %v217, %v213
    %v346 = vunpack.c.l.b16 %v51
    %v347 = vunpack.c.l.b16 %v52
    %v348 = vunpack.c.l.b16 %v53
    %v349 = vunpack.c.l.b16 %v54
    %v350 = vunpack.c.l.b16 %v55
    %v351 = vunpack.c.l.b16 %v56
    %v352 = vunpack.c.l.b16 %v57
    %v353 = vunpack.c.l.b16 %v58
    %v354 = vunpack.c.l.b16 %v59
    %v355 = vunpack.c.l.b16 %v60
    %v356 = vunpack.c.l.b16 %v61
    %v357 = vunpack.c.l.b16 %v62
    %v358 = vunpack.c.l.b16 %v63
    %v359 = vunpack.c.l.b16 %v64
    %v360 = vunpack.c.l.b16 %v65
    %v361 = vunpack.c.l.b16 %v66
    %v362 = vunpack.c.l.b16 %v67
    %v363 = vunpack.c.l.b16 %v68
    %v364 = vunpack.c.l.b16 %v69
    %v365 = vunpack.c.l.b16 %v70
    %v366 = vunpack.c.l.b16 %v71
    %v367 = vunpack.c.l.b16 %v72
    %v368 = vunpack.c.l.b16 %v73
    %v369 = vunpack.c.l.b16 %v74
    %v370 = vunpack.c.l.b16 %v75
    %v371 = vunpack.c.l.b16 %v76
    %v372 = vunpack.c.l.b16 %v77
    %v373 = vunpack.c.l.b16 %v78
    %v374 = vunpack.c.l.b16 %v79
    %v375 = vunpack.c.l.b16 %v80
    %v376 = vunpack.c.l.b16 %v81
    %v377 = vunpack.c.l.b16 %v82
    %v378 = vunpack.c.l.b16 %v83
    %v379 = vunpack.c.l.b16 %v84
    %v380 = vunpack.c.l.b16 %v85
    %v381 = vunpack.c.l.b16 %v86
    %v382 = vunpack.c.l.b16 %v87
    %v383 = vunpack.c.l.b16 %v88
    %v384 = vunpack.c.l.b16 %v89
    %v385 = vunpack.c.l.b16 %v90
    %v386 = vunpack.c.l.b16 %v91
    %v387 = vunpack.c.l.b16 %v92
    %v388 = vunpack.c.l.b16 %v93
    %v389 = vunpack.c.l.b16 %v94
    %v390 = vunpack.c.l.b16 %v95
    %v391 = vunpack.c.l.b16 %v96
    %v392 = vunpack.c.l.b16 %v97
    %v393 = vunpack.c.l.b16 %v98
    %v394 = vunpack.c.l.b16 %v99
    %v395 = vunpack.c.l.b16 %v100
    %v396 = vunpack.c.l.b16 %v101
    %v397 = vunpack.c.l.b16 %v102
    %v398 = vunpack.c.l.b16 %v103
    %v399 = vunpack.c.l.b16 %v104
    %v400 = vunpack.c.l.b16 %v105
    %v401 = vunpack.c.l.b16 %v106
    %v402 = vunpack.c.l.b16 %v107
    %v403 = vunpack.c.l.b16 %v108
    %v404 = vunpack.c.l.b16 %v109
    %v405 = vunpack.c.l.b16 %v110
    %v406 = vunpack.c.l.b16 %v111
    %v407 = vunpack.c.l.b16 %v112
    %v408 = vunpack.c.l.b16 %v113
    %v409 = vunpack.c.l.b16 %v114
    %v410 = vpack.c.b16 %v347, %v346
    %v411 = vpack.c.b16 %v349, %v348
    %v412 = vpack.c.b16 %v351, %v350
    %v413 = vpack.c.b16 %v353, %v352
    %v414 = vpack.c.b16 %v355, %v354
    %v415 = vpack.c.b16 %v357, %v356
    %v416 = vpack.c.b16 %v359, %v358
    %v417 = vpack.c.b16 %v361, %v360
    %v418 = vpack.c.b16 %v363, %v362
    %v419 = vpack.c.b16 %v365, %v364
    %v420 = vpack.c.b16 %v367, %v366
    %v421 = vpack.c.b16 %v369, %v368
    %v422 = vpack.c.b16 %v371, %v370
    %v423 = vpack.c.b16 %v373, %v372
    %v424 = vpack.c.b16 %v375, %v374
    %v425 = vpack.c.b16 %v377, %v376
    %v426 = vpack.c.b16 %v379, %v378
    %v427 = vpack.c.b16 %v381, %v380
    %v428 = vpack.c.b16 %v383, %v382
    %v429 = vpack.c.b16 %v385, %v384
    %v430 = vpack.c.b16 %v387, %v386
    %v431 = vpack.c.b16 %v389, %v388
    %v432 = vpack.c.b16 %v391, %v390
    %v433 = vpack.c.b16 %v393, %v392
    %v434 = vpack.c.b16 %v395, %v394
    %v435 = vpack.c.b16 %v397, %v396
    %v436 = vpack.c.b16 %v399, %v398
    %v437 = vpack.c.b16 %v401, %v400
    %v438 = vpack.c.b16 %v403, %v402
    %v439 = vpack.c.b16 %v405, %v404
    %v440 = vpack.c.b16 %v407, %v406
    %v441 = vpack.c.b16 %v409, %v408
    %474 = vmatprep.subr.bf16.mxu0 0
    %475 = vmatpush1.bf16.msra.mxu0 %v417
    %476 = vmatprep.subr.bf16.mxu0 0
    %477 = vmatpush1.bf16.msra.mxu0 %v416
    %478 = vmatprep.subr.bf16.mxu0 0
    %479 = vmatpush1.bf16.msra.mxu0 %v415
    %480 = vmatprep.subr.bf16.mxu0 0
    %481 = vmatpush1.bf16.msra.mxu0 %v414
    %482 = vmatprep.subr.bf16.mxu0 0
    %483 = vmatpush1.bf16.msra.mxu0 %v413
    %484 = vmatprep.subr.bf16.mxu0 0
    %485 = vmatpush1.bf16.msra.mxu0 %v412
    %486 = vmatprep.subr.bf16.mxu0 0
    %487 = vmatpush1.bf16.msra.mxu0 %v411
    %488 = vmatprep.subr.bf16.mxu0 0
    %489 = vmatpush1.bf16.msra.mxu0 %v410
    %490 = vmatprep.subr.bf16.mxu0 0
    %491 = vmatpush2.bf16.msra.mxu0 %v425
    %492 = vmatprep.subr.bf16.mxu0 0
    %493 = vmatpush2.bf16.msra.mxu0 %v424
    %494 = vmatprep.subr.bf16.mxu0 0
    %495 = vmatpush2.bf16.msra.mxu0 %v423
    %496 = vmatprep.subr.bf16.mxu0 0
    %497 = vmatpush2.bf16.msra.mxu0 %v422
    %498 = vmatprep.subr.bf16.mxu0 0
    %499 = vmatpush2.bf16.msra.mxu0 %v421
    %500 = vmatprep.subr.bf16.mxu0 0
    %501 = vmatpush2.bf16.msra.mxu0 %v420
    %502 = vmatprep.subr.bf16.mxu0 0
    %503 = vmatpush2.bf16.msra.mxu0 %v419
    %504 = vmatprep.subr.bf16.mxu0 0
    %505 = vmatpush2.bf16.msra.mxu0 %v418
    %506 = vmatprep.mubr.bf16.mxu0 %v219
    %507 = vmatmul.mubr.bf16.gmra.mxu0 %v218
    %v508 = vpop.f32.mrf.mxu0
    %v509 = vadd.f32 %v120, %v508
    %v510 = vpop.f32.mrf.mxu0
    %v511 = vpop.f32.mrf.mxu0
    %v512 = vadd.f32 %v120, %v511
    %v513 = vpop.f32.mrf.mxu0
    %514 = vmatprep.mubr.bf16.mxu0 %v223
    %515 = vmatmul.mubr.bf16.gmra.mxu0 %v222
    %v516 = vpop.f32.mrf.mxu0
    %v517 = vadd.f32 %v120, %v516
    %v518 = vpop.f32.mrf.mxu0
    %v519 = vpop.f32.mrf.mxu0
    %v520 = vadd.f32 %v120, %v519
    %v521 = vpop.f32.mrf.mxu0
    %522 = vmatprep.mubr.bf16.mxu0 %v227
    %523 = vmatmul.mubr.bf16.gmra.mxu0 %v226
    %v524 = vpop.f32.mrf.mxu0
    %v525 = vadd.f32 %v120, %v524
    %v526 = vpop.f32.mrf.mxu0
    %v527 = vpop.f32.mrf.mxu0
    %v528 = vadd.f32 %v120, %v527
    %v529 = vpop.f32.mrf.mxu0
    %530 = vmatprep.mubr.bf16.mxu0 %v231
    %531 = vmatmul.mubr.bf16.gmra.mxu0 %v230
    %v532 = vpop.f32.mrf.mxu0
    %v533 = vadd.f32 %v120, %v532
    %v534 = vpop.f32.mrf.mxu0
    %v535 = vpop.f32.mrf.mxu0
    %v536 = vadd.f32 %v120, %v535
    %v537 = vpop.f32.mrf.mxu0
    %538 = vmatprep.mubr.bf16.mxu0 %v235
    %539 = vmatmul.mubr.bf16.gmra.mxu0 %v234
    %v540 = vpop.f32.mrf.mxu0
    %v541 = vadd.f32 %v120, %v540
    %v542 = vpop.f32.mrf.mxu0
    %v543 = vpop.f32.mrf.mxu0
    %v544 = vadd.f32 %v120, %v543
    %v545 = vpop.f32.mrf.mxu0
    %546 = vmatprep.mubr.bf16.mxu0 %v239
    %547 = vmatmul.mubr.bf16.gmra.mxu0 %v238
    %v548 = vpop.f32.mrf.mxu0
    %v549 = vadd.f32 %v120, %v548
    %v550 = vpop.f32.mrf.mxu0
    %v551 = vpop.f32.mrf.mxu0
    %v552 = vadd.f32 %v120, %v551
    %v553 = vpop.f32.mrf.mxu0
    %554 = vmatprep.mubr.bf16.mxu0 %v243
    %555 = vmatmul.mubr.bf16.gmra.mxu0 %v242
    %v556 = vpop.f32.mrf.mxu0
    %v557 = vadd.f32 %v120, %v556
    %v558 = vpop.f32.mrf.mxu0
    %v559 = vpop.f32.mrf.mxu0
    %v560 = vadd.f32 %v120, %v559
    %v561 = vpop.f32.mrf.mxu0
    %562 = vmatprep.mubr.bf16.mxu0 %v247
    %563 = vmatmul.mubr.bf16.gmra.mxu0 %v246
    %v564 = vpop.f32.mrf.mxu0
    %v565 = vadd.f32 %v120, %v564
    %v566 = vpop.f32.mrf.mxu0
    %v567 = vpop.f32.mrf.mxu0
    %v568 = vadd.f32 %v120, %v567
    %v569 = vpop.f32.mrf.mxu0
    %570 = vdwg.mxu0
    %571 = vmatprep.subr.bf16.mxu0 0
    %572 = vmatpush1.bf16.msra.mxu0 %v433
    %573 = vmatprep.subr.bf16.mxu0 0
    %574 = vmatpush1.bf16.msra.mxu0 %v432
    %575 = vmatprep.subr.bf16.mxu0 0
    %576 = vmatpush1.bf16.msra.mxu0 %v431
    %577 = vmatprep.subr.bf16.mxu0 0
    %578 = vmatpush1.bf16.msra.mxu0 %v430
    %579 = vmatprep.subr.bf16.mxu0 0
    %580 = vmatpush1.bf16.msra.mxu0 %v429
    %581 = vmatprep.subr.bf16.mxu0 0
    %582 = vmatpush1.bf16.msra.mxu0 %v428
    %583 = vmatprep.subr.bf16.mxu0 0
    %584 = vmatpush1.bf16.msra.mxu0 %v427
    %585 = vmatprep.subr.bf16.mxu0 0
    %586 = vmatpush1.bf16.msra.mxu0 %v426
    %587 = vmatprep.subr.bf16.mxu0 0
    %588 = vmatpush2.bf16.msra.mxu0 %v441
    %589 = vmatprep.subr.bf16.mxu0 0
    %590 = vmatpush2.bf16.msra.mxu0 %v440
    %591 = vmatprep.subr.bf16.mxu0 0
    %592 = vmatpush2.bf16.msra.mxu0 %v439
    %593 = vmatprep.subr.bf16.mxu0 0
    %594 = vmatpush2.bf16.msra.mxu0 %v438
    %595 = vmatprep.subr.bf16.mxu0 0
    %596 = vmatpush2.bf16.msra.mxu0 %v437
    %597 = vmatprep.subr.bf16.mxu0 0
    %598 = vmatpush2.bf16.msra.mxu0 %v436
    %599 = vmatprep.subr.bf16.mxu0 0
    %600 = vmatpush2.bf16.msra.mxu0 %v435
    %601 = vmatprep.subr.bf16.mxu0 0
    %602 = vmatpush2.bf16.msra.mxu0 %v434
    %603 = vmatprep.mubr.bf16.mxu0 %v221
    %604 = vmatmul.mubr.bf16.gmra.mxu0 %v220
    %v605 = vpop.f32.mrf.mxu0
    %v606 = vadd.f32 %v509, %v605
    %v607 = vpop.f32.mrf.mxu0
    %v608 = vpop.f32.mrf.mxu0
    %v609 = vadd.f32 %v512, %v608
    %v610 = vpop.f32.mrf.mxu0
    %611 = vmatprep.mubr.bf16.mxu0 %v225
    %612 = vmatmul.mubr.bf16.gmra.mxu0 %v224
    %v613 = vpop.f32.mrf.mxu0
    %v614 = vadd.f32 %v517, %v613
    %v615 = vpop.f32.mrf.mxu0
    %v616 = vpop.f32.mrf.mxu0
    %v617 = vadd.f32 %v520, %v616
    %v618 = vpop.f32.mrf.mxu0
    %619 = vmatprep.mubr.bf16.mxu0 %v229
    %620 = vmatmul.mubr.bf16.gmra.mxu0 %v228
    %v621 = vpop.f32.mrf.mxu0
    %v622 = vadd.f32 %v525, %v621
    %v623 = vpop.f32.mrf.mxu0
    %v624 = vpop.f32.mrf.mxu0
    %v625 = vadd.f32 %v528, %v624
    %v626 = vpop.f32.mrf.mxu0
    %627 = vmatprep.mubr.bf16.mxu0 %v233
    %628 = vmatmul.mubr.bf16.gmra.mxu0 %v232
    %v629 = vpop.f32.mrf.mxu0
    %v630 = vadd.f32 %v533, %v629
    %v631 = vpop.f32.mrf.mxu0
    %v632 = vpop.f32.mrf.mxu0
    %v633 = vadd.f32 %v536, %v632
    %v634 = vpop.f32.mrf.mxu0
    %635 = vmatprep.mubr.bf16.mxu0 %v237
    %636 = vmatmul.mubr.bf16.gmra.mxu0 %v236
    %v637 = vpop.f32.mrf.mxu0
    %v638 = vadd.f32 %v541, %v637
    %v639 = vpop.f32.mrf.mxu0
    %v640 = vpop.f32.mrf.mxu0
    %v641 = vadd.f32 %v544, %v640
    %v642 = vpop.f32.mrf.mxu0
    %643 = vmatprep.mubr.bf16.mxu0 %v241
    %644 = vmatmul.mubr.bf16.gmra.mxu0 %v240
    %v645 = vpop.f32.mrf.mxu0
    %v646 = vadd.f32 %v549, %v645
    %v647 = vpop.f32.mrf.mxu0
    %v648 = vpop.f32.mrf.mxu0
    %v649 = vadd.f32 %v552, %v648
    %v650 = vpop.f32.mrf.mxu0
    %651 = vmatprep.mubr.bf16.mxu0 %v245
    %652 = vmatmul.mubr.bf16.gmra.mxu0 %v244
    %v653 = vpop.f32.mrf.mxu0
    %v654 = vadd.f32 %v557, %v653
    %v655 = vpop.f32.mrf.mxu0
    %v656 = vpop.f32.mrf.mxu0
    %v657 = vadd.f32 %v560, %v656
    %v658 = vpop.f32.mrf.mxu0
    %659 = vmatprep.mubr.bf16.mxu0 %v249
    %660 = vmatmul.mubr.bf16.gmra.mxu0 %v248
    %v661 = vpop.f32.mrf.mxu0
    %v662 = vadd.f32 %v565, %v661
    %v663 = vpop.f32.mrf.mxu0
    %v664 = vpop.f32.mrf.mxu0
    %v665 = vadd.f32 %v568, %v664
    %v666 = vpop.f32.mrf.mxu0
    %667 = vdwg.mxu0
    %v668 = vld [vmem:[%s3] sm:$0xf]
    %v669 = vld [vmem:[%s3 + $0x4] sm:$0xf]
    %v670 = vld [vmem:[%s3 + $0x8] sm:$0xf]
    %v671 = vld [vmem:[%s3 + $0xc] sm:$0xf]
    %v672 = vld [vmem:[%s3 + $0x10] sm:$0xf]
    %v673 = vld [vmem:[%s3 + $0x14] sm:$0xf]
    %v674 = vld [vmem:[%s3 + $0x18] sm:$0xf]
    %v675 = vld [vmem:[%s3 + $0x1c] sm:$0xf]
    %v676 = vld [vmem:[%s3 + $0x20] sm:$0xf]
    %v677 = vld [vmem:[%s3 + $0x24] sm:$0xf]
    %v678 = vld [vmem:[%s3 + $0x28] sm:$0xf]
    %v679 = vld [vmem:[%s3 + $0x2c] sm:$0xf]
    %v680 = vld [vmem:[%s3 + $0x30] sm:$0xf]
    %v681 = vld [vmem:[%s3 + $0x34] sm:$0xf]
    %v682 = vld [vmem:[%s3 + $0x38] sm:$0xf]
    %v683 = vld [vmem:[%s3 + $0x3c] sm:$0xf]
    %v684 = vunpack.c.l.bf16 %v668
    %v685 = vunpack.c.l.bf16 %v669
    %v686 = vunpack.c.l.bf16 %v670
    %v687 = vunpack.c.l.bf16 %v671
    %v688 = vunpack.c.l.bf16 %v672
    %v689 = vunpack.c.l.bf16 %v673
    %v690 = vunpack.c.l.bf16 %v674
    %v691 = vunpack.c.l.bf16 %v675
    %v692 = vunpack.c.l.bf16 %v676
    %v693 = vunpack.c.l.bf16 %v677
    %v694 = vunpack.c.l.bf16 %v678
    %v695 = vunpack.c.l.bf16 %v679
    %v696 = vunpack.c.l.bf16 %v680
    %v697 = vunpack.c.l.bf16 %v681
    %v698 = vunpack.c.l.bf16 %v682
    %v699 = vunpack.c.l.bf16 %v683
    %v700 = vadd.f32 %v606, %v684
    %v701 = vadd.f32 %v609, %v685
    %v702 = vadd.f32 %v614, %v686
    %v703 = vadd.f32 %v617, %v687
    %v704 = vadd.f32 %v622, %v688
    %v705 = vadd.f32 %v625, %v689
    %v706 = vadd.f32 %v630, %v690
    %v707 = vadd.f32 %v633, %v691
    %v708 = vadd.f32 %v638, %v692
    %v709 = vadd.f32 %v641, %v693
    %v710 = vadd.f32 %v646, %v694
    %v711 = vadd.f32 %v649, %v695
    %v712 = vadd.f32 %v654, %v696
    %v713 = vadd.f32 %v657, %v697
    %v714 = vadd.f32 %v662, %v698
    %v715 = vadd.f32 %v665, %v699
    %716 = vst [vmem:[#allocation2] sm:$0xff] %v700
    %717 = vst [vmem:[#allocation2 + $0x8] sm:$0xff] %v701
    %718 = vst [vmem:[#allocation2 + $0x10] sm:$0xff] %v702
    %719 = vst [vmem:[#allocation2 + $0x18] sm:$0xff] %v703
    %720 = vst [vmem:[#allocation2 + $0x20] sm:$0xff] %v704
    %721 = vst [vmem:[#allocation2 + $0x28] sm:$0xff] %v705
    %722 = vst [vmem:[#allocation2 + $0x30] sm:$0xff] %v706
    %723 = vst [vmem:[#allocation2 + $0x38] sm:$0xff] %v707
    %724 = vst [vmem:[#allocation2 + $0x40] sm:$0xff] %v708
    %725 = vst [vmem:[#allocation2 + $0x48] sm:$0xff] %v709
    %726 = vst [vmem:[#allocation2 + $0x50] sm:$0xff] %v710
    %727 = vst [vmem:[#allocation2 + $0x58] sm:$0xff] %v711
    %728 = vst [vmem:[#allocation2 + $0x60] sm:$0xff] %v712
    %729 = vst [vmem:[#allocation2 + $0x68] sm:$0xff] %v713
    %730 = vst [vmem:[#allocation2 + $0x70] sm:$0xff] %v714
    %731 = vst [vmem:[#allocation2 + $0x78] sm:$0xff] %v715
    // Predicated region
    $region18: #{block_forward.9} parent=1 // pred_check
      _
    $region19: #{block_forward.9} parent=1 // pred_check_branch
      %733 = sbr.rel (0) target = $region21
    $region20: #{block_forward.9} parent=1 // pred_region
      %s735 = ssub.s32 2048, 2048
      %736 = vsyncadd [#allocation3], %s735
      %s737 = sshll.u32 [#allocation2], 4
      %s738 = int_to_ptr.vmem [resolvable:$true] %s737
      %743 = dma.vmem_to_hbm [thread:$0]  %s738, 2048, %s4, [#allocation3], 128, 128, 8
    $region21: #{block_forward.9} parent=1 // pred_fallthru
      _
    // Predicated region
    $region22: #{block_forward.9} parent=1 // pred_check
      _
    $region23: #{block_forward.9} parent=1 // pred_check_branch
      %745 = sbr.rel (0) target = $region25
    $region24: #{block_forward.9} parent=1 // pred_region
      %746 = dma.done [#allocation3], 2048
    $region25: #{block_forward.9} parent=1 // pred_fallthru
      _
    %747 = vsyncpa [#allocation3], 1

</llo_original>
